<compile_context>
chip_gen: v7x
topology: tpu7x:2x2x1
jax: 0.10.0
libtpu: 0.0.40
codegen_flags: <defaults>
</compile_context>

<pallas_src>
import functools

import jax
import jax.numpy as jnp
from jax.experimental import pallas as pl
from jax.experimental.pallas import tpu as pltpu

_EPS = 1e-5
_NEG_SLOPE = 0.2
_TM_MAX = 512                       # row tile: safe on v5e/v6e/v7x VMEM budgets
_VMEM_LIMIT = 48 * 1024 * 1024      # < v7x 64 MiB physical, > 32 MiB default


def _round_up(x, m):
    return ((x + m - 1) // m) * m


def _leaky_relu(y, neg_slope):
    return jnp.where(y >= 0.0, y, neg_slope * y)


# ----------------------------- Pallas kernels ----------------------------- #
def _matmul_bias_lrelu_kernel(p_ref, w_ref, prm_ref, o_ref, *, neg_slope):
    """Layer 1: conv-as-matmul + bias + LeakyReLU for one M tile."""
    y = jnp.dot(p_ref[...], w_ref[...], preferred_element_type=jnp.float32)
    y = y + prm_ref[0:1, :]                             # bias row
    o_ref[...] = _leaky_relu(y, neg_slope)


def _matmul_stats_kernel(p_ref, w_ref, y_ref, s1_ref, s2_ref):
    """conv-as-matmul for one M tile; accumulate per-channel sum / sum-of-squares
    into resident (8, C_pad) accumulator outputs across the (arbitrary) M axis."""
    y = jnp.dot(p_ref[...], w_ref[...], preferred_element_type=jnp.float32)
    y_ref[...] = y

    @pl.when(pl.program_id(0) == 0)
    def _():
        s1_ref[...] = jnp.zeros_like(s1_ref)
        s2_ref[...] = jnp.zeros_like(s2_ref)

    s1 = jnp.sum(y, axis=0, keepdims=True)
    s2 = jnp.sum(y * y, axis=0, keepdims=True)
    s1_ref[...] += jnp.broadcast_to(s1, s1_ref.shape)
    s2_ref[...] += jnp.broadcast_to(s2, s2_ref.shape)


def _bn_lrelu_kernel(y_ref, s1_ref, s2_ref, prm_ref, o_ref, *,
                     m_valid, eps, neg_slope):
    """Batch-stat BatchNorm + LeakyReLU for one M tile (writes over y in place)."""
    inv_m = 1.0 / m_valid
    mean = s1_ref[0:1, :] * inv_m
    # clamp: E[y^2]-E[y]^2 can go slightly negative in f32
    var = jnp.maximum(s2_ref[0:1, :] * inv_m - mean * mean, 0.0)
    gamma = prm_ref[1:2, :]
    beta = prm_ref[2:3, :]
    scale = gamma * jax.lax.rsqrt(var + eps)
    shift = beta - mean * scale
    z = y_ref[...] * scale + shift
    o_ref[...] = _leaky_relu(z, neg_slope)


# --------------------------- pallas_call wrappers -------------------------- #
def _pad_patches(patches, M_pad, K_pad):
    M, K = patches.shape
    return jnp.pad(patches.astype(jnp.bfloat16),
                   ((0, M_pad - M), (0, K_pad - K)))


def _matmul_cost(M_pad, K_pad, C_pad):
    return pl.CostEstimate(
        flops=2 * M_pad * K_pad * C_pad,
        transcendentals=0,
        bytes_accessed=M_pad * K_pad * 2 + K_pad * C_pad * 2 + M_pad * C_pad * 4)


def _conv_bias_lrelu(patches, w_pad, prm, cout):
    """First layer (no BN): one tiled pallas_call, M axis parallel."""
    M, _ = patches.shape
    K_pad, C_pad = w_pad.shape
    tm = min(_TM_MAX, _round_up(M, 8))
    M_pad = _round_up(M, tm)
    p = _pad_patches(patches, M_pad, K_pad)
    n_m = M_pad // tm

    out = pl.pallas_call(
        functools.partial(_matmul_bias_lrelu_kernel, neg_slope=_NEG_SLOPE),
        out_shape=jax.ShapeDtypeStruct((M_pad, C_pad), jnp.float32),
        grid_spec=pltpu.PrefetchScalarGridSpec(
            num_scalar_prefetch=0,
            grid=(n_m,),
            in_specs=[
                pl.BlockSpec((tm, K_pad), lambda m: (m, 0)),
                pl.BlockSpec((K_pad, C_pad), lambda m: (0, 0)),   # resident
                pl.BlockSpec((8, C_pad), lambda m: (0, 0)),       # packed params
            ],
            out_specs=pl.BlockSpec((tm, C_pad), lambda m: (m, 0)),
        ),
        compiler_params=pltpu.CompilerParams(
            dimension_semantics=("parallel",),
            vmem_limit_bytes=_VMEM_LIMIT),
        cost_estimate=_matmul_cost(M_pad, K_pad, C_pad),
    )(p, w_pad, prm)
    return out[:M, :cout]


def _conv_bn_lrelu(patches, w_pad, prm, cout):
    """BN layers: pass 1 matmul + stats accumulation, pass 2 normalize + LReLU."""
    M, _ = patches.shape
    K_pad, C_pad = w_pad.shape
    tm = min(_TM_MAX, _round_up(M, 8))
    M_pad = _round_up(M, tm)
    p = _pad_patches(patches, M_pad, K_pad)
    n_m = M_pad // tm

    # Pass 1: matmul over M tiles + per-channel sum / sum-of-squares reduction.
    # Padded patch rows are all-zero and the conv has no bias, so they add 0 to
    # the sums; dividing by the true M keeps batch statistics exact.
    y, s1, s2 = pl.pallas_call(
        _matmul_stats_kernel,
        out_shape=(jax.ShapeDtypeStruct((M_pad, C_pad), jnp.float32),
                   jax.ShapeDtypeStruct((8, C_pad), jnp.float32),
                   jax.ShapeDtypeStruct((8, C_pad), jnp.float32)),
        grid_spec=pltpu.PrefetchScalarGridSpec(
            num_scalar_prefetch=0,
            grid=(n_m,),
            in_specs=[
                pl.BlockSpec((tm, K_pad), lambda m: (m, 0)),
                pl.BlockSpec((K_pad, C_pad), lambda m: (0, 0)),   # resident
            ],
            out_specs=[
                pl.BlockSpec((tm, C_pad), lambda m: (m, 0)),
                pl.BlockSpec((8, C_pad), lambda m: (0, 0)),       # accumulator
                pl.BlockSpec((8, C_pad), lambda m: (0, 0)),       # accumulator
            ],
        ),
        compiler_params=pltpu.CompilerParams(
            dimension_semantics=("arbitrary",),       # stats reduce across M
            vmem_limit_bytes=_VMEM_LIMIT),
        cost_estimate=_matmul_cost(M_pad, K_pad, C_pad),
    )(p, w_pad)

    # Pass 2: normalize + LeakyReLU, fully parallel over M tiles, in place.
    out = pl.pallas_call(
        functools.partial(_bn_lrelu_kernel, m_valid=float(M), eps=_EPS,
                          neg_slope=_NEG_SLOPE),
        out_shape=jax.ShapeDtypeStruct((M_pad, C_pad), jnp.float32),
        grid_spec=pltpu.PrefetchScalarGridSpec(
            num_scalar_prefetch=0,
            grid=(n_m,),
            in_specs=[
                pl.BlockSpec((tm, C_pad), lambda m: (m, 0)),      # y (aliased)
                pl.BlockSpec((8, C_pad), lambda m: (0, 0)),       # sum
                pl.BlockSpec((8, C_pad), lambda m: (0, 0)),       # sum of squares
                pl.BlockSpec((8, C_pad), lambda m: (0, 0)),       # packed params
            ],
            out_specs=pl.BlockSpec((tm, C_pad), lambda m: (m, 0)),
        ),
        compiler_params=pltpu.CompilerParams(
            dimension_semantics=("parallel",),
            vmem_limit_bytes=_VMEM_LIMIT),
        input_output_aliases={0: 0},                  # normalize y in place
    )(y, s1, s2, prm)
    return out[:M, :cout]


# ------------------------------- JAX glue ---------------------------------- #
def _im2col_reflect(x, k, stride, pad):
    """x: (N,H,W,C) -> patches (N*OH*OW, k*k*C) with (kh, kw, cin) column order."""
    xp = jnp.pad(x, ((0, 0), (pad, pad), (pad, pad), (0, 0)), mode="reflect")
    N, Hp, Wp, C = xp.shape
    oh = (Hp - k) // stride + 1
    ow = (Wp - k) // stride + 1
    cols = []
    for i in range(k):
        for j in range(k):
            cols.append(xp[:, i:i + stride * oh:stride,
                           j:j + stride * ow:stride, :])
    p = jnp.stack(cols, axis=3)                      # (N, oh, ow, k*k, C)
    return p.reshape(N * oh * ow, k * k * C), oh, ow


def init_params(key, img_ch, feat):
    # (cin, cout, kernel, stride, pad, use_bn) — mirrors Discriminator.__init__
    specs = [
        (img_ch,   feat,     4, 2, 1, False),  # conv + bias + LeakyReLU
        (feat,     feat * 2, 4, 2, 1, True),   # disc_block: conv(no bias)+BN+LReLU
        (feat * 2, feat * 4, 4, 2, 1, True),
        (feat * 4, feat * 8, 4, 1, 1, True),
        (feat * 8, feat * 8, 4, 1, 1, True),
        (feat * 8, 1,        3, 1, 1, True),
    ]
    params = []
    for (cin, cout, k, s, p, use_bn) in specs:
        key, wk, bk = jax.random.split(key, 3)
        # PyTorch Conv2d weight (Cout, Cin, KH, KW) -> (KH*KW*Cin, Cout) matrix.
        w = jax.random.normal(wk, (cout, cin, k, k), jnp.float32) * 0.05
        w_mat = jnp.transpose(w, (2, 3, 1, 0)).reshape(k * k * cin, cout)
        K = k * k * cin
        K_pad = _round_up(K, 128)
        C_pad = _round_up(cout, 128)
        # Pre-padded bf16 MXU operand (done once, not per forward).
        w_pad = jnp.zeros((K_pad, C_pad), jnp.bfloat16)
        w_pad = w_pad.at[:K, :cout].set(w_mat.astype(jnp.bfloat16))
        bias = (jnp.zeros((cout,), jnp.float32) if use_bn
                else jax.random.normal(bk, (cout,), jnp.float32) * 0.05)
        gamma = jnp.ones((cout,), jnp.float32)        # BatchNorm2d default init
        beta = jnp.zeros((cout,), jnp.float32)
        # Pack bias/gamma/beta into one (8, C_pad) f32 operand (rows 0/1/2).
        prm = jnp.zeros((8, C_pad), jnp.float32)
        prm = prm.at[0, :cout].set(bias)
        prm = prm.at[1, :cout].set(gamma)
        prm = prm.at[2, :cout].set(beta)
        params.append(dict(w=w_pad, prm=prm, bias=bias, gamma=gamma, beta=beta,
                           k=k, s=s, p=p, cout=cout, use_bn=use_bn))
    return params


def discriminator_forward(x_nchw, params):
    x = jnp.transpose(x_nchw, (0, 2, 3, 1)).astype(jnp.float32)  # NCHW -> NHWC
    for layer in params:
        n = x.shape[0]
        patches, oh, ow = _im2col_reflect(x, layer["k"], layer["s"], layer["p"])
        if layer["use_bn"]:
            y = _conv_bn_lrelu(patches, layer["w"], layer["prm"], layer["cout"])
        else:
            y = _conv_bias_lrelu(patches, layer["w"], layer["prm"], layer["cout"])
        x = y.reshape(n, oh, ow, layer["cout"])
    return jnp.transpose(x, (0, 3, 1, 2))                        # NHWC -> NCHW


# ------------------------- pure-JAX reference check ------------------------ #
def _reference_forward(x_nchw, params):
    """Same math in plain jnp (bf16-rounded operands, f32 accumulation/BN)."""
    x = jnp.transpose(x_nchw, (0, 2, 3, 1)).astype(jnp.float32)
    for layer in params:
        n = x.shape[0]
        patches, oh, ow = _im2col_reflect(x, layer["k"], layer["s"], layer["p"])
        K = patches.shape[1]
        cout = layer["cout"]
        pb = patches.astype(jnp.bfloat16).astype(jnp.float32)
        wb = layer["w"][:K, :cout].astype(jnp.float32)
        y = pb @ wb
        if layer["use_bn"]:
            mean = jnp.mean(y, axis=0, keepdims=True)
            var = jnp.maximum(jnp.mean(y * y, axis=0, keepdims=True) - mean * mean,
                              0.0)
            y = (y - mean) * jax.lax.rsqrt(var + _EPS) * layer["gamma"] + layer["beta"]
        else:
            y = y + layer["bias"]
        y = jnp.where(y >= 0.0, y, _NEG_SLOPE * y)
        x = y.reshape(n, oh, ow, cout)
    return jnp.transpose(x, (0, 3, 1, 2))


if __name__ == "__main__":
    key = jax.random.PRNGKey(0)
    key, xk, pk = jax.random.split(key, 3)

    # Smallest spatial that survives all 6 layers: 32 -> 16 -> 8 -> 4 -> 3 -> 2 -> 2
    N, IMG_CH, SPATIAL, FEAT = 2, 4, 32, 8
    x = jax.random.normal(xk, (N, IMG_CH, SPATIAL, SPATIAL), jnp.float32)
    params = init_params(pk, IMG_CH, FEAT)

    fwd = jax.jit(lambda inp: discriminator_forward(inp, params))
    out = jax.block_until_ready(fwd(x))

    assert out.shape == (N, 1, 2, 2), out.shape
    assert bool(jnp.all(jnp.isfinite(out)))

    ref = _reference_forward(x, params)
    max_err = float(jnp.max(jnp.abs(out - ref)))
    scale = float(jnp.max(jnp.abs(ref))) + 1e-6
    assert max_err <= 5e-2 * scale + 1e-3, (max_err, scale)

    print("KERNEL_OK")
</pallas_src>

<mosaic_0001>
module attributes {stable_mosaic.version = 11 : i64} {
  func.func @_matmul_bias_lrelu_kernel(%arg0: i32, %arg1: memref<512x128xbf16, #tpu.memory_space<vmem>>, %arg2: memref<128x128xbf16, #tpu.memory_space<vmem>>, %arg3: memref<8x128xf32, #tpu.memory_space<vmem>>, %arg4: memref<512x128xf32, #tpu.memory_space<vmem>>) attributes {dimension_semantics = [#tpu.dimension_semantics<parallel>], iteration_bounds = array<i64: 1>, scalar_prefetch = 0 : i64, scratch_operands = 0 : i64, tpu.core_type = #tpu.core_type<tc>, window_params = [{transform_indices = @transform_0, window_bounds = array<i64: 512, 128>}, {pipeline_mode = #tpu.pipeline_mode<synchronous>, transform_indices = @transform_1, window_bounds = array<i64: 128, 128>}, {pipeline_mode = #tpu.pipeline_mode<synchronous>, transform_indices = @transform_2, window_bounds = array<i64: 8, 128>}, {transform_indices = @transform_3, window_bounds = array<i64: 512, 128>}]} {
    %c0 = arith.constant 0 : index
    %c0_0 = arith.constant 0 : index
    %0 = vector.load %arg1[%c0, %c0_0] : memref<512x128xbf16, #tpu.memory_space<vmem>>, vector<512x128xbf16>
    %c0_1 = arith.constant 0 : index
    %c0_2 = arith.constant 0 : index
    %1 = vector.load %arg2[%c0_1, %c0_2] : memref<128x128xbf16, #tpu.memory_space<vmem>>, vector<128x128xbf16>
    %cst = arith.constant dense<0.000000e+00> : vector<512x128xf32>
    %2 = tpu.matmul %0, %1, %cst {dimension_numbers = #tpu.dot_dimension_numbers<[1], [0], [0], [1], [0, 0, 1, 1], [], []>} : vector<512x128xbf16>, vector<128x128xbf16>, vector<512x128xf32> -> vector<512x128xf32>
    %c0_3 = arith.constant 0 : index
    %c0_4 = arith.constant 0 : index
    %3 = vector.load %arg3[%c0_3, %c0_4] : memref<8x128xf32, #tpu.memory_space<vmem>>, vector<1x128xf32>
    %4 = vector.broadcast %3 : vector<1x128xf32> to vector<512x128xf32>
    %5 = arith.addf %2, %4 : vector<512x128xf32>
    %cst_5 = arith.constant 0.000000e+00 : f32
    %6 = vector.broadcast %cst_5 : f32 to vector<512x128xf32>
    %7 = arith.cmpf oge, %5, %6 : vector<512x128xf32>
    %cst_6 = arith.constant 2.000000e-01 : f32
    %8 = vector.broadcast %cst_6 : f32 to vector<512x128xf32>
    %9 = arith.mulf %8, %5 : vector<512x128xf32>
    %10 = arith.select %7, %5, %9 : vector<512x128xi1>, vector<512x128xf32>
    %c0_7 = arith.constant 0 : index
    %c0_8 = arith.constant 0 : index
    %11 = vector.load %arg4[%c0_7, %c0_8] : memref<512x128xf32, #tpu.memory_space<vmem>>, vector<512x128xf32>
    tpu.vector_store %arg4[%c0_7, %c0_8], %10 {strides = array<i32>} : memref<512x128xf32, #tpu.memory_space<vmem>>, vector<512x128xf32>,
    return
  }
  func.func @transform_0(%arg0: i32) -> (i32, i32) {
    %c0_i32 = arith.constant 0 : i32
    %c0_i32_0 = arith.constant 0 : i32
    return %arg0, %c0_i32 : i32, i32
  }
  func.func @transform_1(%arg0: i32) -> (i32, i32) {
    %c0_i32 = arith.constant 0 : i32
    %c0_i32_0 = arith.constant 0 : i32
    %c0_i32_1 = arith.constant 0 : i32
    return %c0_i32, %c0_i32_0 : i32, i32
  }
  func.func @transform_2(%arg0: i32) -> (i32, i32) {
    %c0_i32 = arith.constant 0 : i32
    %c0_i32_0 = arith.constant 0 : i32
    %c0_i32_1 = arith.constant 0 : i32
    return %c0_i32, %c0_i32_0 : i32, i32
  }
  func.func @transform_3(%arg0: i32) -> (i32, i32) {
    %c0_i32 = arith.constant 0 : i32
    %c0_i32_0 = arith.constant 0 : i32
    return %arg0, %c0_i32 : i32, i32
  }
}

module attributes {stable_mosaic.version = 11 : i64} {
  func.func @_matmul_stats_kernel(%arg0: i32, %arg1: memref<128x128xbf16, #tpu.memory_space<vmem>>, %arg2: memref<128x128xbf16, #tpu.memory_space<vmem>>, %arg3: memref<128x128xf32, #tpu.memory_space<vmem>>, %arg4: memref<8x128xf32, #tpu.memory_space<vmem>>, %arg5: memref<8x128xf32, #tpu.memory_space<vmem>>) attributes {dimension_semantics = [#tpu.dimension_semantics<arbitrary>], iteration_bounds = array<i64: 1>, scalar_prefetch = 0 : i64, scratch_operands = 0 : i64, tpu.core_type = #tpu.core_type<tc>, window_params = [{transform_indices = @transform_0, window_bounds = array<i64: 128, 128>}, {pipeline_mode = #tpu.pipeline_mode<synchronous>, transform_indices = @transform_1, window_bounds = array<i64: 128, 128>}, {transform_indices = @transform_2, window_bounds = array<i64: 128, 128>}, {pipeline_mode = #tpu.pipeline_mode<synchronous>, transform_indices = @transform_3, window_bounds = array<i64: 8, 128>}, {pipeline_mode = #tpu.pipeline_mode<synchronous>, transform_indices = @transform_4, window_bounds = array<i64: 8, 128>}]} {
    %c0 = arith.constant 0 : index
    %c0_0 = arith.constant 0 : index
    %0 = vector.load %arg1[%c0, %c0_0] : memref<128x128xbf16, #tpu.memory_space<vmem>>, vector<128x128xbf16>
    %c0_1 = arith.constant 0 : index
    %c0_2 = arith.constant 0 : index
    %1 = vector.load %arg2[%c0_1, %c0_2] : memref<128x128xbf16, #tpu.memory_space<vmem>>, vector<128x128xbf16>
    %cst = arith.constant dense<0.000000e+00> : vector<128x128xf32>
    %2 = tpu.matmul %0, %1, %cst {dimension_numbers = #tpu.dot_dimension_numbers<[1], [0], [0], [1], [0, 0, 1, 1], [], []>} : vector<128x128xbf16>, vector<128x128xbf16>, vector<128x128xf32> -> vector<128x128xf32>
    %c0_3 = arith.constant 0 : index
    %c0_4 = arith.constant 0 : index
    %3 = vector.load %arg3[%c0_3, %c0_4] : memref<128x128xf32, #tpu.memory_space<vmem>>, vector<128x128xf32>
    tpu.vector_store %arg3[%c0_3, %c0_4], %2 {strides = array<i32>} : memref<128x128xf32, #tpu.memory_space<vmem>>, vector<128x128xf32>,
    %c0_i32 = arith.constant 0 : i32
    %4 = arith.cmpi eq, %arg0, %c0_i32 : i32
    %5 = arith.extui %4 : i1 to i32
    %c0_i32_5 = arith.constant 0 : i32
    %6 = arith.cmpi ne, %5, %c0_i32_5 : i32
    scf.if %6 {
      %cst_16 = arith.constant 0.000000e+00 : f32
      %22 = vector.broadcast %cst_16 : f32 to vector<8x128xf32>
      %c0_17 = arith.constant 0 : index
      %c0_18 = arith.constant 0 : index
      %23 = vector.load %arg4[%c0_17, %c0_18] : memref<8x128xf32, #tpu.memory_space<vmem>>, vector<8x128xf32>
      tpu.vector_store %arg4[%c0_17, %c0_18], %22 {strides = array<i32>} : memref<8x128xf32, #tpu.memory_space<vmem>>, vector<8x128xf32>,
      %cst_19 = arith.constant 0.000000e+00 : f32
      %24 = vector.broadcast %cst_19 : f32 to vector<8x128xf32>
      %c0_20 = arith.constant 0 : index
      %c0_21 = arith.constant 0 : index
      %25 = vector.load %arg5[%c0_20, %c0_21] : memref<8x128xf32, #tpu.memory_space<vmem>>, vector<8x128xf32>
      tpu.vector_store %arg5[%c0_20, %c0_21], %24 {strides = array<i32>} : memref<8x128xf32, #tpu.memory_space<vmem>>, vector<8x128xf32>,
    } else {
    }
    %cst_6 = arith.constant dense<0.000000e+00> : vector<128xf32>
    %7 = vector.multi_reduction <add>, %2, %cst_6 [0] : vector<128x128xf32> to vector<128xf32>
    %8 = vector.shape_cast %7 : vector<128xf32> to vector<1x128xf32>
    %9 = arith.mulf %2, %2 : vector<128x128xf32>
    %cst_7 = arith.constant dense<0.000000e+00> : vector<128xf32>
    %10 = vector.multi_reduction <add>, %9, %cst_7 [0] : vector<128x128xf32> to vector<128xf32>
    %11 = vector.shape_cast %10 : vector<128xf32> to vector<1x128xf32>
    %c0_8 = arith.constant 0 : index
    %c0_9 = arith.constant 0 : index
    %12 = vector.load %arg4[%c0_8, %c0_9] : memref<8x128xf32, #tpu.memory_space<vmem>>, vector<8x128xf32>
    %13 = vector.shape_cast %8 : vector<1x128xf32> to vector<1x128xf32>
    %14 = vector.broadcast %13 : vector<1x128xf32> to vector<8x128xf32>
    %15 = arith.addf %12, %14 : vector<8x128xf32>
    %c0_10 = arith.constant 0 : index
    %c0_11 = arith.constant 0 : index
    %16 = vector.load %arg4[%c0_10, %c0_11] : memref<8x128xf32, #tpu.memory_space<vmem>>, vector<8x128xf32>
    tpu.vector_store %arg4[%c0_10, %c0_11], %15 {strides = array<i32>} : memref<8x128xf32, #tpu.memory_space<vmem>>, vector<8x128xf32>,
    %c0_12 = arith.constant 0 : index
    %c0_13 = arith.constant 0 : index
    %17 = vector.load %arg5[%c0_12, %c0_13] : memref<8x128xf32, #tpu.memory_space<vmem>>, vector<8x128xf32>
    %18 = vector.shape_cast %11 : vector<1x128xf32> to vector<1x128xf32>
    %19 = vector.broadcast %18 : vector<1x128xf32> to vector<8x128xf32>
    %20 = arith.addf %17, %19 : vector<8x128xf32>
    %c0_14 = arith.constant 0 : index
    %c0_15 = arith.constant 0 : index
    %21 = vector.load %arg5[%c0_14, %c0_15] : memref<8x128xf32, #tpu.memory_space<vmem>>, vector<8x128xf32>
    tpu.vector_store %arg5[%c0_14, %c0_15], %20 {strides = array<i32>} : memref<8x128xf32, #tpu.memory_space<vmem>>, vector<8x128xf32>,
    return
  }
  func.func @transform_0(%arg0: i32) -> (i32, i32) {
    %c0_i32 = arith.constant 0 : i32
    %c0_i32_0 = arith.constant 0 : i32
    return %arg0, %c0_i32 : i32, i32
  }
  func.func @transform_1(%arg0: i32) -> (i32, i32) {
    %c0_i32 = arith.constant 0 : i32
    %c0_i32_0 = arith.constant 0 : i32
    %c0_i32_1 = arith.constant 0 : i32
    return %c0_i32, %c0_i32_0 : i32, i32
  }
  func.func @transform_2(%arg0: i32) -> (i32, i32) {
    %c0_i32 = arith.constant 0 : i32
    %c0_i32_0 = arith.constant 0 : i32
    return %arg0, %c0_i32 : i32, i32
  }
  func.func @transform_3(%arg0: i32) -> (i32, i32) {
    %c0_i32 = arith.constant 0 : i32
    %c0_i32_0 = arith.constant 0 : i32
    %c0_i32_1 = arith.constant 0 : i32
    return %c0_i32, %c0_i32_0 : i32, i32
  }
  func.func @transform_4(%arg0: i32) -> (i32, i32) {
    %c0_i32 = arith.constant 0 : i32
    %c0_i32_0 = arith.constant 0 : i32
    %c0_i32_1 = arith.constant 0 : i32
    return %c0_i32, %c0_i32_0 : i32, i32
  }
}

module attributes {stable_mosaic.version = 11 : i64} {
  func.func @_bn_lrelu_kernel(%arg0: i32, %arg1: memref<128x128xf32, #tpu.memory_space<vmem>>, %arg2: memref<8x128xf32, #tpu.memory_space<vmem>>, %arg3: memref<8x128xf32, #tpu.memory_space<vmem>>, %arg4: memref<8x128xf32, #tpu.memory_space<vmem>>, %arg5: memref<128x128xf32, #tpu.memory_space<vmem>>) attributes {dimension_semantics = [#tpu.dimension_semantics<parallel>], iteration_bounds = array<i64: 1>, scalar_prefetch = 0 : i64, scratch_operands = 0 : i64, tpu.core_type = #tpu.core_type<tc>, window_params = [{transform_indices = @transform_0, window_bounds = array<i64: 128, 128>}, {pipeline_mode = #tpu.pipeline_mode<synchronous>, transform_indices = @transform_1, window_bounds = array<i64: 8, 128>}, {pipeline_mode = #tpu.pipeline_mode<synchronous>, transform_indices = @transform_2, window_bounds = array<i64: 8, 128>}, {pipeline_mode = #tpu.pipeline_mode<synchronous>, transform_indices = @transform_3, window_bounds = array<i64: 8, 128>}, {transform_indices = @transform_4, window_bounds = array<i64: 128, 128>}]} {
    %c0 = arith.constant 0 : index
    %c0_0 = arith.constant 0 : index
    %0 = vector.load %arg2[%c0, %c0_0] : memref<8x128xf32, #tpu.memory_space<vmem>>, vector<1x128xf32>
    %cst = arith.constant 7.812500e-03 : f32
    %1 = vector.broadcast %cst : f32 to vector<1x128xf32>
    %2 = arith.mulf %0, %1 : vector<1x128xf32>
    %c0_1 = arith.constant 0 : index
    %c0_2 = arith.constant 0 : index
    %3 = vector.load %arg3[%c0_1, %c0_2] : memref<8x128xf32, #tpu.memory_space<vmem>>, vector<1x128xf32>
    %cst_3 = arith.constant 7.812500e-03 : f32
    %4 = vector.broadcast %cst_3 : f32 to vector<1x128xf32>
    %5 = arith.mulf %3, %4 : vector<1x128xf32>
    %6 = arith.mulf %2, %2 : vector<1x128xf32>
    %7 = arith.subf %5, %6 : vector<1x128xf32>
    %cst_4 = arith.constant 0.000000e+00 : f32
    %8 = vector.broadcast %cst_4 : f32 to vector<1x128xf32>
    %9 = arith.maximumf %7, %8 : vector<1x128xf32>
    %c1 = arith.constant 1 : index
    %c0_5 = arith.constant 0 : index
    %10 = vector.load %arg4[%c1, %c0_5] : memref<8x128xf32, #tpu.memory_space<vmem>>, vector<1x128xf32>
    %c2 = arith.constant 2 : index
    %c0_6 = arith.constant 0 : index
    %11 = vector.load %arg4[%c2, %c0_6] : memref<8x128xf32, #tpu.memory_space<vmem>>, vector<1x128xf32>
    %cst_7 = arith.constant 9.99999974E-6 : f32
    %12 = vector.broadcast %cst_7 : f32 to vector<1x128xf32>
    %13 = arith.addf %9, %12 : vector<1x128xf32>
    %14 = math.rsqrt %13 : vector<1x128xf32>
    %15 = arith.mulf %10, %14 : vector<1x128xf32>
    %16 = arith.mulf %2, %15 : vector<1x128xf32>
    %17 = arith.subf %11, %16 : vector<1x128xf32>
    %c0_8 = arith.constant 0 : index
    %c0_9 = arith.constant 0 : index
    %18 = vector.load %arg1[%c0_8, %c0_9] : memref<128x128xf32, #tpu.memory_space<vmem>>, vector<128x128xf32>
    %19 = vector.broadcast %15 : vector<1x128xf32> to vector<128x128xf32>
    %20 = arith.mulf %18, %19 : vector<128x128xf32>
    %21 = vector.broadcast %17 : vector<1x128xf32> to vector<128x128xf32>
    %22 = arith.addf %20, %21 : vector<128x128xf32>
    %cst_10 = arith.constant 0.000000e+00 : f32
    %23 = vector.broadcast %cst_10 : f32 to vector<128x128xf32>
    %24 = arith.cmpf oge, %22, %23 : vector<128x128xf32>
    %cst_11 = arith.constant 2.000000e-01 : f32
    %25 = vector.broadcast %cst_11 : f32 to vector<128x128xf32>
    %26 = arith.mulf %25, %22 : vector<128x128xf32>
    %27 = arith.select %24, %22, %26 : vector<128x128xi1>, vector<128x128xf32>
    %c0_12 = arith.constant 0 : index
    %c0_13 = arith.constant 0 : index
    %28 = vector.load %arg5[%c0_12, %c0_13] : memref<128x128xf32, #tpu.memory_space<vmem>>, vector<128x128xf32>
    tpu.vector_store %arg5[%c0_12, %c0_13], %27 {strides = array<i32>} : memref<128x128xf32, #tpu.memory_space<vmem>>, vector<128x128xf32>,
    return
  }
  func.func @transform_0(%arg0: i32) -> (i32, i32) {
    %c0_i32 = arith.constant 0 : i32
    %c0_i32_0 = arith.constant 0 : i32
    return %arg0, %c0_i32 : i32, i32
  }
  func.func @transform_1(%arg0: i32) -> (i32, i32) {
    %c0_i32 = arith.constant 0 : i32
    %c0_i32_0 = arith.constant 0 : i32
    %c0_i32_1 = arith.constant 0 : i32
    return %c0_i32, %c0_i32_0 : i32, i32
  }
  func.func @transform_2(%arg0: i32) -> (i32, i32) {
    %c0_i32 = arith.constant 0 : i32
    %c0_i32_0 = arith.constant 0 : i32
    %c0_i32_1 = arith.constant 0 : i32
    return %c0_i32, %c0_i32_0 : i32, i32
  }
  func.func @transform_3(%arg0: i32) -> (i32, i32) {
    %c0_i32 = arith.constant 0 : i32
    %c0_i32_0 = arith.constant 0 : i32
    %c0_i32_1 = arith.constant 0 : i32
    return %c0_i32, %c0_i32_0 : i32, i32
  }
  func.func @transform_4(%arg0: i32) -> (i32, i32) {
    %c0_i32 = arith.constant 0 : i32
    %c0_i32_0 = arith.constant 0 : i32
    return %arg0, %c0_i32 : i32, i32
  }
}

module attributes {stable_mosaic.version = 11 : i64} {
  func.func @_matmul_stats_kernel(%arg0: i32, %arg1: memref<32x256xbf16, #tpu.memory_space<vmem>>, %arg2: memref<256x128xbf16, #tpu.memory_space<vmem>>, %arg3: memref<32x128xf32, #tpu.memory_space<vmem>>, %arg4: memref<8x128xf32, #tpu.memory_space<vmem>>, %arg5: memref<8x128xf32, #tpu.memory_space<vmem>>) attributes {dimension_semantics = [#tpu.dimension_semantics<arbitrary>], iteration_bounds = array<i64: 1>, scalar_prefetch = 0 : i64, scratch_operands = 0 : i64, tpu.core_type = #tpu.core_type<tc>, window_params = [{transform_indices = @transform_0, window_bounds = array<i64: 32, 256>}, {pipeline_mode = #tpu.pipeline_mode<synchronous>, transform_indices = @transform_1, window_bounds = array<i64: 256, 128>}, {transform_indices = @transform_2, window_bounds = array<i64: 32, 128>}, {pipeline_mode = #tpu.pipeline_mode<synchronous>, transform_indices = @transform_3, window_bounds = array<i64: 8, 128>}, {pipeline_mode = #tpu.pipeline_mode<synchronous>, transform_indices = @transform_4, window_bounds = array<i64: 8, 128>}]} {
    %c0 = arith.constant 0 : index
    %c0_0 = arith.constant 0 : index
    %0 = vector.load %arg1[%c0, %c0_0] : memref<32x256xbf16, #tpu.memory_space<vmem>>, vector<32x256xbf16>
    %c0_1 = arith.constant 0 : index
    %c0_2 = arith.constant 0 : index
    %1 = vector.load %arg2[%c0_1, %c0_2] : memref<256x128xbf16, #tpu.memory_space<vmem>>, vector<256x128xbf16>
    %cst = arith.constant dense<0.000000e+00> : vector<32x128xf32>
    %2 = tpu.matmul %0, %1, %cst {dimension_numbers = #tpu.dot_dimension_numbers<[1], [0], [0], [1], [0, 0, 1, 1], [], []>} : vector<32x256xbf16>, vector<256x128xbf16>, vector<32x128xf32> -> vector<32x128xf32>
    %c0_3 = arith.constant 0 : index
    %c0_4 = arith.constant 0 : index
    %3 = vector.load %arg3[%c0_3, %c0_4] : memref<32x128xf32, #tpu.memory_space<vmem>>, vector<32x128xf32>
    tpu.vector_store %arg3[%c0_3, %c0_4], %2 {strides = array<i32>} : memref<32x128xf32, #tpu.memory_space<vmem>>, vector<32x128xf32>,
    %c0_i32 = arith.constant 0 : i32
    %4 = arith.cmpi eq, %arg0, %c0_i32 : i32
    %5 = arith.extui %4 : i1 to i32
    %c0_i32_5 = arith.constant 0 : i32
    %6 = arith.cmpi ne, %5, %c0_i32_5 : i32
    scf.if %6 {
      %cst_16 = arith.constant 0.000000e+00 : f32
      %22 = vector.broadcast %cst_16 : f32 to vector<8x128xf32>
      %c0_17 = arith.constant 0 : index
      %c0_18 = arith.constant 0 : index
      %23 = vector.load %arg4[%c0_17, %c0_18] : memref<8x128xf32, #tpu.memory_space<vmem>>, vector<8x128xf32>
      tpu.vector_store %arg4[%c0_17, %c0_18], %22 {strides = array<i32>} : memref<8x128xf32, #tpu.memory_space<vmem>>, vector<8x128xf32>,
      %cst_19 = arith.constant 0.000000e+00 : f32
      %24 = vector.broadcast %cst_19 : f32 to vector<8x128xf32>
      %c0_20 = arith.constant 0 : index
      %c0_21 = arith.constant 0 : index
      %25 = vector.load %arg5[%c0_20, %c0_21] : memref<8x128xf32, #tpu.memory_space<vmem>>, vector<8x128xf32>
      tpu.vector_store %arg5[%c0_20, %c0_21], %24 {strides = array<i32>} : memref<8x128xf32, #tpu.memory_space<vmem>>, vector<8x128xf32>,
    } else {
    }
    %cst_6 = arith.constant dense<0.000000e+00> : vector<128xf32>
    %7 = vector.multi_reduction <add>, %2, %cst_6 [0] : vector<32x128xf32> to vector<128xf32>
    %8 = vector.shape_cast %7 : vector<128xf32> to vector<1x128xf32>
    %9 = arith.mulf %2, %2 : vector<32x128xf32>
    %cst_7 = arith.constant dense<0.000000e+00> : vector<128xf32>
    %10 = vector.multi_reduction <add>, %9, %cst_7 [0] : vector<32x128xf32> to vector<128xf32>
    %11 = vector.shape_cast %10 : vector<128xf32> to vector<1x128xf32>
    %c0_8 = arith.constant 0 : index
    %c0_9 = arith.constant 0 : index
    %12 = vector.load %arg4[%c0_8, %c0_9] : memref<8x128xf32, #tpu.memory_space<vmem>>, vector<8x128xf32>
    %13 = vector.shape_cast %8 : vector<1x128xf32> to vector<1x128xf32>
    %14 = vector.broadcast %13 : vector<1x128xf32> to vector<8x128xf32>
    %15 = arith.addf %12, %14 : vector<8x128xf32>
    %c0_10 = arith.constant 0 : index
    %c0_11 = arith.constant 0 : index
    %16 = vector.load %arg4[%c0_10, %c0_11] : memref<8x128xf32, #tpu.memory_space<vmem>>, vector<8x128xf32>
    tpu.vector_store %arg4[%c0_10, %c0_11], %15 {strides = array<i32>} : memref<8x128xf32, #tpu.memory_space<vmem>>, vector<8x128xf32>,
    %c0_12 = arith.constant 0 : index
    %c0_13 = arith.constant 0 : index
    %17 = vector.load %arg5[%c0_12, %c0_13] : memref<8x128xf32, #tpu.memory_space<vmem>>, vector<8x128xf32>
    %18 = vector.shape_cast %11 : vector<1x128xf32> to vector<1x128xf32>
    %19 = vector.broadcast %18 : vector<1x128xf32> to vector<8x128xf32>
    %20 = arith.addf %17, %19 : vector<8x128xf32>
    %c0_14 = arith.constant 0 : index
    %c0_15 = arith.constant 0 : index
    %21 = vector.load %arg5[%c0_14, %c0_15] : memref<8x128xf32, #tpu.memory_space<vmem>>, vector<8x128xf32>
    tpu.vector_store %arg5[%c0_14, %c0_15], %20 {strides = array<i32>} : memref<8x128xf32, #tpu.memory_space<vmem>>, vector<8x128xf32>,
    return
  }
  func.func @transform_0(%arg0: i32) -> (i32, i32) {
    %c0_i32 = arith.constant 0 : i32
    %c0_i32_0 = arith.constant 0 : i32
    return %arg0, %c0_i32 : i32, i32
  }
  func.func @transform_1(%arg0: i32) -> (i32, i32) {
    %c0_i32 = arith.constant 0 : i32
    %c0_i32_0 = arith.constant 0 : i32
    %c0_i32_1 = arith.constant 0 : i32
    return %c0_i32, %c0_i32_0 : i32, i32
  }
  func.func @transform_2(%arg0: i32) -> (i32, i32) {
    %c0_i32 = arith.constant 0 : i32
    %c0_i32_0 = arith.constant 0 : i32
    return %arg0, %c0_i32 : i32, i32
  }
  func.func @transform_3(%arg0: i32) -> (i32, i32) {
    %c0_i32 = arith.constant 0 : i32
    %c0_i32_0 = arith.constant 0 : i32
    %c0_i32_1 = arith.constant 0 : i32
    return %c0_i32, %c0_i32_0 : i32, i32
  }
  func.func @transform_4(%arg0: i32) -> (i32, i32) {
    %c0_i32 = arith.constant 0 : i32
    %c0_i32_0 = arith.constant 0 : i32
    %c0_i32_1 = arith.constant 0 : i32
    return %c0_i32, %c0_i32_0 : i32, i32
  }
}

module attributes {stable_mosaic.version = 11 : i64} {
  func.func @_bn_lrelu_kernel(%arg0: i32, %arg1: memref<32x128xf32, #tpu.memory_space<vmem>>, %arg2: memref<8x128xf32, #tpu.memory_space<vmem>>, %arg3: memref<8x128xf32, #tpu.memory_space<vmem>>, %arg4: memref<8x128xf32, #tpu.memory_space<vmem>>, %arg5: memref<32x128xf32, #tpu.memory_space<vmem>>) attributes {dimension_semantics = [#tpu.dimension_semantics<parallel>], iteration_bounds = array<i64: 1>, scalar_prefetch = 0 : i64, scratch_operands = 0 : i64, tpu.core_type = #tpu.core_type<tc>, window_params = [{transform_indices = @transform_0, window_bounds = array<i64: 32, 128>}, {pipeline_mode = #tpu.pipeline_mode<synchronous>, transform_indices = @transform_1, window_bounds = array<i64: 8, 128>}, {pipeline_mode = #tpu.pipeline_mode<synchronous>, transform_indices = @transform_2, window_bounds = array<i64: 8, 128>}, {pipeline_mode = #tpu.pipeline_mode<synchronous>, transform_indices = @transform_3, window_bounds = array<i64: 8, 128>}, {transform_indices = @transform_4, window_bounds = array<i64: 32, 128>}]} {
    %c0 = arith.constant 0 : index
    %c0_0 = arith.constant 0 : index
    %0 = vector.load %arg2[%c0, %c0_0] : memref<8x128xf32, #tpu.memory_space<vmem>>, vector<1x128xf32>
    %cst = arith.constant 3.125000e-02 : f32
    %1 = vector.broadcast %cst : f32 to vector<1x128xf32>
    %2 = arith.mulf %0, %1 : vector<1x128xf32>
    %c0_1 = arith.constant 0 : index
    %c0_2 = arith.constant 0 : index
    %3 = vector.load %arg3[%c0_1, %c0_2] : memref<8x128xf32, #tpu.memory_space<vmem>>, vector<1x128xf32>
    %cst_3 = arith.constant 3.125000e-02 : f32
    %4 = vector.broadcast %cst_3 : f32 to vector<1x128xf32>
    %5 = arith.mulf %3, %4 : vector<1x128xf32>
    %6 = arith.mulf %2, %2 : vector<1x128xf32>
    %7 = arith.subf %5, %6 : vector<1x128xf32>
    %cst_4 = arith.constant 0.000000e+00 : f32
    %8 = vector.broadcast %cst_4 : f32 to vector<1x128xf32>
    %9 = arith.maximumf %7, %8 : vector<1x128xf32>
    %c1 = arith.constant 1 : index
    %c0_5 = arith.constant 0 : index
    %10 = vector.load %arg4[%c1, %c0_5] : memref<8x128xf32, #tpu.memory_space<vmem>>, vector<1x128xf32>
    %c2 = arith.constant 2 : index
    %c0_6 = arith.constant 0 : index
    %11 = vector.load %arg4[%c2, %c0_6] : memref<8x128xf32, #tpu.memory_space<vmem>>, vector<1x128xf32>
    %cst_7 = arith.constant 9.99999974E-6 : f32
    %12 = vector.broadcast %cst_7 : f32 to vector<1x128xf32>
    %13 = arith.addf %9, %12 : vector<1x128xf32>
    %14 = math.rsqrt %13 : vector<1x128xf32>
    %15 = arith.mulf %10, %14 : vector<1x128xf32>
    %16 = arith.mulf %2, %15 : vector<1x128xf32>
    %17 = arith.subf %11, %16 : vector<1x128xf32>
    %c0_8 = arith.constant 0 : index
    %c0_9 = arith.constant 0 : index
    %18 = vector.load %arg1[%c0_8, %c0_9] : memref<32x128xf32, #tpu.memory_space<vmem>>, vector<32x128xf32>
    %19 = vector.broadcast %15 : vector<1x128xf32> to vector<32x128xf32>
    %20 = arith.mulf %18, %19 : vector<32x128xf32>
    %21 = vector.broadcast %17 : vector<1x128xf32> to vector<32x128xf32>
    %22 = arith.addf %20, %21 : vector<32x128xf32>
    %cst_10 = arith.constant 0.000000e+00 : f32
    %23 = vector.broadcast %cst_10 : f32 to vector<32x128xf32>
    %24 = arith.cmpf oge, %22, %23 : vector<32x128xf32>
    %cst_11 = arith.constant 2.000000e-01 : f32
    %25 = vector.broadcast %cst_11 : f32 to vector<32x128xf32>
    %26 = arith.mulf %25, %22 : vector<32x128xf32>
    %27 = arith.select %24, %22, %26 : vector<32x128xi1>, vector<32x128xf32>
    %c0_12 = arith.constant 0 : index
    %c0_13 = arith.constant 0 : index
    %28 = vector.load %arg5[%c0_12, %c0_13] : memref<32x128xf32, #tpu.memory_space<vmem>>, vector<32x128xf32>
    tpu.vector_store %arg5[%c0_12, %c0_13], %27 {strides = array<i32>} : memref<32x128xf32, #tpu.memory_space<vmem>>, vector<32x128xf32>,
    return
  }
  func.func @transform_0(%arg0: i32) -> (i32, i32) {
    %c0_i32 = arith.constant 0 : i32
    %c0_i32_0 = arith.constant 0 : i32
    return %arg0, %c0_i32 : i32, i32
  }
  func.func @transform_1(%arg0: i32) -> (i32, i32) {
    %c0_i32 = arith.constant 0 : i32
    %c0_i32_0 = arith.constant 0 : i32
    %c0_i32_1 = arith.constant 0 : i32
    return %c0_i32, %c0_i32_0 : i32, i32
  }
  func.func @transform_2(%arg0: i32) -> (i32, i32) {
    %c0_i32 = arith.constant 0 : i32
    %c0_i32_0 = arith.constant 0 : i32
    %c0_i32_1 = arith.constant 0 : i32
    return %c0_i32, %c0_i32_0 : i32, i32
  }
  func.func @transform_3(%arg0: i32) -> (i32, i32) {
    %c0_i32 = arith.constant 0 : i32
    %c0_i32_0 = arith.constant 0 : i32
    %c0_i32_1 = arith.constant 0 : i32
    return %c0_i32, %c0_i32_0 : i32, i32
  }
  func.func @transform_4(%arg0: i32) -> (i32, i32) {
    %c0_i32 = arith.constant 0 : i32
    %c0_i32_0 = arith.constant 0 : i32
    return %arg0, %c0_i32 : i32, i32
  }
}

module attributes {stable_mosaic.version = 11 : i64} {
  func.func @_matmul_stats_kernel(%arg0: i32, %arg1: memref<24x512xbf16, #tpu.memory_space<vmem>>, %arg2: memref<512x128xbf16, #tpu.memory_space<vmem>>, %arg3: memref<24x128xf32, #tpu.memory_space<vmem>>, %arg4: memref<8x128xf32, #tpu.memory_space<vmem>>, %arg5: memref<8x128xf32, #tpu.memory_space<vmem>>) attributes {dimension_semantics = [#tpu.dimension_semantics<arbitrary>], iteration_bounds = array<i64: 1>, scalar_prefetch = 0 : i64, scratch_operands = 0 : i64, tpu.core_type = #tpu.core_type<tc>, window_params = [{transform_indices = @transform_0, window_bounds = array<i64: 24, 512>}, {pipeline_mode = #tpu.pipeline_mode<synchronous>, transform_indices = @transform_1, window_bounds = array<i64: 512, 128>}, {transform_indices = @transform_2, window_bounds = array<i64: 24, 128>}, {pipeline_mode = #tpu.pipeline_mode<synchronous>, transform_indices = @transform_3, window_bounds = array<i64: 8, 128>}, {pipeline_mode = #tpu.pipeline_mode<synchronous>, transform_indices = @transform_4, window_bounds = array<i64: 8, 128>}]} {
    %c0 = arith.constant 0 : index
    %c0_0 = arith.constant 0 : index
    %0 = vector.load %arg1[%c0, %c0_0] : memref<24x512xbf16, #tpu.memory_space<vmem>>, vector<24x512xbf16>
    %c0_1 = arith.constant 0 : index
    %c0_2 = arith.constant 0 : index
    %1 = vector.load %arg2[%c0_1, %c0_2] : memref<512x128xbf16, #tpu.memory_space<vmem>>, vector<512x128xbf16>
    %cst = arith.constant dense<0.000000e+00> : vector<24x128xf32>
    %2 = tpu.matmul %0, %1, %cst {dimension_numbers = #tpu.dot_dimension_numbers<[1], [0], [0], [1], [0, 0, 1, 1], [], []>} : vector<24x512xbf16>, vector<512x128xbf16>, vector<24x128xf32> -> vector<24x128xf32>
    %c0_3 = arith.constant 0 : index
    %c0_4 = arith.constant 0 : index
    %3 = vector.load %arg3[%c0_3, %c0_4] : memref<24x128xf32, #tpu.memory_space<vmem>>, vector<24x128xf32>
    tpu.vector_store %arg3[%c0_3, %c0_4], %2 {strides = array<i32>} : memref<24x128xf32, #tpu.memory_space<vmem>>, vector<24x128xf32>,
    %c0_i32 = arith.constant 0 : i32
    %4 = arith.cmpi eq, %arg0, %c0_i32 : i32
    %5 = arith.extui %4 : i1 to i32
    %c0_i32_5 = arith.constant 0 : i32
    %6 = arith.cmpi ne, %5, %c0_i32_5 : i32
    scf.if %6 {
      %cst_16 = arith.constant 0.000000e+00 : f32
      %22 = vector.broadcast %cst_16 : f32 to vector<8x128xf32>
      %c0_17 = arith.constant 0 : index
      %c0_18 = arith.constant 0 : index
      %23 = vector.load %arg4[%c0_17, %c0_18] : memref<8x128xf32, #tpu.memory_space<vmem>>, vector<8x128xf32>
      tpu.vector_store %arg4[%c0_17, %c0_18], %22 {strides = array<i32>} : memref<8x128xf32, #tpu.memory_space<vmem>>, vector<8x128xf32>,
      %cst_19 = arith.constant 0.000000e+00 : f32
      %24 = vector.broadcast %cst_19 : f32 to vector<8x128xf32>
      %c0_20 = arith.constant 0 : index
      %c0_21 = arith.constant 0 : index
      %25 = vector.load %arg5[%c0_20, %c0_21] : memref<8x128xf32, #tpu.memory_space<vmem>>, vector<8x128xf32>
      tpu.vector_store %arg5[%c0_20, %c0_21], %24 {strides = array<i32>} : memref<8x128xf32, #tpu.memory_space<vmem>>, vector<8x128xf32>,
    } else {
    }
    %cst_6 = arith.constant dense<0.000000e+00> : vector<128xf32>
    %7 = vector.multi_reduction <add>, %2, %cst_6 [0] : vector<24x128xf32> to vector<128xf32>
    %8 = vector.shape_cast %7 : vector<128xf32> to vector<1x128xf32>
    %9 = arith.mulf %2, %2 : vector<24x128xf32>
    %cst_7 = arith.constant dense<0.000000e+00> : vector<128xf32>
    %10 = vector.multi_reduction <add>, %9, %cst_7 [0] : vector<24x128xf32> to vector<128xf32>
    %11 = vector.shape_cast %10 : vector<128xf32> to vector<1x128xf32>
    %c0_8 = arith.constant 0 : index
    %c0_9 = arith.constant 0 : index
    %12 = vector.load %arg4[%c0_8, %c0_9] : memref<8x128xf32, #tpu.memory_space<vmem>>, vector<8x128xf32>
    %13 = vector.shape_cast %8 : vector<1x128xf32> to vector<1x128xf32>
    %14 = vector.broadcast %13 : vector<1x128xf32> to vector<8x128xf32>
    %15 = arith.addf %12, %14 : vector<8x128xf32>
    %c0_10 = arith.constant 0 : index
    %c0_11 = arith.constant 0 : index
    %16 = vector.load %arg4[%c0_10, %c0_11] : memref<8x128xf32, #tpu.memory_space<vmem>>, vector<8x128xf32>
    tpu.vector_store %arg4[%c0_10, %c0_11], %15 {strides = array<i32>} : memref<8x128xf32, #tpu.memory_space<vmem>>, vector<8x128xf32>,
    %c0_12 = arith.constant 0 : index
    %c0_13 = arith.constant 0 : index
    %17 = vector.load %arg5[%c0_12, %c0_13] : memref<8x128xf32, #tpu.memory_space<vmem>>, vector<8x128xf32>
    %18 = vector.shape_cast %11 : vector<1x128xf32> to vector<1x128xf32>
    %19 = vector.broadcast %18 : vector<1x128xf32> to vector<8x128xf32>
    %20 = arith.addf %17, %19 : vector<8x128xf32>
    %c0_14 = arith.constant 0 : index
    %c0_15 = arith.constant 0 : index
    %21 = vector.load %arg5[%c0_14, %c0_15] : memref<8x128xf32, #tpu.memory_space<vmem>>, vector<8x128xf32>
    tpu.vector_store %arg5[%c0_14, %c0_15], %20 {strides = array<i32>} : memref<8x128xf32, #tpu.memory_space<vmem>>, vector<8x128xf32>,
    return
  }
  func.func @transform_0(%arg0: i32) -> (i32, i32) {
    %c0_i32 = arith.constant 0 : i32
    %c0_i32_0 = arith.constant 0 : i32
    return %arg0, %c0_i32 : i32, i32
  }
  func.func @transform_1(%arg0: i32) -> (i32, i32) {
    %c0_i32 = arith.constant 0 : i32
    %c0_i32_0 = arith.constant 0 : i32
    %c0_i32_1 = arith.constant 0 : i32
    return %c0_i32, %c0_i32_0 : i32, i32
  }
  func.func @transform_2(%arg0: i32) -> (i32, i32) {
    %c0_i32 = arith.constant 0 : i32
    %c0_i32_0 = arith.constant 0 : i32
    return %arg0, %c0_i32 : i32, i32
  }
  func.func @transform_3(%arg0: i32) -> (i32, i32) {
    %c0_i32 = arith.constant 0 : i32
    %c0_i32_0 = arith.constant 0 : i32
    %c0_i32_1 = arith.constant 0 : i32
    return %c0_i32, %c0_i32_0 : i32, i32
  }
  func.func @transform_4(%arg0: i32) -> (i32, i32) {
    %c0_i32 = arith.constant 0 : i32
    %c0_i32_0 = arith.constant 0 : i32
    %c0_i32_1 = arith.constant 0 : i32
    return %c0_i32, %c0_i32_0 : i32, i32
  }
}

module attributes {stable_mosaic.version = 11 : i64} {
  func.func @_bn_lrelu_kernel(%arg0: i32, %arg1: memref<24x128xf32, #tpu.memory_space<vmem>>, %arg2: memref<8x128xf32, #tpu.memory_space<vmem>>, %arg3: memref<8x128xf32, #tpu.memory_space<vmem>>, %arg4: memref<8x128xf32, #tpu.memory_space<vmem>>, %arg5: memref<24x128xf32, #tpu.memory_space<vmem>>) attributes {dimension_semantics = [#tpu.dimension_semantics<parallel>], iteration_bounds = array<i64: 1>, scalar_prefetch = 0 : i64, scratch_operands = 0 : i64, tpu.core_type = #tpu.core_type<tc>, window_params = [{transform_indices = @transform_0, window_bounds = array<i64: 24, 128>}, {pipeline_mode = #tpu.pipeline_mode<synchronous>, transform_indices = @transform_1, window_bounds = array<i64: 8, 128>}, {pipeline_mode = #tpu.pipeline_mode<synchronous>, transform_indices = @transform_2, window_bounds = array<i64: 8, 128>}, {pipeline_mode = #tpu.pipeline_mode<synchronous>, transform_indices = @transform_3, window_bounds = array<i64: 8, 128>}, {transform_indices = @transform_4, window_bounds = array<i64: 24, 128>}]} {
    %c0 = arith.constant 0 : index
    %c0_0 = arith.constant 0 : index
    %0 = vector.load %arg2[%c0, %c0_0] : memref<8x128xf32, #tpu.memory_space<vmem>>, vector<1x128xf32>
    %cst = arith.constant 0.055555556 : f32
    %1 = vector.broadcast %cst : f32 to vector<1x128xf32>
    %2 = arith.mulf %0, %1 : vector<1x128xf32>
    %c0_1 = arith.constant 0 : index
    %c0_2 = arith.constant 0 : index
    %3 = vector.load %arg3[%c0_1, %c0_2] : memref<8x128xf32, #tpu.memory_space<vmem>>, vector<1x128xf32>
    %cst_3 = arith.constant 0.055555556 : f32
    %4 = vector.broadcast %cst_3 : f32 to vector<1x128xf32>
    %5 = arith.mulf %3, %4 : vector<1x128xf32>
    %6 = arith.mulf %2, %2 : vector<1x128xf32>
    %7 = arith.subf %5, %6 : vector<1x128xf32>
    %cst_4 = arith.constant 0.000000e+00 : f32
    %8 = vector.broadcast %cst_4 : f32 to vector<1x128xf32>
    %9 = arith.maximumf %7, %8 : vector<1x128xf32>
    %c1 = arith.constant 1 : index
    %c0_5 = arith.constant 0 : index
    %10 = vector.load %arg4[%c1, %c0_5] : memref<8x128xf32, #tpu.memory_space<vmem>>, vector<1x128xf32>
    %c2 = arith.constant 2 : index
    %c0_6 = arith.constant 0 : index
    %11 = vector.load %arg4[%c2, %c0_6] : memref<8x128xf32, #tpu.memory_space<vmem>>, vector<1x128xf32>
    %cst_7 = arith.constant 9.99999974E-6 : f32
    %12 = vector.broadcast %cst_7 : f32 to vector<1x128xf32>
    %13 = arith.addf %9, %12 : vector<1x128xf32>
    %14 = math.rsqrt %13 : vector<1x128xf32>
    %15 = arith.mulf %10, %14 : vector<1x128xf32>
    %16 = arith.mulf %2, %15 : vector<1x128xf32>
    %17 = arith.subf %11, %16 : vector<1x128xf32>
    %c0_8 = arith.constant 0 : index
    %c0_9 = arith.constant 0 : index
    %18 = vector.load %arg1[%c0_8, %c0_9] : memref<24x128xf32, #tpu.memory_space<vmem>>, vector<24x128xf32>
    %19 = vector.broadcast %15 : vector<1x128xf32> to vector<24x128xf32>
    %20 = arith.mulf %18, %19 : vector<24x128xf32>
    %21 = vector.broadcast %17 : vector<1x128xf32> to vector<24x128xf32>
    %22 = arith.addf %20, %21 : vector<24x128xf32>
    %cst_10 = arith.constant 0.000000e+00 : f32
    %23 = vector.broadcast %cst_10 : f32 to vector<24x128xf32>
    %24 = arith.cmpf oge, %22, %23 : vector<24x128xf32>
    %cst_11 = arith.constant 2.000000e-01 : f32
    %25 = vector.broadcast %cst_11 : f32 to vector<24x128xf32>
    %26 = arith.mulf %25, %22 : vector<24x128xf32>
    %27 = arith.select %24, %22, %26 : vector<24x128xi1>, vector<24x128xf32>
    %c0_12 = arith.constant 0 : index
    %c0_13 = arith.constant 0 : index
    %28 = vector.load %arg5[%c0_12, %c0_13] : memref<24x128xf32, #tpu.memory_space<vmem>>, vector<24x128xf32>
    tpu.vector_store %arg5[%c0_12, %c0_13], %27 {strides = array<i32>} : memref<24x128xf32, #tpu.memory_space<vmem>>, vector<24x128xf32>,
    return
  }
  func.func @transform_0(%arg0: i32) -> (i32, i32) {
    %c0_i32 = arith.constant 0 : i32
    %c0_i32_0 = arith.constant 0 : i32
    return %arg0, %c0_i32 : i32, i32
  }
  func.func @transform_1(%arg0: i32) -> (i32, i32) {
    %c0_i32 = arith.constant 0 : i32
    %c0_i32_0 = arith.constant 0 : i32
    %c0_i32_1 = arith.constant 0 : i32
    return %c0_i32, %c0_i32_0 : i32, i32
  }
  func.func @transform_2(%arg0: i32) -> (i32, i32) {
    %c0_i32 = arith.constant 0 : i32
    %c0_i32_0 = arith.constant 0 : i32
    %c0_i32_1 = arith.constant 0 : i32
    return %c0_i32, %c0_i32_0 : i32, i32
  }
  func.func @transform_3(%arg0: i32) -> (i32, i32) {
    %c0_i32 = arith.constant 0 : i32
    %c0_i32_0 = arith.constant 0 : i32
    %c0_i32_1 = arith.constant 0 : i32
    return %c0_i32, %c0_i32_0 : i32, i32
  }
  func.func @transform_4(%arg0: i32) -> (i32, i32) {
    %c0_i32 = arith.constant 0 : i32
    %c0_i32_0 = arith.constant 0 : i32
    return %arg0, %c0_i32 : i32, i32
  }
}

module attributes {stable_mosaic.version = 11 : i64} {
  func.func @_bn_lrelu_kernel(%arg0: i32, %arg1: memref<8x128xf32, #tpu.memory_space<vmem>>, %arg2: memref<8x128xf32, #tpu.memory_space<vmem>>, %arg3: memref<8x128xf32, #tpu.memory_space<vmem>>, %arg4: memref<8x128xf32, #tpu.memory_space<vmem>>, %arg5: memref<8x128xf32, #tpu.memory_space<vmem>>) attributes {dimension_semantics = [#tpu.dimension_semantics<parallel>], iteration_bounds = array<i64: 1>, scalar_prefetch = 0 : i64, scratch_operands = 0 : i64, tpu.core_type = #tpu.core_type<tc>, window_params = [{transform_indices = @transform_0, window_bounds = array<i64: 8, 128>}, {pipeline_mode = #tpu.pipeline_mode<synchronous>, transform_indices = @transform_1, window_bounds = array<i64: 8, 128>}, {pipeline_mode = #tpu.pipeline_mode<synchronous>, transform_indices = @transform_2, window_bounds = array<i64: 8, 128>}, {pipeline_mode = #tpu.pipeline_mode<synchronous>, transform_indices = @transform_3, window_bounds = array<i64: 8, 128>}, {transform_indices = @transform_4, window_bounds = array<i64: 8, 128>}]} {
    %c0 = arith.constant 0 : index
    %c0_0 = arith.constant 0 : index
    %0 = vector.load %arg2[%c0, %c0_0] : memref<8x128xf32, #tpu.memory_space<vmem>>, vector<1x128xf32>
    %cst = arith.constant 1.250000e-01 : f32
    %1 = vector.broadcast %cst : f32 to vector<1x128xf32>
    %2 = arith.mulf %0, %1 : vector<1x128xf32>
    %c0_1 = arith.constant 0 : index
    %c0_2 = arith.constant 0 : index
    %3 = vector.load %arg3[%c0_1, %c0_2] : memref<8x128xf32, #tpu.memory_space<vmem>>, vector<1x128xf32>
    %cst_3 = arith.constant 1.250000e-01 : f32
    %4 = vector.broadcast %cst_3 : f32 to vector<1x128xf32>
    %5 = arith.mulf %3, %4 : vector<1x128xf32>
    %6 = arith.mulf %2, %2 : vector<1x128xf32>
    %7 = arith.subf %5, %6 : vector<1x128xf32>
    %cst_4 = arith.constant 0.000000e+00 : f32
    %8 = vector.broadcast %cst_4 : f32 to vector<1x128xf32>
    %9 = arith.maximumf %7, %8 : vector<1x128xf32>
    %c1 = arith.constant 1 : index
    %c0_5 = arith.constant 0 : index
    %10 = vector.load %arg4[%c1, %c0_5] : memref<8x128xf32, #tpu.memory_space<vmem>>, vector<1x128xf32>
    %c2 = arith.constant 2 : index
    %c0_6 = arith.constant 0 : index
    %11 = vector.load %arg4[%c2, %c0_6] : memref<8x128xf32, #tpu.memory_space<vmem>>, vector<1x128xf32>
    %cst_7 = arith.constant 9.99999974E-6 : f32
    %12 = vector.broadcast %cst_7 : f32 to vector<1x128xf32>
    %13 = arith.addf %9, %12 : vector<1x128xf32>
    %14 = math.rsqrt %13 : vector<1x128xf32>
    %15 = arith.mulf %10, %14 : vector<1x128xf32>
    %16 = arith.mulf %2, %15 : vector<1x128xf32>
    %17 = arith.subf %11, %16 : vector<1x128xf32>
    %c0_8 = arith.constant 0 : index
    %c0_9 = arith.constant 0 : index
    %18 = vector.load %arg1[%c0_8, %c0_9] : memref<8x128xf32, #tpu.memory_space<vmem>>, vector<8x128xf32>
    %19 = vector.broadcast %15 : vector<1x128xf32> to vector<8x128xf32>
    %20 = arith.mulf %18, %19 : vector<8x128xf32>
    %21 = vector.broadcast %17 : vector<1x128xf32> to vector<8x128xf32>
    %22 = arith.addf %20, %21 : vector<8x128xf32>
    %cst_10 = arith.constant 0.000000e+00 : f32
    %23 = vector.broadcast %cst_10 : f32 to vector<8x128xf32>
    %24 = arith.cmpf oge, %22, %23 : vector<8x128xf32>
    %cst_11 = arith.constant 2.000000e-01 : f32
    %25 = vector.broadcast %cst_11 : f32 to vector<8x128xf32>
    %26 = arith.mulf %25, %22 : vector<8x128xf32>
    %27 = arith.select %24, %22, %26 : vector<8x128xi1>, vector<8x128xf32>
    %c0_12 = arith.constant 0 : index
    %c0_13 = arith.constant 0 : index
    %28 = vector.load %arg5[%c0_12, %c0_13] : memref<8x128xf32, #tpu.memory_space<vmem>>, vector<8x128xf32>
    tpu.vector_store %arg5[%c0_12, %c0_13], %27 {strides = array<i32>} : memref<8x128xf32, #tpu.memory_space<vmem>>, vector<8x128xf32>,
    return
  }
  func.func @transform_0(%arg0: i32) -> (i32, i32) {
    %c0_i32 = arith.constant 0 : i32
    %c0_i32_0 = arith.constant 0 : i32
    return %arg0, %c0_i32 : i32, i32
  }
  func.func @transform_1(%arg0: i32) -> (i32, i32) {
    %c0_i32 = arith.constant 0 : i32
    %c0_i32_0 = arith.constant 0 : i32
    %c0_i32_1 = arith.constant 0 : i32
    return %c0_i32, %c0_i32_0 : i32, i32
  }
  func.func @transform_2(%arg0: i32) -> (i32, i32) {
    %c0_i32 = arith.constant 0 : i32
    %c0_i32_0 = arith.constant 0 : i32
    %c0_i32_1 = arith.constant 0 : i32
    return %c0_i32, %c0_i32_0 : i32, i32
  }
  func.func @transform_3(%arg0: i32) -> (i32, i32) {
    %c0_i32 = arith.constant 0 : i32
    %c0_i32_0 = arith.constant 0 : i32
    %c0_i32_1 = arith.constant 0 : i32
    return %c0_i32, %c0_i32_0 : i32, i32
  }
  func.func @transform_4(%arg0: i32) -> (i32, i32) {
    %c0_i32 = arith.constant 0 : i32
    %c0_i32_0 = arith.constant 0 : i32
    return %arg0, %c0_i32 : i32, i32
  }
}

module attributes {stable_mosaic.version = 11 : i64} {
  func.func @_matmul_stats_kernel(%arg0: i32, %arg1: memref<8x1024xbf16, #tpu.memory_space<vmem>>, %arg2: memref<1024x128xbf16, #tpu.memory_space<vmem>>, %arg3: memref<8x128xf32, #tpu.memory_space<vmem>>, %arg4: memref<8x128xf32, #tpu.memory_space<vmem>>, %arg5: memref<8x128xf32, #tpu.memory_space<vmem>>) attributes {dimension_semantics = [#tpu.dimension_semantics<arbitrary>], iteration_bounds = array<i64: 1>, scalar_prefetch = 0 : i64, scratch_operands = 0 : i64, tpu.core_type = #tpu.core_type<tc>, window_params = [{transform_indices = @transform_0, window_bounds = array<i64: 8, 1024>}, {pipeline_mode = #tpu.pipeline_mode<synchronous>, transform_indices = @transform_1, window_bounds = array<i64: 1024, 128>}, {transform_indices = @transform_2, window_bounds = array<i64: 8, 128>}, {pipeline_mode = #tpu.pipeline_mode<synchronous>, transform_indices = @transform_3, window_bounds = array<i64: 8, 128>}, {pipeline_mode = #tpu.pipeline_mode<synchronous>, transform_indices = @transform_4, window_bounds = array<i64: 8, 128>}]} {
    %c0 = arith.constant 0 : index
    %c0_0 = arith.constant 0 : index
    %0 = vector.load %arg1[%c0, %c0_0] : memref<8x1024xbf16, #tpu.memory_space<vmem>>, vector<8x1024xbf16>
    %c0_1 = arith.constant 0 : index
    %c0_2 = arith.constant 0 : index
    %1 = vector.load %arg2[%c0_1, %c0_2] : memref<1024x128xbf16, #tpu.memory_space<vmem>>, vector<1024x128xbf16>
    %cst = arith.constant dense<0.000000e+00> : vector<8x128xf32>
    %2 = tpu.matmul %0, %1, %cst {dimension_numbers = #tpu.dot_dimension_numbers<[1], [0], [0], [1], [0, 0, 1, 1], [], []>} : vector<8x1024xbf16>, vector<1024x128xbf16>, vector<8x128xf32> -> vector<8x128xf32>
    %c0_3 = arith.constant 0 : index
    %c0_4 = arith.constant 0 : index
    %3 = vector.load %arg3[%c0_3, %c0_4] : memref<8x128xf32, #tpu.memory_space<vmem>>, vector<8x128xf32>
    tpu.vector_store %arg3[%c0_3, %c0_4], %2 {strides = array<i32>} : memref<8x128xf32, #tpu.memory_space<vmem>>, vector<8x128xf32>,
    %c0_i32 = arith.constant 0 : i32
    %4 = arith.cmpi eq, %arg0, %c0_i32 : i32
    %5 = arith.extui %4 : i1 to i32
    %c0_i32_5 = arith.constant 0 : i32
    %6 = arith.cmpi ne, %5, %c0_i32_5 : i32
    scf.if %6 {
      %cst_16 = arith.constant 0.000000e+00 : f32
      %22 = vector.broadcast %cst_16 : f32 to vector<8x128xf32>
      %c0_17 = arith.constant 0 : index
      %c0_18 = arith.constant 0 : index
      %23 = vector.load %arg4[%c0_17, %c0_18] : memref<8x128xf32, #tpu.memory_space<vmem>>, vector<8x128xf32>
      tpu.vector_store %arg4[%c0_17, %c0_18], %22 {strides = array<i32>} : memref<8x128xf32, #tpu.memory_space<vmem>>, vector<8x128xf32>,
      %cst_19 = arith.constant 0.000000e+00 : f32
      %24 = vector.broadcast %cst_19 : f32 to vector<8x128xf32>
      %c0_20 = arith.constant 0 : index
      %c0_21 = arith.constant 0 : index
      %25 = vector.load %arg5[%c0_20, %c0_21] : memref<8x128xf32, #tpu.memory_space<vmem>>, vector<8x128xf32>
      tpu.vector_store %arg5[%c0_20, %c0_21], %24 {strides = array<i32>} : memref<8x128xf32, #tpu.memory_space<vmem>>, vector<8x128xf32>,
    } else {
    }
    %cst_6 = arith.constant dense<0.000000e+00> : vector<128xf32>
    %7 = vector.multi_reduction <add>, %2, %cst_6 [0] : vector<8x128xf32> to vector<128xf32>
    %8 = vector.shape_cast %7 : vector<128xf32> to vector<1x128xf32>
    %9 = arith.mulf %2, %2 : vector<8x128xf32>
    %cst_7 = arith.constant dense<0.000000e+00> : vector<128xf32>
    %10 = vector.multi_reduction <add>, %9, %cst_7 [0] : vector<8x128xf32> to vector<128xf32>
    %11 = vector.shape_cast %10 : vector<128xf32> to vector<1x128xf32>
    %c0_8 = arith.constant 0 : index
    %c0_9 = arith.constant 0 : index
    %12 = vector.load %arg4[%c0_8, %c0_9] : memref<8x128xf32, #tpu.memory_space<vmem>>, vector<8x128xf32>
    %13 = vector.shape_cast %8 : vector<1x128xf32> to vector<1x128xf32>
    %14 = vector.broadcast %13 : vector<1x128xf32> to vector<8x128xf32>
    %15 = arith.addf %12, %14 : vector<8x128xf32>
    %c0_10 = arith.constant 0 : index
    %c0_11 = arith.constant 0 : index
    %16 = vector.load %arg4[%c0_10, %c0_11] : memref<8x128xf32, #tpu.memory_space<vmem>>, vector<8x128xf32>
    tpu.vector_store %arg4[%c0_10, %c0_11], %15 {strides = array<i32>} : memref<8x128xf32, #tpu.memory_space<vmem>>, vector<8x128xf32>,
    %c0_12 = arith.constant 0 : index
    %c0_13 = arith.constant 0 : index
    %17 = vector.load %arg5[%c0_12, %c0_13] : memref<8x128xf32, #tpu.memory_space<vmem>>, vector<8x128xf32>
    %18 = vector.shape_cast %11 : vector<1x128xf32> to vector<1x128xf32>
    %19 = vector.broadcast %18 : vector<1x128xf32> to vector<8x128xf32>
    %20 = arith.addf %17, %19 : vector<8x128xf32>
    %c0_14 = arith.constant 0 : index
    %c0_15 = arith.constant 0 : index
    %21 = vector.load %arg5[%c0_14, %c0_15] : memref<8x128xf32, #tpu.memory_space<vmem>>, vector<8x128xf32>
    tpu.vector_store %arg5[%c0_14, %c0_15], %20 {strides = array<i32>} : memref<8x128xf32, #tpu.memory_space<vmem>>, vector<8x128xf32>,
    return
  }
  func.func @transform_0(%arg0: i32) -> (i32, i32) {
    %c0_i32 = arith.constant 0 : i32
    %c0_i32_0 = arith.constant 0 : i32
    return %arg0, %c0_i32 : i32, i32
  }
  func.func @transform_1(%arg0: i32) -> (i32, i32) {
    %c0_i32 = arith.constant 0 : i32
    %c0_i32_0 = arith.constant 0 : i32
    %c0_i32_1 = arith.constant 0 : i32
    return %c0_i32, %c0_i32_0 : i32, i32
  }
  func.func @transform_2(%arg0: i32) -> (i32, i32) {
    %c0_i32 = arith.constant 0 : i32
    %c0_i32_0 = arith.constant 0 : i32
    return %arg0, %c0_i32 : i32, i32
  }
  func.func @transform_3(%arg0: i32) -> (i32, i32) {
    %c0_i32 = arith.constant 0 : i32
    %c0_i32_0 = arith.constant 0 : i32
    %c0_i32_1 = arith.constant 0 : i32
    return %c0_i32, %c0_i32_0 : i32, i32
  }
  func.func @transform_4(%arg0: i32) -> (i32, i32) {
    %c0_i32 = arith.constant 0 : i32
    %c0_i32_0 = arith.constant 0 : i32
    %c0_i32_1 = arith.constant 0 : i32
    return %c0_i32, %c0_i32_0 : i32, i32
  }
}

module attributes {stable_mosaic.version = 11 : i64} {
  func.func @_matmul_stats_kernel(%arg0: i32, %arg1: memref<8x640xbf16, #tpu.memory_space<vmem>>, %arg2: memref<640x128xbf16, #tpu.memory_space<vmem>>, %arg3: memref<8x128xf32, #tpu.memory_space<vmem>>, %arg4: memref<8x128xf32, #tpu.memory_space<vmem>>, %arg5: memref<8x128xf32, #tpu.memory_space<vmem>>) attributes {dimension_semantics = [#tpu.dimension_semantics<arbitrary>], iteration_bounds = array<i64: 1>, scalar_prefetch = 0 : i64, scratch_operands = 0 : i64, tpu.core_type = #tpu.core_type<tc>, window_params = [{transform_indices = @transform_0, window_bounds = array<i64: 8, 640>}, {pipeline_mode = #tpu.pipeline_mode<synchronous>, transform_indices = @transform_1, window_bounds = array<i64: 640, 128>}, {transform_indices = @transform_2, window_bounds = array<i64: 8, 128>}, {pipeline_mode = #tpu.pipeline_mode<synchronous>, transform_indices = @transform_3, window_bounds = array<i64: 8, 128>}, {pipeline_mode = #tpu.pipeline_mode<synchronous>, transform_indices = @transform_4, window_bounds = array<i64: 8, 128>}]} {
    %c0 = arith.constant 0 : index
    %c0_0 = arith.constant 0 : index
    %0 = vector.load %arg1[%c0, %c0_0] : memref<8x640xbf16, #tpu.memory_space<vmem>>, vector<8x640xbf16>
    %c0_1 = arith.constant 0 : index
    %c0_2 = arith.constant 0 : index
    %1 = vector.load %arg2[%c0_1, %c0_2] : memref<640x128xbf16, #tpu.memory_space<vmem>>, vector<640x128xbf16>
    %cst = arith.constant dense<0.000000e+00> : vector<8x128xf32>
    %2 = tpu.matmul %0, %1, %cst {dimension_numbers = #tpu.dot_dimension_numbers<[1], [0], [0], [1], [0, 0, 1, 1], [], []>} : vector<8x640xbf16>, vector<640x128xbf16>, vector<8x128xf32> -> vector<8x128xf32>
    %c0_3 = arith.constant 0 : index
    %c0_4 = arith.constant 0 : index
    %3 = vector.load %arg3[%c0_3, %c0_4] : memref<8x128xf32, #tpu.memory_space<vmem>>, vector<8x128xf32>
    tpu.vector_store %arg3[%c0_3, %c0_4], %2 {strides = array<i32>} : memref<8x128xf32, #tpu.memory_space<vmem>>, vector<8x128xf32>,
    %c0_i32 = arith.constant 0 : i32
    %4 = arith.cmpi eq, %arg0, %c0_i32 : i32
    %5 = arith.extui %4 : i1 to i32
    %c0_i32_5 = arith.constant 0 : i32
    %6 = arith.cmpi ne, %5, %c0_i32_5 : i32
    scf.if %6 {
      %cst_16 = arith.constant 0.000000e+00 : f32
      %22 = vector.broadcast %cst_16 : f32 to vector<8x128xf32>
      %c0_17 = arith.constant 0 : index
      %c0_18 = arith.constant 0 : index
      %23 = vector.load %arg4[%c0_17, %c0_18] : memref<8x128xf32, #tpu.memory_space<vmem>>, vector<8x128xf32>
      tpu.vector_store %arg4[%c0_17, %c0_18], %22 {strides = array<i32>} : memref<8x128xf32, #tpu.memory_space<vmem>>, vector<8x128xf32>,
      %cst_19 = arith.constant 0.000000e+00 : f32
      %24 = vector.broadcast %cst_19 : f32 to vector<8x128xf32>
      %c0_20 = arith.constant 0 : index
      %c0_21 = arith.constant 0 : index
      %25 = vector.load %arg5[%c0_20, %c0_21] : memref<8x128xf32, #tpu.memory_space<vmem>>, vector<8x128xf32>
      tpu.vector_store %arg5[%c0_20, %c0_21], %24 {strides = array<i32>} : memref<8x128xf32, #tpu.memory_space<vmem>>, vector<8x128xf32>,
    } else {
    }
    %cst_6 = arith.constant dense<0.000000e+00> : vector<128xf32>
    %7 = vector.multi_reduction <add>, %2, %cst_6 [0] : vector<8x128xf32> to vector<128xf32>
    %8 = vector.shape_cast %7 : vector<128xf32> to vector<1x128xf32>
    %9 = arith.mulf %2, %2 : vector<8x128xf32>
    %cst_7 = arith.constant dense<0.000000e+00> : vector<128xf32>
    %10 = vector.multi_reduction <add>, %9, %cst_7 [0] : vector<8x128xf32> to vector<128xf32>
    %11 = vector.shape_cast %10 : vector<128xf32> to vector<1x128xf32>
    %c0_8 = arith.constant 0 : index
    %c0_9 = arith.constant 0 : index
    %12 = vector.load %arg4[%c0_8, %c0_9] : memref<8x128xf32, #tpu.memory_space<vmem>>, vector<8x128xf32>
    %13 = vector.shape_cast %8 : vector<1x128xf32> to vector<1x128xf32>
    %14 = vector.broadcast %13 : vector<1x128xf32> to vector<8x128xf32>
    %15 = arith.addf %12, %14 : vector<8x128xf32>
    %c0_10 = arith.constant 0 : index
    %c0_11 = arith.constant 0 : index
    %16 = vector.load %arg4[%c0_10, %c0_11] : memref<8x128xf32, #tpu.memory_space<vmem>>, vector<8x128xf32>
    tpu.vector_store %arg4[%c0_10, %c0_11], %15 {strides = array<i32>} : memref<8x128xf32, #tpu.memory_space<vmem>>, vector<8x128xf32>,
    %c0_12 = arith.constant 0 : index
    %c0_13 = arith.constant 0 : index
    %17 = vector.load %arg5[%c0_12, %c0_13] : memref<8x128xf32, #tpu.memory_space<vmem>>, vector<8x128xf32>
    %18 = vector.shape_cast %11 : vector<1x128xf32> to vector<1x128xf32>
    %19 = vector.broadcast %18 : vector<1x128xf32> to vector<8x128xf32>
    %20 = arith.addf %17, %19 : vector<8x128xf32>
    %c0_14 = arith.constant 0 : index
    %c0_15 = arith.constant 0 : index
    %21 = vector.load %arg5[%c0_14, %c0_15] : memref<8x128xf32, #tpu.memory_space<vmem>>, vector<8x128xf32>
    tpu.vector_store %arg5[%c0_14, %c0_15], %20 {strides = array<i32>} : memref<8x128xf32, #tpu.memory_space<vmem>>, vector<8x128xf32>,
    return
  }
  func.func @transform_0(%arg0: i32) -> (i32, i32) {
    %c0_i32 = arith.constant 0 : i32
    %c0_i32_0 = arith.constant 0 : i32
    return %arg0, %c0_i32 : i32, i32
  }
  func.func @transform_1(%arg0: i32) -> (i32, i32) {
    %c0_i32 = arith.constant 0 : i32
    %c0_i32_0 = arith.constant 0 : i32
    %c0_i32_1 = arith.constant 0 : i32
    return %c0_i32, %c0_i32_0 : i32, i32
  }
  func.func @transform_2(%arg0: i32) -> (i32, i32) {
    %c0_i32 = arith.constant 0 : i32
    %c0_i32_0 = arith.constant 0 : i32
    return %arg0, %c0_i32 : i32, i32
  }
  func.func @transform_3(%arg0: i32) -> (i32, i32) {
    %c0_i32 = arith.constant 0 : i32
    %c0_i32_0 = arith.constant 0 : i32
    %c0_i32_1 = arith.constant 0 : i32
    return %c0_i32, %c0_i32_0 : i32, i32
  }
  func.func @transform_4(%arg0: i32) -> (i32, i32) {
    %c0_i32 = arith.constant 0 : i32
    %c0_i32_0 = arith.constant 0 : i32
    %c0_i32_1 = arith.constant 0 : i32
    return %c0_i32, %c0_i32_0 : i32, i32
  }
}

</mosaic_0001>

<llo_original>
// kernel: _lambda_.11
$region0: #{_lambda_.11}
  #allocation0 [shape = 'u32[]', space=smem, size = 0x4, offset = 0x4, fixed_abs, tag = 'smem constant byte address 0x4 - core index']
  #allocation1 [shape = 'u32[144,128]{1,0:T(1,128)}', space=vmem, size = 0x12000, scoped, tag = 'internal scratch']
  %s0 = inlined_call_operand.vmem [shape: bf16[512,128], index: 0, kind: input, shape index: {}]
  %s1 = inlined_call_operand.vmem [shape: bf16[128,128], index: 1, kind: input, shape index: {}]
  %s2 = inlined_call_operand.vmem [shape: f32[8,128], index: 2, kind: input, shape index: {}]
  %s3 = inlined_call_operand.vmem [shape: f32[512,128], index: 3, kind: output, shape index: {}]
  %s4 = sld [smem:[#allocation0]]
  $region22: #{_lambda_.11} parent=0
    _
  %s6 = ssub.s32 1, %s4
  %s7 = scalar_select 0, %s6, %s4
  // Predicated region
  $region2: #{_lambda_.11} parent=0 // pred_check
    _
  $region3: #{_lambda_.11} parent=0 // pred_check_branch
    %9 = sbr.rel (0) target = $region5
  $region4: #{_lambda_.11} parent=0 // pred_region
    _
  $region5: #{_lambda_.11} parent=0 // pred_fallthru
    _
  // Predicated region
  $region6: #{_lambda_.11} parent=0 // pred_check
    _
  $region7: #{_lambda_.11} parent=0 // pred_check_branch
    %11 = sbr.rel (0) target = $region9
  $region8: #{_lambda_.11} parent=0 // pred_region
    _
  $region9: #{_lambda_.11} parent=0 // pred_fallthru
    _
  // Predicated region
  $region10: #{_lambda_.11} parent=0 // pred_check
    _
  $region11: #{_lambda_.11} parent=0 // pred_check_branch
    %13 = sbr.rel (0) target = $region13
  $region12: #{_lambda_.11} parent=0 // pred_region
    _
  $region13: #{_lambda_.11} parent=0 // pred_fallthru
    _
  %v15 = vld [vmem:[%s0] sm:$0xf]
  %v16 = vld [vmem:[%s0 + $0x4] sm:$0xf]
  %v17 = vld [vmem:[%s0 + $0x8] sm:$0xf]
  %v18 = vld [vmem:[%s0 + $0xc] sm:$0xf]
  %v19 = vld [vmem:[%s0 + $0x10] sm:$0xf]
  %v20 = vld [vmem:[%s0 + $0x14] sm:$0xf]
  %v21 = vld [vmem:[%s0 + $0x18] sm:$0xf]
  %v22 = vld [vmem:[%s0 + $0x1c] sm:$0xf]
  %v23 = vld [vmem:[%s0 + $0x20] sm:$0xf]
  %v24 = vld [vmem:[%s0 + $0x24] sm:$0xf]
  %v25 = vld [vmem:[%s0 + $0x28] sm:$0xf]
  %v26 = vld [vmem:[%s0 + $0x2c] sm:$0xf]
  %v27 = vld [vmem:[%s0 + $0x30] sm:$0xf]
  %v28 = vld [vmem:[%s0 + $0x34] sm:$0xf]
  %v29 = vld [vmem:[%s0 + $0x38] sm:$0xf]
  %v30 = vld [vmem:[%s0 + $0x3c] sm:$0xf]
  %v31 = vld [vmem:[%s0 + $0x40] sm:$0xf]
  %v32 = vld [vmem:[%s0 + $0x44] sm:$0xf]
  %v33 = vld [vmem:[%s0 + $0x48] sm:$0xf]
  %v34 = vld [vmem:[%s0 + $0x4c] sm:$0xf]
  %v35 = vld [vmem:[%s0 + $0x50] sm:$0xf]
  %v36 = vld [vmem:[%s0 + $0x54] sm:$0xf]
  %v37 = vld [vmem:[%s0 + $0x58] sm:$0xf]
  %v38 = vld [vmem:[%s0 + $0x5c] sm:$0xf]
  %v39 = vld [vmem:[%s0 + $0x60] sm:$0xf]
  %v40 = vld [vmem:[%s0 + $0x64] sm:$0xf]
  %v41 = vld [vmem:[%s0 + $0x68] sm:$0xf]
  %v42 = vld [vmem:[%s0 + $0x6c] sm:$0xf]
  %v43 = vld [vmem:[%s0 + $0x70] sm:$0xf]
  %v44 = vld [vmem:[%s0 + $0x74] sm:$0xf]
  %v45 = vld [vmem:[%s0 + $0x78] sm:$0xf]
  %v46 = vld [vmem:[%s0 + $0x7c] sm:$0xf]
  %v47 = vld [vmem:[%s0 + $0x80] sm:$0xf]
  %v48 = vld [vmem:[%s0 + $0x84] sm:$0xf]
  %v49 = vld [vmem:[%s0 + $0x88] sm:$0xf]
  %v50 = vld [vmem:[%s0 + $0x8c] sm:$0xf]
  %v51 = vld [vmem:[%s0 + $0x90] sm:$0xf]
  %v52 = vld [vmem:[%s0 + $0x94] sm:$0xf]
  %v53 = vld [vmem:[%s0 + $0x98] sm:$0xf]
  %v54 = vld [vmem:[%s0 + $0x9c] sm:$0xf]
  %v55 = vld [vmem:[%s0 + $0xa0] sm:$0xf]
  %v56 = vld [vmem:[%s0 + $0xa4] sm:$0xf]
  %v57 = vld [vmem:[%s0 + $0xa8] sm:$0xf]
  %v58 = vld [vmem:[%s0 + $0xac] sm:$0xf]
  %v59 = vld [vmem:[%s0 + $0xb0] sm:$0xf]
  %v60 = vld [vmem:[%s0 + $0xb4] sm:$0xf]
  %v61 = vld [vmem:[%s0 + $0xb8] sm:$0xf]
  %v62 = vld [vmem:[%s0 + $0xbc] sm:$0xf]
  %v63 = vld [vmem:[%s0 + $0xc0] sm:$0xf]
  %v64 = vld [vmem:[%s0 + $0xc4] sm:$0xf]
  %v65 = vld [vmem:[%s0 + $0xc8] sm:$0xf]
  %v66 = vld [vmem:[%s0 + $0xcc] sm:$0xf]
  %v67 = vld [vmem:[%s0 + $0xd0] sm:$0xf]
  %v68 = vld [vmem:[%s0 + $0xd4] sm:$0xf]
  %v69 = vld [vmem:[%s0 + $0xd8] sm:$0xf]
  %v70 = vld [vmem:[%s0 + $0xdc] sm:$0xf]
  %v71 = vld [vmem:[%s0 + $0xe0] sm:$0xf]
  %v72 = vld [vmem:[%s0 + $0xe4] sm:$0xf]
  %v73 = vld [vmem:[%s0 + $0xe8] sm:$0xf]
  %v74 = vld [vmem:[%s0 + $0xec] sm:$0xf]
  %v75 = vld [vmem:[%s0 + $0xf0] sm:$0xf]
  %v76 = vld [vmem:[%s0 + $0xf4] sm:$0xf]
  %v77 = vld [vmem:[%s0 + $0xf8] sm:$0xf]
  %v78 = vld [vmem:[%s0 + $0xfc] sm:$0xf]
  %v79 = vld [vmem:[%s1] sm:$0xf]
  %v80 = vld [vmem:[%s1 + $0x4] sm:$0xf]
  %v81 = vld [vmem:[%s1 + $0x8] sm:$0xf]
  %v82 = vld [vmem:[%s1 + $0xc] sm:$0xf]
  %v83 = vld [vmem:[%s1 + $0x10] sm:$0xf]
  %v84 = vld [vmem:[%s1 + $0x14] sm:$0xf]
  %v85 = vld [vmem:[%s1 + $0x18] sm:$0xf]
  %v86 = vld [vmem:[%s1 + $0x1c] sm:$0xf]
  %v87 = vld [vmem:[%s1 + $0x20] sm:$0xf]
  %v88 = vld [vmem:[%s1 + $0x24] sm:$0xf]
  %v89 = vld [vmem:[%s1 + $0x28] sm:$0xf]
  %v90 = vld [vmem:[%s1 + $0x2c] sm:$0xf]
  %v91 = vld [vmem:[%s1 + $0x30] sm:$0xf]
  %v92 = vld [vmem:[%s1 + $0x34] sm:$0xf]
  %v93 = vld [vmem:[%s1 + $0x38] sm:$0xf]
  %v94 = vld [vmem:[%s1 + $0x3c] sm:$0xf]
  %v95 = vld [vmem:[%s2] sm:$0x1]
  %v96 = vlaneseq
  %v97 = vshrl.u32 %v96, 7
  %v98 = vsub.s32 0, %v97
  %v99 = vrot.slane %v95, %v98
  %v164 = vunpack.c.l.b16 %v15
  %v165 = vunpack.c.l.b16 %v16
  %v166 = vunpack.c.l.b16 %v17
  %v167 = vunpack.c.l.b16 %v18
  %v168 = vunpack.c.l.b16 %v19
  %v169 = vunpack.c.l.b16 %v20
  %v170 = vunpack.c.l.b16 %v21
  %v171 = vunpack.c.l.b16 %v22
  %v172 = vunpack.c.l.b16 %v23
  %v173 = vunpack.c.l.b16 %v24
  %v174 = vunpack.c.l.b16 %v25
  %v175 = vunpack.c.l.b16 %v26
  %v176 = vunpack.c.l.b16 %v27
  %v177 = vunpack.c.l.b16 %v28
  %v178 = vunpack.c.l.b16 %v29
  %v179 = vunpack.c.l.b16 %v30
  %v180 = vunpack.c.l.b16 %v31
  %v181 = vunpack.c.l.b16 %v32
  %v182 = vunpack.c.l.b16 %v33
  %v183 = vunpack.c.l.b16 %v34
  %v184 = vunpack.c.l.b16 %v35
  %v185 = vunpack.c.l.b16 %v36
  %v186 = vunpack.c.l.b16 %v37
  %v187 = vunpack.c.l.b16 %v38
  %v188 = vunpack.c.l.b16 %v39
  %v189 = vunpack.c.l.b16 %v40
  %v190 = vunpack.c.l.b16 %v41
  %v191 = vunpack.c.l.b16 %v42
  %v192 = vunpack.c.l.b16 %v43
  %v193 = vunpack.c.l.b16 %v44
  %v194 = vunpack.c.l.b16 %v45
  %v195 = vunpack.c.l.b16 %v46
  %v196 = vunpack.c.l.b16 %v47
  %v197 = vunpack.c.l.b16 %v48
  %v198 = vunpack.c.l.b16 %v49
  %v199 = vunpack.c.l.b16 %v50
  %v200 = vunpack.c.l.b16 %v51
  %v201 = vunpack.c.l.b16 %v52
  %v202 = vunpack.c.l.b16 %v53
  %v203 = vunpack.c.l.b16 %v54
  %v204 = vunpack.c.l.b16 %v55
  %v205 = vunpack.c.l.b16 %v56
  %v206 = vunpack.c.l.b16 %v57
  %v207 = vunpack.c.l.b16 %v58
  %v208 = vunpack.c.l.b16 %v59
  %v209 = vunpack.c.l.b16 %v60
  %v210 = vunpack.c.l.b16 %v61
  %v211 = vunpack.c.l.b16 %v62
  %v212 = vunpack.c.l.b16 %v63
  %v213 = vunpack.c.l.b16 %v64
  %v214 = vunpack.c.l.b16 %v65
  %v215 = vunpack.c.l.b16 %v66
  %v216 = vunpack.c.l.b16 %v67
  %v217 = vunpack.c.l.b16 %v68
  %v218 = vunpack.c.l.b16 %v69
  %v219 = vunpack.c.l.b16 %v70
  %v220 = vunpack.c.l.b16 %v71
  %v221 = vunpack.c.l.b16 %v72
  %v222 = vunpack.c.l.b16 %v73
  %v223 = vunpack.c.l.b16 %v74
  %v224 = vunpack.c.l.b16 %v75
  %v225 = vunpack.c.l.b16 %v76
  %v226 = vunpack.c.l.b16 %v77
  %v227 = vunpack.c.l.b16 %v78
  %v228 = vpack.c.b16 %v165, %v164
  %v229 = vpack.c.b16 %v167, %v166
  %v230 = vpack.c.b16 %v169, %v168
  %v231 = vpack.c.b16 %v171, %v170
  %v232 = vpack.c.b16 %v173, %v172
  %v233 = vpack.c.b16 %v175, %v174
  %v234 = vpack.c.b16 %v177, %v176
  %v235 = vpack.c.b16 %v179, %v178
  %v236 = vpack.c.b16 %v181, %v180
  %v237 = vpack.c.b16 %v183, %v182
  %v238 = vpack.c.b16 %v185, %v184
  %v239 = vpack.c.b16 %v187, %v186
  %v240 = vpack.c.b16 %v189, %v188
  %v241 = vpack.c.b16 %v191, %v190
  %v242 = vpack.c.b16 %v193, %v192
  %v243 = vpack.c.b16 %v195, %v194
  %v244 = vpack.c.b16 %v197, %v196
  %v245 = vpack.c.b16 %v199, %v198
  %v246 = vpack.c.b16 %v201, %v200
  %v247 = vpack.c.b16 %v203, %v202
  %v248 = vpack.c.b16 %v205, %v204
  %v249 = vpack.c.b16 %v207, %v206
  %v250 = vpack.c.b16 %v209, %v208
  %v251 = vpack.c.b16 %v211, %v210
  %v252 = vpack.c.b16 %v213, %v212
  %v253 = vpack.c.b16 %v215, %v214
  %v254 = vpack.c.b16 %v217, %v216
  %v255 = vpack.c.b16 %v219, %v218
  %v256 = vpack.c.b16 %v221, %v220
  %v257 = vpack.c.b16 %v223, %v222
  %v258 = vpack.c.b16 %v225, %v224
  %v259 = vpack.c.b16 %v227, %v226
  %v308 = vunpack.c.l.b16 %v79
  %v309 = vunpack.c.l.b16 %v80
  %v310 = vunpack.c.l.b16 %v81
  %v311 = vunpack.c.l.b16 %v82
  %v312 = vunpack.c.l.b16 %v83
  %v313 = vunpack.c.l.b16 %v84
  %v314 = vunpack.c.l.b16 %v85
  %v315 = vunpack.c.l.b16 %v86
  %v316 = vunpack.c.l.b16 %v87
  %v317 = vunpack.c.l.b16 %v88
  %v318 = vunpack.c.l.b16 %v89
  %v319 = vunpack.c.l.b16 %v90
  %v320 = vunpack.c.l.b16 %v91
  %v321 = vunpack.c.l.b16 %v92
  %v322 = vunpack.c.l.b16 %v93
  %v323 = vunpack.c.l.b16 %v94
  %v324 = vpack.c.b16 %v309, %v308
  %v325 = vpack.c.b16 %v311, %v310
  %v326 = vpack.c.b16 %v313, %v312
  %v327 = vpack.c.b16 %v315, %v314
  %v328 = vpack.c.b16 %v317, %v316
  %v329 = vpack.c.b16 %v319, %v318
  %v330 = vpack.c.b16 %v321, %v320
  %v331 = vpack.c.b16 %v323, %v322
  %340 = vmatprep.subr.bf16.mxu0 0
  %341 = vmatpush1.bf16.msra.mxu0 %v324
  %342 = vmatprep.subr.bf16.mxu0 0
  %343 = vmatpush1.bf16.msra.mxu0 %v325
  %344 = vmatprep.subr.bf16.mxu0 0
  %345 = vmatpush1.bf16.msra.mxu0 %v326
  %346 = vmatprep.subr.bf16.mxu0 0
  %347 = vmatpush1.bf16.msra.mxu0 %v327
  %348 = vmatprep.subr.bf16.mxu0 0
  %349 = vmatpush1.bf16.msra.mxu0 %v328
  %350 = vmatprep.subr.bf16.mxu0 0
  %351 = vmatpush1.bf16.msra.mxu0 %v329
  %352 = vmatprep.subr.bf16.mxu0 0
  %353 = vmatpush1.bf16.msra.mxu0 %v330
  %354 = vmatprep.subr.bf16.mxu0 0
  %355 = vmatpush1.bf16.msra.mxu0 %v331
  %356 = vmatprep.subr.bf16.mxu0 0
  %357 = vmatpush1.bf16.msra.mxu0 0
  %358 = vmatprep.subr.bf16.mxu0 0
  %359 = vmatpush1.bf16.msra.mxu0 0
  %360 = vmatprep.subr.bf16.mxu0 0
  %361 = vmatpush1.bf16.msra.mxu0 0
  %362 = vmatprep.subr.bf16.mxu0 0
  %363 = vmatpush1.bf16.msra.mxu0 0
  %364 = vmatprep.subr.bf16.mxu0 0
  %365 = vmatpush1.bf16.msra.mxu0 0
  %366 = vmatprep.subr.bf16.mxu0 0
  %367 = vmatpush1.bf16.msra.mxu0 0
  %368 = vmatprep.subr.bf16.mxu0 0
  %369 = vmatpush1.bf16.msra.mxu0 0
  %370 = vmatprep.subr.bf16.mxu0 0
  %371 = vmatpush1.bf16.msra.mxu0 0
  %372 = vmatprep.mubr.bf16.mxu0 0
  %373 = vmatmul.mubr.bf16.gmra.mrb[0].mxu0 %v228
  %v374 = vpop.f32.mrb[0].mxu0
  %v375 = vadd.f32 %v99, %v374
  %v376 = vpop.f32.mrb[0].mxu0
  %v377 = vpop.f32.mrb[0].mxu0
  %v378 = vadd.f32 %v99, %v377
  %v379 = vpop.f32.mrb[0].mxu0
  %380 = vmatprep.mubr.bf16.mxu0 0
  %381 = vmatmul.mubr.bf16.gmra.mrb[0].mxu0 %v229
  %v382 = vpop.f32.mrb[0].mxu0
  %v383 = vadd.f32 %v99, %v382
  %v384 = vpop.f32.mrb[0].mxu0
  %v385 = vpop.f32.mrb[0].mxu0
  %v386 = vadd.f32 %v99, %v385
  %v387 = vpop.f32.mrb[0].mxu0
  %388 = vmatprep.mubr.bf16.mxu0 0
  %389 = vmatmul.mubr.bf16.gmra.mrb[0].mxu0 %v230
  %v390 = vpop.f32.mrb[0].mxu0
  %v391 = vadd.f32 %v99, %v390
  %v392 = vpop.f32.mrb[0].mxu0
  %v393 = vpop.f32.mrb[0].mxu0
  %v394 = vadd.f32 %v99, %v393
  %v395 = vpop.f32.mrb[0].mxu0
  %396 = vmatprep.mubr.bf16.mxu0 0
  %397 = vmatmul.mubr.bf16.gmra.mrb[0].mxu0 %v231
  %v398 = vpop.f32.mrb[0].mxu0
  %v399 = vadd.f32 %v99, %v398
  %v400 = vpop.f32.mrb[0].mxu0
  %v401 = vpop.f32.mrb[0].mxu0
  %v402 = vadd.f32 %v99, %v401
  %v403 = vpop.f32.mrb[0].mxu0
  %404 = vmatprep.mubr.bf16.mxu0 0
  %405 = vmatmul.mubr.bf16.gmra.mrb[0].mxu0 %v232
  %v406 = vpop.f32.mrb[0].mxu0
  %v407 = vadd.f32 %v99, %v406
  %v408 = vpop.f32.mrb[0].mxu0
  %v409 = vpop.f32.mrb[0].mxu0
  %v410 = vadd.f32 %v99, %v409
  %v411 = vpop.f32.mrb[0].mxu0
  %412 = vmatprep.mubr.bf16.mxu0 0
  %413 = vmatmul.mubr.bf16.gmra.mrb[0].mxu0 %v233
  %v414 = vpop.f32.mrb[0].mxu0
  %v415 = vadd.f32 %v99, %v414
  %v416 = vpop.f32.mrb[0].mxu0
  %v417 = vpop.f32.mrb[0].mxu0
  %v418 = vadd.f32 %v99, %v417
  %v419 = vpop.f32.mrb[0].mxu0
  %420 = vmatprep.mubr.bf16.mxu0 0
  %421 = vmatmul.mubr.bf16.gmra.mrb[0].mxu0 %v234
  %v422 = vpop.f32.mrb[0].mxu0
  %v423 = vadd.f32 %v99, %v422
  %v424 = vpop.f32.mrb[0].mxu0
  %v425 = vpop.f32.mrb[0].mxu0
  %v426 = vadd.f32 %v99, %v425
  %v427 = vpop.f32.mrb[0].mxu0
  %428 = vmatprep.mubr.bf16.mxu0 0
  %429 = vmatmul.mubr.bf16.gmra.mrb[0].mxu0 %v235
  %v430 = vpop.f32.mrb[0].mxu0
  %v431 = vadd.f32 %v99, %v430
  %v432 = vpop.f32.mrb[0].mxu0
  %v433 = vpop.f32.mrb[0].mxu0
  %v434 = vadd.f32 %v99, %v433
  %v435 = vpop.f32.mrb[0].mxu0
  %436 = vmatprep.mubr.bf16.mxu0 0
  %437 = vmatmul.mubr.bf16.gmra.mrb[0].mxu0 %v236
  %v438 = vpop.f32.mrb[0].mxu0
  %v439 = vadd.f32 %v99, %v438
  %v440 = vpop.f32.mrb[0].mxu0
  %v441 = vpop.f32.mrb[0].mxu0
  %v442 = vadd.f32 %v99, %v441
  %v443 = vpop.f32.mrb[0].mxu0
  %444 = vmatprep.mubr.bf16.mxu0 0
  %445 = vmatmul.mubr.bf16.gmra.mrb[0].mxu0 %v237
  %v446 = vpop.f32.mrb[0].mxu0
  %v447 = vadd.f32 %v99, %v446
  %v448 = vpop.f32.mrb[0].mxu0
  %v449 = vpop.f32.mrb[0].mxu0
  %v450 = vadd.f32 %v99, %v449
  %v451 = vpop.f32.mrb[0].mxu0
  %452 = vmatprep.mubr.bf16.mxu0 0
  %453 = vmatmul.mubr.bf16.gmra.mrb[0].mxu0 %v238
  %v454 = vpop.f32.mrb[0].mxu0
  %v455 = vadd.f32 %v99, %v454
  %v456 = vpop.f32.mrb[0].mxu0
  %v457 = vpop.f32.mrb[0].mxu0
  %v458 = vadd.f32 %v99, %v457
  %v459 = vpop.f32.mrb[0].mxu0
  %460 = vmatprep.mubr.bf16.mxu0 0
  %461 = vmatmul.mubr.bf16.gmra.mrb[0].mxu0 %v239
  %v462 = vpop.f32.mrb[0].mxu0
  %v463 = vadd.f32 %v99, %v462
  %v464 = vpop.f32.mrb[0].mxu0
  %v465 = vpop.f32.mrb[0].mxu0
  %v466 = vadd.f32 %v99, %v465
  %v467 = vpop.f32.mrb[0].mxu0
  %468 = vmatprep.mubr.bf16.mxu0 0
  %469 = vmatmul.mubr.bf16.gmra.mrb[0].mxu0 %v240
  %v470 = vpop.f32.mrb[0].mxu0
  %v471 = vadd.f32 %v99, %v470
  %v472 = vpop.f32.mrb[0].mxu0
  %v473 = vpop.f32.mrb[0].mxu0
  %v474 = vadd.f32 %v99, %v473
  %v475 = vpop.f32.mrb[0].mxu0
  %476 = vmatprep.mubr.bf16.mxu0 0
  %477 = vmatmul.mubr.bf16.gmra.mrb[0].mxu0 %v241
  %v478 = vpop.f32.mrb[0].mxu0
  %v479 = vadd.f32 %v99, %v478
  %v480 = vpop.f32.mrb[0].mxu0
  %v481 = vpop.f32.mrb[0].mxu0
  %v482 = vadd.f32 %v99, %v481
  %v483 = vpop.f32.mrb[0].mxu0
  %484 = vmatprep.mubr.bf16.mxu0 0
  %485 = vmatmul.mubr.bf16.gmra.mrb[0].mxu0 %v242
  %v486 = vpop.f32.mrb[0].mxu0
  %v487 = vadd.f32 %v99, %v486
  %v488 = vpop.f32.mrb[0].mxu0
  %v489 = vpop.f32.mrb[0].mxu0
  %v490 = vadd.f32 %v99, %v489
  %v491 = vpop.f32.mrb[0].mxu0
  %492 = vmatprep.mubr.bf16.mxu0 0
  %493 = vmatmul.mubr.bf16.gmra.mrb[0].mxu0 %v243
  %v494 = vpop.f32.mrb[0].mxu0
  %v495 = vadd.f32 %v99, %v494
  %v496 = vpop.f32.mrb[0].mxu0
  %v497 = vpop.f32.mrb[0].mxu0
  %v498 = vadd.f32 %v99, %v497
  %v499 = vpop.f32.mrb[0].mxu0
  %500 = vmatprep.mubr.bf16.mxu0 0
  %501 = vmatmul.mubr.bf16.gmra.mrb[0].mxu0 %v244
  %v502 = vpop.f32.mrb[0].mxu0
  %v503 = vadd.f32 %v99, %v502
  %v504 = vpop.f32.mrb[0].mxu0
  %v505 = vpop.f32.mrb[0].mxu0
  %v506 = vadd.f32 %v99, %v505
  %v507 = vpop.f32.mrb[0].mxu0
  %508 = vmatprep.mubr.bf16.mxu0 0
  %509 = vmatmul.mubr.bf16.gmra.mrb[0].mxu0 %v245
  %v510 = vpop.f32.mrb[0].mxu0
  %v511 = vadd.f32 %v99, %v510
  %v512 = vpop.f32.mrb[0].mxu0
  %v513 = vpop.f32.mrb[0].mxu0
  %v514 = vadd.f32 %v99, %v513
  %v515 = vpop.f32.mrb[0].mxu0
  %516 = vmatprep.mubr.bf16.mxu0 0
  %517 = vmatmul.mubr.bf16.gmra.mrb[0].mxu0 %v246
  %v518 = vpop.f32.mrb[0].mxu0
  %v519 = vadd.f32 %v99, %v518
  %v520 = vpop.f32.mrb[0].mxu0
  %v521 = vpop.f32.mrb[0].mxu0
  %v522 = vadd.f32 %v99, %v521
  %v523 = vpop.f32.mrb[0].mxu0
  %524 = vmatprep.mubr.bf16.mxu0 0
  %525 = vmatmul.mubr.bf16.gmra.mrb[0].mxu0 %v247
  %v526 = vpop.f32.mrb[0].mxu0
  %v527 = vadd.f32 %v99, %v526
  %v528 = vpop.f32.mrb[0].mxu0
  %v529 = vpop.f32.mrb[0].mxu0
  %v530 = vadd.f32 %v99, %v529
  %v531 = vpop.f32.mrb[0].mxu0
  %532 = vmatprep.mubr.bf16.mxu0 0
  %533 = vmatmul.mubr.bf16.gmra.mrb[0].mxu0 %v248
  %v534 = vpop.f32.mrb[0].mxu0
  %v535 = vadd.f32 %v99, %v534
  %v536 = vpop.f32.mrb[0].mxu0
  %v537 = vpop.f32.mrb[0].mxu0
  %v538 = vadd.f32 %v99, %v537
  %v539 = vpop.f32.mrb[0].mxu0
  %540 = vmatprep.mubr.bf16.mxu0 0
  %541 = vmatmul.mubr.bf16.gmra.mrb[0].mxu0 %v249
  %v542 = vpop.f32.mrb[0].mxu0
  %v543 = vadd.f32 %v99, %v542
  %v544 = vpop.f32.mrb[0].mxu0
  %v545 = vpop.f32.mrb[0].mxu0
  %v546 = vadd.f32 %v99, %v545
  %v547 = vpop.f32.mrb[0].mxu0
  %548 = vmatprep.mubr.bf16.mxu0 0
  %549 = vmatmul.mubr.bf16.gmra.mrb[0].mxu0 %v250
  %v550 = vpop.f32.mrb[0].mxu0
  %v551 = vadd.f32 %v99, %v550
  %v552 = vpop.f32.mrb[0].mxu0
  %v553 = vpop.f32.mrb[0].mxu0
  %v554 = vadd.f32 %v99, %v553
  %v555 = vpop.f32.mrb[0].mxu0
  %556 = vmatprep.mubr.bf16.mxu0 0
  %557 = vmatmul.mubr.bf16.gmra.mrb[0].mxu0 %v251
  %v558 = vpop.f32.mrb[0].mxu0
  %v559 = vadd.f32 %v99, %v558
  %v560 = vpop.f32.mrb[0].mxu0
  %v561 = vpop.f32.mrb[0].mxu0
  %v562 = vadd.f32 %v99, %v561
  %v563 = vpop.f32.mrb[0].mxu0
  %564 = vmatprep.mubr.bf16.mxu0 0
  %565 = vmatmul.mubr.bf16.gmra.mrb[0].mxu0 %v252
  %v566 = vpop.f32.mrb[0].mxu0
  %v567 = vadd.f32 %v99, %v566
  %v568 = vpop.f32.mrb[0].mxu0
  %v569 = vpop.f32.mrb[0].mxu0
  %v570 = vadd.f32 %v99, %v569
  %v571 = vpop.f32.mrb[0].mxu0
  %572 = vmatprep.mubr.bf16.mxu0 0
  %573 = vmatmul.mubr.bf16.gmra.mrb[0].mxu0 %v253
  %v574 = vpop.f32.mrb[0].mxu0
  %v575 = vadd.f32 %v99, %v574
  %v576 = vpop.f32.mrb[0].mxu0
  %v577 = vpop.f32.mrb[0].mxu0
  %v578 = vadd.f32 %v99, %v577
  %v579 = vpop.f32.mrb[0].mxu0
  %580 = vmatprep.mubr.bf16.mxu0 0
  %581 = vmatmul.mubr.bf16.gmra.mrb[0].mxu0 %v254
  %v582 = vpop.f32.mrb[0].mxu0
  %v583 = vadd.f32 %v99, %v582
  %v584 = vpop.f32.mrb[0].mxu0
  %v585 = vpop.f32.mrb[0].mxu0
  %v586 = vadd.f32 %v99, %v585
  %v587 = vpop.f32.mrb[0].mxu0
  %588 = vmatprep.mubr.bf16.mxu0 0
  %589 = vmatmul.mubr.bf16.gmra.mrb[0].mxu0 %v255
  %v590 = vpop.f32.mrb[0].mxu0
  %v591 = vadd.f32 %v99, %v590
  %v592 = vpop.f32.mrb[0].mxu0
  %v593 = vpop.f32.mrb[0].mxu0
  %v594 = vadd.f32 %v99, %v593
  %v595 = vpop.f32.mrb[0].mxu0
  %596 = vmatprep.mubr.bf16.mxu0 0
  %597 = vmatmul.mubr.bf16.gmra.mrb[0].mxu0 %v256
  %v598 = vpop.f32.mrb[0].mxu0
  %v599 = vadd.f32 %v99, %v598
  %v600 = vpop.f32.mrb[0].mxu0
  %v601 = vpop.f32.mrb[0].mxu0
  %v602 = vadd.f32 %v99, %v601
  %v603 = vpop.f32.mrb[0].mxu0
  %604 = vmatprep.mubr.bf16.mxu0 0
  %605 = vmatmul.mubr.bf16.gmra.mrb[0].mxu0 %v257
  %v606 = vpop.f32.mrb[0].mxu0
  %v607 = vadd.f32 %v99, %v606
  %v608 = vpop.f32.mrb[0].mxu0
  %v609 = vpop.f32.mrb[0].mxu0
  %v610 = vadd.f32 %v99, %v609
  %v611 = vpop.f32.mrb[0].mxu0
  %612 = vmatprep.mubr.bf16.mxu0 0
  %613 = vmatmul.mubr.bf16.gmra.mrb[0].mxu0 %v258
  %v614 = vpop.f32.mrb[0].mxu0
  %v615 = vadd.f32 %v99, %v614
  %v616 = vpop.f32.mrb[0].mxu0
  %v617 = vpop.f32.mrb[0].mxu0
  %v618 = vadd.f32 %v99, %v617
  %v619 = vpop.f32.mrb[0].mxu0
  %620 = vmatprep.mubr.bf16.mxu0 0
  %621 = vmatmul.mubr.bf16.gmra.mrb[0].mxu0 %v259
  %v622 = vpop.f32.mrb[0].mxu0
  %v623 = vadd.f32 %v99, %v622
  %v624 = vpop.f32.mrb[0].mxu0
  %v625 = vpop.f32.mrb[0].mxu0
  %v626 = vadd.f32 %v99, %v625
  %v627 = vpop.f32.mrb[0].mxu0
  %628 = vdwg.mxu0
  %vm629 = vcmp.ge.f32.partialorder %v375, 0.0
  %vm630 = vcmp.ge.f32.partialorder %v378, 0.0
  %vm631 = vcmp.ge.f32.partialorder %v383, 0.0
  %vm632 = vcmp.ge.f32.partialorder %v386, 0.0
  %vm633 = vcmp.ge.f32.partialorder %v391, 0.0
  %vm634 = vcmp.ge.f32.partialorder %v394, 0.0
  %vm635 = vcmp.ge.f32.partialorder %v399, 0.0
  %vm636 = vcmp.ge.f32.partialorder %v402, 0.0
  %vm637 = vcmp.ge.f32.partialorder %v407, 0.0
  %vm638 = vcmp.ge.f32.partialorder %v410, 0.0
  %vm639 = vcmp.ge.f32.partialorder %v415, 0.0
  %vm640 = vcmp.ge.f32.partialorder %v418, 0.0
  %vm641 = vcmp.ge.f32.partialorder %v423, 0.0
  %vm642 = vcmp.ge.f32.partialorder %v426, 0.0
  %vm643 = vcmp.ge.f32.partialorder %v431, 0.0
  %vm644 = vcmp.ge.f32.partialorder %v434, 0.0
  %vm645 = vcmp.ge.f32.partialorder %v439, 0.0
  %vm646 = vcmp.ge.f32.partialorder %v442, 0.0
  %vm647 = vcmp.ge.f32.partialorder %v447, 0.0
  %vm648 = vcmp.ge.f32.partialorder %v450, 0.0
  %vm649 = vcmp.ge.f32.partialorder %v455, 0.0
  %vm650 = vcmp.ge.f32.partialorder %v458, 0.0
  %vm651 = vcmp.ge.f32.partialorder %v463, 0.0
  %vm652 = vcmp.ge.f32.partialorder %v466, 0.0
  %vm653 = vcmp.ge.f32.partialorder %v471, 0.0
  %vm654 = vcmp.ge.f32.partialorder %v474, 0.0
  %vm655 = vcmp.ge.f32.partialorder %v479, 0.0
  %vm656 = vcmp.ge.f32.partialorder %v482, 0.0
  %vm657 = vcmp.ge.f32.partialorder %v487, 0.0
  %vm658 = vcmp.ge.f32.partialorder %v490, 0.0
  %vm659 = vcmp.ge.f32.partialorder %v495, 0.0
  %vm660 = vcmp.ge.f32.partialorder %v498, 0.0
  %vm661 = vcmp.ge.f32.partialorder %v503, 0.0
  %vm662 = vcmp.ge.f32.partialorder %v506, 0.0
  %vm663 = vcmp.ge.f32.partialorder %v511, 0.0
  %vm664 = vcmp.ge.f32.partialorder %v514, 0.0
  %vm665 = vcmp.ge.f32.partialorder %v519, 0.0
  %vm666 = vcmp.ge.f32.partialorder %v522, 0.0
  %vm667 = vcmp.ge.f32.partialorder %v527, 0.0
  %vm668 = vcmp.ge.f32.partialorder %v530, 0.0
  %vm669 = vcmp.ge.f32.partialorder %v535, 0.0
  %vm670 = vcmp.ge.f32.partialorder %v538, 0.0
  %vm671 = vcmp.ge.f32.partialorder %v543, 0.0
  %vm672 = vcmp.ge.f32.partialorder %v546, 0.0
  %vm673 = vcmp.ge.f32.partialorder %v551, 0.0
  %vm674 = vcmp.ge.f32.partialorder %v554, 0.0
  %vm675 = vcmp.ge.f32.partialorder %v559, 0.0
  %vm676 = vcmp.ge.f32.partialorder %v562, 0.0
  %vm677 = vcmp.ge.f32.partialorder %v567, 0.0
  %vm678 = vcmp.ge.f32.partialorder %v570, 0.0
  %vm679 = vcmp.ge.f32.partialorder %v575, 0.0
  %vm680 = vcmp.ge.f32.partialorder %v578, 0.0
  %vm681 = vcmp.ge.f32.partialorder %v583, 0.0
  %vm682 = vcmp.ge.f32.partialorder %v586, 0.0
  %vm683 = vcmp.ge.f32.partialorder %v591, 0.0
  %vm684 = vcmp.ge.f32.partialorder %v594, 0.0
  %vm685 = vcmp.ge.f32.partialorder %v599, 0.0
  %vm686 = vcmp.ge.f32.partialorder %v602, 0.0
  %vm687 = vcmp.ge.f32.partialorder %v607, 0.0
  %vm688 = vcmp.ge.f32.partialorder %v610, 0.0
  %vm689 = vcmp.ge.f32.partialorder %v615, 0.0
  %vm690 = vcmp.ge.f32.partialorder %v618, 0.0
  %vm691 = vcmp.ge.f32.partialorder %v623, 0.0
  %vm692 = vcmp.ge.f32.partialorder %v626, 0.0
  %v693 = vmul.f32 %v375, 0.2
  %v694 = vmul.f32 %v378, 0.2
  %v695 = vmul.f32 %v383, 0.2
  %v696 = vmul.f32 %v386, 0.2
  %v697 = vmul.f32 %v391, 0.2
  %v698 = vmul.f32 %v394, 0.2
  %v699 = vmul.f32 %v399, 0.2
  %v700 = vmul.f32 %v402, 0.2
  %v701 = vmul.f32 %v407, 0.2
  %v702 = vmul.f32 %v410, 0.2
  %v703 = vmul.f32 %v415, 0.2
  %v704 = vmul.f32 %v418, 0.2
  %v705 = vmul.f32 %v423, 0.2
  %v706 = vmul.f32 %v426, 0.2
  %v707 = vmul.f32 %v431, 0.2
  %v708 = vmul.f32 %v434, 0.2
  %v709 = vmul.f32 %v439, 0.2
  %v710 = vmul.f32 %v442, 0.2
  %v711 = vmul.f32 %v447, 0.2
  %v712 = vmul.f32 %v450, 0.2
  %v713 = vmul.f32 %v455, 0.2
  %v714 = vmul.f32 %v458, 0.2
  %v715 = vmul.f32 %v463, 0.2
  %v716 = vmul.f32 %v466, 0.2
  %v717 = vmul.f32 %v471, 0.2
  %v718 = vmul.f32 %v474, 0.2
  %v719 = vmul.f32 %v479, 0.2
  %v720 = vmul.f32 %v482, 0.2
  %v721 = vmul.f32 %v487, 0.2
  %v722 = vmul.f32 %v490, 0.2
  %v723 = vmul.f32 %v495, 0.2
  %v724 = vmul.f32 %v498, 0.2
  %v725 = vmul.f32 %v503, 0.2
  %v726 = vmul.f32 %v506, 0.2
  %v727 = vmul.f32 %v511, 0.2
  %v728 = vmul.f32 %v514, 0.2
  %v729 = vmul.f32 %v519, 0.2
  %v730 = vmul.f32 %v522, 0.2
  %v731 = vmul.f32 %v527, 0.2
  %v732 = vmul.f32 %v530, 0.2
  %v733 = vmul.f32 %v535, 0.2
  %v734 = vmul.f32 %v538, 0.2
  %v735 = vmul.f32 %v543, 0.2
  %v736 = vmul.f32 %v546, 0.2
  %v737 = vmul.f32 %v551, 0.2
  %v738 = vmul.f32 %v554, 0.2
  %v739 = vmul.f32 %v559, 0.2
  %v740 = vmul.f32 %v562, 0.2
  %v741 = vmul.f32 %v567, 0.2
  %v742 = vmul.f32 %v570, 0.2
  %v743 = vmul.f32 %v575, 0.2
  %v744 = vmul.f32 %v578, 0.2
  %v745 = vmul.f32 %v583, 0.2
  %v746 = vmul.f32 %v586, 0.2
  %v747 = vmul.f32 %v591, 0.2
  %v748 = vmul.f32 %v594, 0.2
  %v749 = vmul.f32 %v599, 0.2
  %v750 = vmul.f32 %v602, 0.2
  %v751 = vmul.f32 %v607, 0.2
  %v752 = vmul.f32 %v610, 0.2
  %v753 = vmul.f32 %v615, 0.2
  %v754 = vmul.f32 %v618, 0.2
  %v755 = vmul.f32 %v623, 0.2
  %v756 = vmul.f32 %v626, 0.2
  %v757 = vsel %vm629, %v375, %v693
  %v758 = vsel %vm630, %v378, %v694
  %v759 = vsel %vm631, %v383, %v695
  %v760 = vsel %vm632, %v386, %v696
  %v761 = vsel %vm633, %v391, %v697
  %v762 = vsel %vm634, %v394, %v698
  %v763 = vsel %vm635, %v399, %v699
  %v764 = vsel %vm636, %v402, %v700
  %v765 = vsel %vm637, %v407, %v701
  %v766 = vsel %vm638, %v410, %v702
  %v767 = vsel %vm639, %v415, %v703
  %v768 = vsel %vm640, %v418, %v704
  %v769 = vsel %vm641, %v423, %v705
  %v770 = vsel %vm642, %v426, %v706
  %v771 = vsel %vm643, %v431, %v707
  %v772 = vsel %vm644, %v434, %v708
  %v773 = vsel %vm645, %v439, %v709
  %v774 = vsel %vm646, %v442, %v710
  %v775 = vsel %vm647, %v447, %v711
  %v776 = vsel %vm648, %v450, %v712
  %v777 = vsel %vm649, %v455, %v713
  %v778 = vsel %vm650, %v458, %v714
  %v779 = vsel %vm651, %v463, %v715
  %v780 = vsel %vm652, %v466, %v716
  %v781 = vsel %vm653, %v471, %v717
  %v782 = vsel %vm654, %v474, %v718
  %v783 = vsel %vm655, %v479, %v719
  %v784 = vsel %vm656, %v482, %v720
  %v785 = vsel %vm657, %v487, %v721
  %v786 = vsel %vm658, %v490, %v722
  %v787 = vsel %vm659, %v495, %v723
  %v788 = vsel %vm660, %v498, %v724
  %v789 = vsel %vm661, %v503, %v725
  %v790 = vsel %vm662, %v506, %v726
  %v791 = vsel %vm663, %v511, %v727
  %v792 = vsel %vm664, %v514, %v728
  %v793 = vsel %vm665, %v519, %v729
  %v794 = vsel %vm666, %v522, %v730
  %v795 = vsel %vm667, %v527, %v731
  %v796 = vsel %vm668, %v530, %v732
  %v797 = vsel %vm669, %v535, %v733
  %v798 = vsel %vm670, %v538, %v734
  %v799 = vsel %vm671, %v543, %v735
  %v800 = vsel %vm672, %v546, %v736
  %v801 = vsel %vm673, %v551, %v737
  %v802 = vsel %vm674, %v554, %v738
  %v803 = vsel %vm675, %v559, %v739
  %v804 = vsel %vm676, %v562, %v740
  %v805 = vsel %vm677, %v567, %v741
  %v806 = vsel %vm678, %v570, %v742
  %v807 = vsel %vm679, %v575, %v743
  %v808 = vsel %vm680, %v578, %v744
  %v809 = vsel %vm681, %v583, %v745
  %v810 = vsel %vm682, %v586, %v746
  %v811 = vsel %vm683, %v591, %v747
  %v812 = vsel %vm684, %v594, %v748
  %v813 = vsel %vm685, %v599, %v749
  %v814 = vsel %vm686, %v602, %v750
  %v815 = vsel %vm687, %v607, %v751
  %v816 = vsel %vm688, %v610, %v752
  %v817 = vsel %vm689, %v615, %v753
  %v818 = vsel %vm690, %v618, %v754
  %v819 = vsel %vm691, %v623, %v755
  %v820 = vsel %vm692, %v626, %v756
  %821 = vst [vmem:[%s3] sm:$0xff] %v757
  %822 = vst [vmem:[%s3 + $0x8] sm:$0xff] %v758
  %823 = vst [vmem:[%s3 + $0x10] sm:$0xff] %v759
  %824 = vst [vmem:[%s3 + $0x18] sm:$0xff] %v760
  %825 = vst [vmem:[%s3 + $0x20] sm:$0xff] %v761
  %826 = vst [vmem:[%s3 + $0x28] sm:$0xff] %v762
  %827 = vst [vmem:[%s3 + $0x30] sm:$0xff] %v763
  %828 = vst [vmem:[%s3 + $0x38] sm:$0xff] %v764
  %829 = vst [vmem:[%s3 + $0x40] sm:$0xff] %v765
  %830 = vst [vmem:[%s3 + $0x48] sm:$0xff] %v766
  %831 = vst [vmem:[%s3 + $0x50] sm:$0xff] %v767
  %832 = vst [vmem:[%s3 + $0x58] sm:$0xff] %v768
  %833 = vst [vmem:[%s3 + $0x60] sm:$0xff] %v769
  %834 = vst [vmem:[%s3 + $0x68] sm:$0xff] %v770
  %835 = vst [vmem:[%s3 + $0x70] sm:$0xff] %v771
  %836 = vst [vmem:[%s3 + $0x78] sm:$0xff] %v772
  %837 = vst [vmem:[%s3 + $0x80] sm:$0xff] %v773
  %838 = vst [vmem:[%s3 + $0x88] sm:$0xff] %v774
  %839 = vst [vmem:[%s3 + $0x90] sm:$0xff] %v775
  %840 = vst [vmem:[%s3 + $0x98] sm:$0xff] %v776
  %841 = vst [vmem:[%s3 + $0xa0] sm:$0xff] %v777
  %842 = vst [vmem:[%s3 + $0xa8] sm:$0xff] %v778
  %843 = vst [vmem:[%s3 + $0xb0] sm:$0xff] %v779
  %844 = vst [vmem:[%s3 + $0xb8] sm:$0xff] %v780
  %845 = vst [vmem:[%s3 + $0xc0] sm:$0xff] %v781
  %846 = vst [vmem:[%s3 + $0xc8] sm:$0xff] %v782
  %847 = vst [vmem:[%s3 + $0xd0] sm:$0xff] %v783
  %848 = vst [vmem:[%s3 + $0xd8] sm:$0xff] %v784
  %849 = vst [vmem:[%s3 + $0xe0] sm:$0xff] %v785
  %850 = vst [vmem:[%s3 + $0xe8] sm:$0xff] %v786
  %851 = vst [vmem:[%s3 + $0xf0] sm:$0xff] %v787
  %852 = vst [vmem:[%s3 + $0xf8] sm:$0xff] %v788
  %853 = vst [vmem:[%s3 + $0x100] sm:$0xff] %v789
  %854 = vst [vmem:[%s3 + $0x108] sm:$0xff] %v790
  %855 = vst [vmem:[%s3 + $0x110] sm:$0xff] %v791
  %856 = vst [vmem:[%s3 + $0x118] sm:$0xff] %v792
  %857 = vst [vmem:[%s3 + $0x120] sm:$0xff] %v793
  %858 = vst [vmem:[%s3 + $0x128] sm:$0xff] %v794
  %859 = vst [vmem:[%s3 + $0x130] sm:$0xff] %v795
  %860 = vst [vmem:[%s3 + $0x138] sm:$0xff] %v796
  %861 = vst [vmem:[%s3 + $0x140] sm:$0xff] %v797
  %862 = vst [vmem:[%s3 + $0x148] sm:$0xff] %v798
  %863 = vst [vmem:[%s3 + $0x150] sm:$0xff] %v799
  %864 = vst [vmem:[%s3 + $0x158] sm:$0xff] %v800
  %865 = vst [vmem:[%s3 + $0x160] sm:$0xff] %v801
  %866 = vst [vmem:[%s3 + $0x168] sm:$0xff] %v802
  %867 = vst [vmem:[%s3 + $0x170] sm:$0xff] %v803
  %868 = vst [vmem:[%s3 + $0x178] sm:$0xff] %v804
  %869 = vst [vmem:[%s3 + $0x180] sm:$0xff] %v805
  %870 = vst [vmem:[%s3 + $0x188] sm:$0xff] %v806
  %871 = vst [vmem:[%s3 + $0x190] sm:$0xff] %v807
  %872 = vst [vmem:[%s3 + $0x198] sm:$0xff] %v808
  %873 = vst [vmem:[%s3 + $0x1a0] sm:$0xff] %v809
  %874 = vst [vmem:[%s3 + $0x1a8] sm:$0xff] %v810
  %875 = vst [vmem:[%s3 + $0x1b0] sm:$0xff] %v811
  %876 = vst [vmem:[%s3 + $0x1b8] sm:$0xff] %v812
  %877 = vst [vmem:[%s3 + $0x1c0] sm:$0xff] %v813
  %878 = vst [vmem:[%s3 + $0x1c8] sm:$0xff] %v814
  %879 = vst [vmem:[%s3 + $0x1d0] sm:$0xff] %v815
  %880 = vst [vmem:[%s3 + $0x1d8] sm:$0xff] %v816
  %881 = vst [vmem:[%s3 + $0x1e0] sm:$0xff] %v817
  %882 = vst [vmem:[%s3 + $0x1e8] sm:$0xff] %v818
  %883 = vst [vmem:[%s3 + $0x1f0] sm:$0xff] %v819
  %884 = vst [vmem:[%s3 + $0x1f8] sm:$0xff] %v820
  // Predicated region
  $region14: #{_lambda_.11} parent=0 // pred_check
    _
  $region15: #{_lambda_.11} parent=0 // pred_check_branch
    %886 = sbr.rel (0) target = $region17
  $region16: #{_lambda_.11} parent=0 // pred_region
    _
  $region17: #{_lambda_.11} parent=0 // pred_fallthru
    _
  // Predicated region
  $region18: #{_lambda_.11} parent=0 // pred_check
    _
  $region19: #{_lambda_.11} parent=0 // pred_check_branch
    %888 = sbr.rel (0) target = $region21
  $region20: #{_lambda_.11} parent=0 // pred_region
    _
  $region21: #{_lambda_.11} parent=0 // pred_fallthru
    _

// kernel: _lambda_.12
$region0: #{_lambda_.12}
  #allocation0 [shape = 'u32[]', space=smem, size = 0x4, offset = 0x4, fixed_abs, tag = 'smem constant byte address 0x4 - core index']
  #allocation1 [shape = 'u32[144,128]{1,0:T(1,128)}', space=vmem, size = 0x12000, scoped, tag = 'internal scratch']
  %s0 = inlined_call_operand.vmem [shape: bf16[128,128], index: 0, kind: input, shape index: {}]
  %s1 = inlined_call_operand.vmem [shape: bf16[128,128], index: 1, kind: input, shape index: {}]
  %s2 = inlined_call_operand.vmem [shape: f32[128,128], index: 2, kind: output, shape index: {0}]
  %s3 = inlined_call_operand.vmem [shape: f32[8,128], index: 3, kind: output, shape index: {1}]
  %s4 = inlined_call_operand.vmem [shape: f32[8,128], index: 4, kind: output, shape index: {2}]
  %5 = xla_tuple %s2, %s3, %s4
  %s6 = sld [smem:[#allocation0]]
  $region38: #{_lambda_.12} parent=0
    _
  %s8 = ssub.s32 1, %s6
  %s9 = scalar_select 0, %s8, %s6
  // Predicated region
  $region2: #{_lambda_.12} parent=0 // pred_check
    _
  $region3: #{_lambda_.12} parent=0 // pred_check_branch
    %11 = sbr.rel (0) target = $region5
  $region4: #{_lambda_.12} parent=0 // pred_region
    _
  $region5: #{_lambda_.12} parent=0 // pred_fallthru
    _
  // Predicated region
  $region6: #{_lambda_.12} parent=0 // pred_check
    _
  $region7: #{_lambda_.12} parent=0 // pred_check_branch
    %13 = sbr.rel (0) target = $region9
  $region8: #{_lambda_.12} parent=0 // pred_region
    _
  $region9: #{_lambda_.12} parent=0 // pred_fallthru
    _
  %v15 = vld [vmem:[%s0] sm:$0xf]
  %v16 = vld [vmem:[%s0 + $0x4] sm:$0xf]
  %v17 = vld [vmem:[%s0 + $0x8] sm:$0xf]
  %v18 = vld [vmem:[%s0 + $0xc] sm:$0xf]
  %v19 = vld [vmem:[%s0 + $0x10] sm:$0xf]
  %v20 = vld [vmem:[%s0 + $0x14] sm:$0xf]
  %v21 = vld [vmem:[%s0 + $0x18] sm:$0xf]
  %v22 = vld [vmem:[%s0 + $0x1c] sm:$0xf]
  %v23 = vld [vmem:[%s0 + $0x20] sm:$0xf]
  %v24 = vld [vmem:[%s0 + $0x24] sm:$0xf]
  %v25 = vld [vmem:[%s0 + $0x28] sm:$0xf]
  %v26 = vld [vmem:[%s0 + $0x2c] sm:$0xf]
  %v27 = vld [vmem:[%s0 + $0x30] sm:$0xf]
  %v28 = vld [vmem:[%s0 + $0x34] sm:$0xf]
  %v29 = vld [vmem:[%s0 + $0x38] sm:$0xf]
  %v30 = vld [vmem:[%s0 + $0x3c] sm:$0xf]
  %v31 = vld [vmem:[%s1] sm:$0xf]
  %v32 = vld [vmem:[%s1 + $0x4] sm:$0xf]
  %v33 = vld [vmem:[%s1 + $0x8] sm:$0xf]
  %v34 = vld [vmem:[%s1 + $0xc] sm:$0xf]
  %v35 = vld [vmem:[%s1 + $0x10] sm:$0xf]
  %v36 = vld [vmem:[%s1 + $0x14] sm:$0xf]
  %v37 = vld [vmem:[%s1 + $0x18] sm:$0xf]
  %v38 = vld [vmem:[%s1 + $0x1c] sm:$0xf]
  %v39 = vld [vmem:[%s1 + $0x20] sm:$0xf]
  %v40 = vld [vmem:[%s1 + $0x24] sm:$0xf]
  %v41 = vld [vmem:[%s1 + $0x28] sm:$0xf]
  %v42 = vld [vmem:[%s1 + $0x2c] sm:$0xf]
  %v43 = vld [vmem:[%s1 + $0x30] sm:$0xf]
  %v44 = vld [vmem:[%s1 + $0x34] sm:$0xf]
  %v45 = vld [vmem:[%s1 + $0x38] sm:$0xf]
  %v46 = vld [vmem:[%s1 + $0x3c] sm:$0xf]
  %v63 = vunpack.c.l.b16 %v15
  %v64 = vunpack.c.l.b16 %v16
  %v65 = vunpack.c.l.b16 %v17
  %v66 = vunpack.c.l.b16 %v18
  %v67 = vunpack.c.l.b16 %v19
  %v68 = vunpack.c.l.b16 %v20
  %v69 = vunpack.c.l.b16 %v21
  %v70 = vunpack.c.l.b16 %v22
  %v71 = vunpack.c.l.b16 %v23
  %v72 = vunpack.c.l.b16 %v24
  %v73 = vunpack.c.l.b16 %v25
  %v74 = vunpack.c.l.b16 %v26
  %v75 = vunpack.c.l.b16 %v27
  %v76 = vunpack.c.l.b16 %v28
  %v77 = vunpack.c.l.b16 %v29
  %v78 = vunpack.c.l.b16 %v30
  %v79 = vpack.c.b16 %v64, %v63
  %v80 = vpack.c.b16 %v66, %v65
  %v81 = vpack.c.b16 %v68, %v67
  %v82 = vpack.c.b16 %v70, %v69
  %v83 = vpack.c.b16 %v72, %v71
  %v84 = vpack.c.b16 %v74, %v73
  %v85 = vpack.c.b16 %v76, %v75
  %v86 = vpack.c.b16 %v78, %v77
  %v111 = vunpack.c.l.b16 %v31
  %v112 = vunpack.c.l.b16 %v32
  %v113 = vunpack.c.l.b16 %v33
  %v114 = vunpack.c.l.b16 %v34
  %v115 = vunpack.c.l.b16 %v35
  %v116 = vunpack.c.l.b16 %v36
  %v117 = vunpack.c.l.b16 %v37
  %v118 = vunpack.c.l.b16 %v38
  %v119 = vunpack.c.l.b16 %v39
  %v120 = vunpack.c.l.b16 %v40
  %v121 = vunpack.c.l.b16 %v41
  %v122 = vunpack.c.l.b16 %v42
  %v123 = vunpack.c.l.b16 %v43
  %v124 = vunpack.c.l.b16 %v44
  %v125 = vunpack.c.l.b16 %v45
  %v126 = vunpack.c.l.b16 %v46
  %v127 = vpack.c.b16 %v112, %v111
  %v128 = vpack.c.b16 %v114, %v113
  %v129 = vpack.c.b16 %v116, %v115
  %v130 = vpack.c.b16 %v118, %v117
  %v131 = vpack.c.b16 %v120, %v119
  %v132 = vpack.c.b16 %v122, %v121
  %v133 = vpack.c.b16 %v124, %v123
  %v134 = vpack.c.b16 %v126, %v125
  %143 = vmatprep.subr.bf16.mxu0 0
  %144 = vmatpush1.bf16.msra.mxu0 %v127
  %145 = vmatprep.subr.bf16.mxu0 0
  %146 = vmatpush1.bf16.msra.mxu0 %v128
  %147 = vmatprep.subr.bf16.mxu0 0
  %148 = vmatpush1.bf16.msra.mxu0 %v129
  %149 = vmatprep.subr.bf16.mxu0 0
  %150 = vmatpush1.bf16.msra.mxu0 %v130
  %151 = vmatprep.subr.bf16.mxu0 0
  %152 = vmatpush1.bf16.msra.mxu0 %v131
  %153 = vmatprep.subr.bf16.mxu0 0
  %154 = vmatpush1.bf16.msra.mxu0 %v132
  %155 = vmatprep.subr.bf16.mxu0 0
  %156 = vmatpush1.bf16.msra.mxu0 %v133
  %157 = vmatprep.subr.bf16.mxu0 0
  %158 = vmatpush1.bf16.msra.mxu0 %v134
  %159 = vmatprep.subr.bf16.mxu0 0
  %160 = vmatpush1.bf16.msra.mxu0 0
  %161 = vmatprep.subr.bf16.mxu0 0
  %162 = vmatpush1.bf16.msra.mxu0 0
  %163 = vmatprep.subr.bf16.mxu0 0
  %164 = vmatpush1.bf16.msra.mxu0 0
  %165 = vmatprep.subr.bf16.mxu0 0
  %166 = vmatpush1.bf16.msra.mxu0 0
  %167 = vmatprep.subr.bf16.mxu0 0
  %168 = vmatpush1.bf16.msra.mxu0 0
  %169 = vmatprep.subr.bf16.mxu0 0
  %170 = vmatpush1.bf16.msra.mxu0 0
  %171 = vmatprep.subr.bf16.mxu0 0
  %172 = vmatpush1.bf16.msra.mxu0 0
  %173 = vmatprep.subr.bf16.mxu0 0
  %174 = vmatpush1.bf16.msra.mxu0 0
  %175 = vmatprep.mubr.bf16.mxu0 0
  %176 = vmatmul.mubr.bf16.gmra.mrb[0].mxu0 %v79
  %v177 = vpop.f32.mrb[0].mxu0
  %v178 = vadd.f32 0.0, %v177
  %v179 = vpop.f32.mrb[0].mxu0
  %v180 = vpop.f32.mrb[0].mxu0
  %v181 = vadd.f32 0.0, %v180
  %v182 = vpop.f32.mrb[0].mxu0
  %183 = vmatprep.mubr.bf16.mxu0 0
  %184 = vmatmul.mubr.bf16.gmra.mrb[0].mxu0 %v80
  %v185 = vpop.f32.mrb[0].mxu0
  %v186 = vadd.f32 0.0, %v185
  %v187 = vpop.f32.mrb[0].mxu0
  %v188 = vpop.f32.mrb[0].mxu0
  %v189 = vadd.f32 0.0, %v188
  %v190 = vpop.f32.mrb[0].mxu0
  %191 = vmatprep.mubr.bf16.mxu0 0
  %192 = vmatmul.mubr.bf16.gmra.mrb[0].mxu0 %v81
  %v193 = vpop.f32.mrb[0].mxu0
  %v194 = vadd.f32 0.0, %v193
  %v195 = vpop.f32.mrb[0].mxu0
  %v196 = vpop.f32.mrb[0].mxu0
  %v197 = vadd.f32 0.0, %v196
  %v198 = vpop.f32.mrb[0].mxu0
  %199 = vmatprep.mubr.bf16.mxu0 0
  %200 = vmatmul.mubr.bf16.gmra.mrb[0].mxu0 %v82
  %v201 = vpop.f32.mrb[0].mxu0
  %v202 = vadd.f32 0.0, %v201
  %v203 = vpop.f32.mrb[0].mxu0
  %v204 = vpop.f32.mrb[0].mxu0
  %v205 = vadd.f32 0.0, %v204
  %v206 = vpop.f32.mrb[0].mxu0
  %207 = vmatprep.mubr.bf16.mxu0 0
  %208 = vmatmul.mubr.bf16.gmra.mrb[0].mxu0 %v83
  %v209 = vpop.f32.mrb[0].mxu0
  %v210 = vadd.f32 0.0, %v209
  %v211 = vpop.f32.mrb[0].mxu0
  %v212 = vpop.f32.mrb[0].mxu0
  %v213 = vadd.f32 0.0, %v212
  %v214 = vpop.f32.mrb[0].mxu0
  %215 = vmatprep.mubr.bf16.mxu0 0
  %216 = vmatmul.mubr.bf16.gmra.mrb[0].mxu0 %v84
  %v217 = vpop.f32.mrb[0].mxu0
  %v218 = vadd.f32 0.0, %v217
  %v219 = vpop.f32.mrb[0].mxu0
  %v220 = vpop.f32.mrb[0].mxu0
  %v221 = vadd.f32 0.0, %v220
  %v222 = vpop.f32.mrb[0].mxu0
  %223 = vmatprep.mubr.bf16.mxu0 0
  %224 = vmatmul.mubr.bf16.gmra.mrb[0].mxu0 %v85
  %v225 = vpop.f32.mrb[0].mxu0
  %v226 = vadd.f32 0.0, %v225
  %v227 = vpop.f32.mrb[0].mxu0
  %v228 = vpop.f32.mrb[0].mxu0
  %v229 = vadd.f32 0.0, %v228
  %v230 = vpop.f32.mrb[0].mxu0
  %231 = vmatprep.mubr.bf16.mxu0 0
  %232 = vmatmul.mubr.bf16.gmra.mrb[0].mxu0 %v86
  %v233 = vpop.f32.mrb[0].mxu0
  %v234 = vadd.f32 0.0, %v233
  %v235 = vpop.f32.mrb[0].mxu0
  %v236 = vpop.f32.mrb[0].mxu0
  %v237 = vadd.f32 0.0, %v236
  %v238 = vpop.f32.mrb[0].mxu0
  %239 = vdwg.mxu0
  %240 = vst [vmem:[%s2] sm:$0xff] %v178
  %241 = vst [vmem:[%s2 + $0x8] sm:$0xff] %v181
  %242 = vst [vmem:[%s2 + $0x10] sm:$0xff] %v186
  %243 = vst [vmem:[%s2 + $0x18] sm:$0xff] %v189
  %244 = vst [vmem:[%s2 + $0x20] sm:$0xff] %v194
  %245 = vst [vmem:[%s2 + $0x28] sm:$0xff] %v197
  %246 = vst [vmem:[%s2 + $0x30] sm:$0xff] %v202
  %247 = vst [vmem:[%s2 + $0x38] sm:$0xff] %v205
  %248 = vst [vmem:[%s2 + $0x40] sm:$0xff] %v210
  %249 = vst [vmem:[%s2 + $0x48] sm:$0xff] %v213
  %250 = vst [vmem:[%s2 + $0x50] sm:$0xff] %v218
  %251 = vst [vmem:[%s2 + $0x58] sm:$0xff] %v221
  %252 = vst [vmem:[%s2 + $0x60] sm:$0xff] %v226
  %253 = vst [vmem:[%s2 + $0x68] sm:$0xff] %v229
  %254 = vst [vmem:[%s2 + $0x70] sm:$0xff] %v234
  %255 = vst [vmem:[%s2 + $0x78] sm:$0xff] %v237
  %p256 = scmp.eq.s32.totalorder 0, 0
  // Predicated region
  $region10: #{_lambda_.12} parent=0 // pred_check
    %p257 = pneg %p256
  $region11: #{_lambda_.12} parent=0 // pred_check_branch
    %259 = sbr.rel (%p257) target = $region13
  $region12: #{_lambda_.12} parent=0 // pred_region
    %260 = vst [vmem:[%s3] sm:$0xff] 0.0
    %261 = vst [vmem:[%s4] sm:$0xff] 0.0
  $region13: #{_lambda_.12} parent=0 // pred_fallthru
    _
  %v262 = vadd.f32 %v178, %v181
  %v263 = vadd.f32 %v262, %v186
  %v264 = vadd.f32 %v263, %v189
  %v265 = vadd.f32 %v264, %v194
  %v266 = vadd.f32 %v265, %v197
  %v267 = vadd.f32 %v266, %v202
  %v268 = vadd.f32 %v267, %v205
  %v269 = vadd.f32 %v268, %v210
  %v270 = vadd.f32 %v269, %v213
  %v271 = vadd.f32 %v270, %v218
  %v272 = vadd.f32 %v271, %v221
  %v273 = vadd.f32 %v272, %v226
  %v274 = vadd.f32 %v273, %v229
  %v275 = vadd.f32 %v274, %v234
  %v276 = vadd.f32 %v275, %v237
  %v277 = vrot.slane %v276, 4
  %v278 = vadd.f32 %v276, %v277
  %v279 = vrot.slane %v278, 2
  %v280 = vadd.f32 %v278, %v279
  %v281 = vrot.slane %v280, 1
  %v282 = vadd.f32 %v280, %v281
  %v283 = vmul.f32 %v178, %v178
  %v284 = vmul.f32 %v181, %v181
  %v285 = vmul.f32 %v186, %v186
  %v286 = vmul.f32 %v189, %v189
  %v287 = vmul.f32 %v194, %v194
  %v288 = vmul.f32 %v197, %v197
  %v289 = vmul.f32 %v202, %v202
  %v290 = vmul.f32 %v205, %v205
  %v291 = vmul.f32 %v210, %v210
  %v292 = vmul.f32 %v213, %v213
  %v293 = vmul.f32 %v218, %v218
  %v294 = vmul.f32 %v221, %v221
  %v295 = vmul.f32 %v226, %v226
  %v296 = vmul.f32 %v229, %v229
  %v297 = vmul.f32 %v234, %v234
  %v298 = vmul.f32 %v237, %v237
  %v299 = vadd.f32 %v283, %v284
  %v300 = vadd.f32 %v299, %v285
  %v301 = vadd.f32 %v300, %v286
  %v302 = vadd.f32 %v301, %v287
  %v303 = vadd.f32 %v302, %v288
  %v304 = vadd.f32 %v303, %v289
  %v305 = vadd.f32 %v304, %v290
  %v306 = vadd.f32 %v305, %v291
  %v307 = vadd.f32 %v306, %v292
  %v308 = vadd.f32 %v307, %v293
  %v309 = vadd.f32 %v308, %v294
  %v310 = vadd.f32 %v309, %v295
  %v311 = vadd.f32 %v310, %v296
  %v312 = vadd.f32 %v311, %v297
  %v313 = vadd.f32 %v312, %v298
  %v314 = vrot.slane %v313, 4
  %v315 = vadd.f32 %v313, %v314
  %v316 = vrot.slane %v315, 2
  %v317 = vadd.f32 %v315, %v316
  %v318 = vrot.slane %v317, 1
  %v319 = vadd.f32 %v317, %v318
  %v320 = vld [vmem:[%s3] sm:$0xff]
  %v321 = vadd.f32 %v320, %v282
  %322 = vst [vmem:[%s3] sm:$0xff] %v321
  %v323 = vld [vmem:[%s4] sm:$0xff]
  %v324 = vadd.f32 %v323, %v319
  %325 = vst [vmem:[%s4] sm:$0xff] %v324
  // Predicated region
  $region14: #{_lambda_.12} parent=0 // pred_check
    _
  $region15: #{_lambda_.12} parent=0 // pred_check_branch
    %327 = sbr.rel (0) target = $region17
  $region16: #{_lambda_.12} parent=0 // pred_region
    _
  $region17: #{_lambda_.12} parent=0 // pred_fallthru
    _
  // Predicated region
  $region18: #{_lambda_.12} parent=0 // pred_check
    _
  $region19: #{_lambda_.12} parent=0 // pred_check_branch
    %329 = sbr.rel (0) target = $region21
  $region20: #{_lambda_.12} parent=0 // pred_region
    _
  $region21: #{_lambda_.12} parent=0 // pred_fallthru
    _
  // Predicated region
  $region22: #{_lambda_.12} parent=0 // pred_check
    _
  $region23: #{_lambda_.12} parent=0 // pred_check_branch
    %331 = sbr.rel (0) target = $region25
  $region24: #{_lambda_.12} parent=0 // pred_region
    _
  $region25: #{_lambda_.12} parent=0 // pred_fallthru
    _
  // Predicated region
  $region26: #{_lambda_.12} parent=0 // pred_check
    _
  $region27: #{_lambda_.12} parent=0 // pred_check_branch
    %333 = sbr.rel (0) target = $region29
  $region28: #{_lambda_.12} parent=0 // pred_region
    _
  $region29: #{_lambda_.12} parent=0 // pred_fallthru
    _
  // Predicated region
  $region30: #{_lambda_.12} parent=0 // pred_check
    _
  $region31: #{_lambda_.12} parent=0 // pred_check_branch
    %335 = sbr.rel (0) target = $region33
  $region32: #{_lambda_.12} parent=0 // pred_region
    _
  $region33: #{_lambda_.12} parent=0 // pred_fallthru
    _
  // Predicated region
  $region34: #{_lambda_.12} parent=0 // pred_check
    _
  $region35: #{_lambda_.12} parent=0 // pred_check_branch
    %337 = sbr.rel (0) target = $region37
  $region36: #{_lambda_.12} parent=0 // pred_region
    _
  $region37: #{_lambda_.12} parent=0 // pred_fallthru
    _

// kernel: _lambda_.13
$region0: #{_lambda_.13}
  #allocation0 [shape = 'u32[]', space=smem, size = 0x4, offset = 0x4, fixed_abs, tag = 'smem constant byte address 0x4 - core index']
  #allocation1 [shape = 'u32[144,128]{1,0:T(1,128)}', space=vmem, size = 0x12000, scoped, tag = 'internal scratch']
  %s0 = inlined_call_operand.vmem [shape: f32[128,128], index: 0, kind: input, shape index: {}, may-alias: {0,4}]
  %s1 = inlined_call_operand.vmem [shape: f32[8,128], index: 1, kind: input, shape index: {}]
  %s2 = inlined_call_operand.vmem [shape: f32[8,128], index: 2, kind: input, shape index: {}]
  %s3 = inlined_call_operand.vmem [shape: f32[8,128], index: 3, kind: input, shape index: {}]
  %s4 = inlined_call_operand.vmem [shape: f32[128,128], index: 4, kind: output, shape index: {}, may-alias: {0,4}]
  %s5 = sld [smem:[#allocation0]]
  $region26: #{_lambda_.13} parent=0
    _
  %s7 = ssub.s32 1, %s5
  %s8 = scalar_select 0, %s7, %s5
  // Predicated region
  $region2: #{_lambda_.13} parent=0 // pred_check
    _
  $region3: #{_lambda_.13} parent=0 // pred_check_branch
    %10 = sbr.rel (0) target = $region5
  $region4: #{_lambda_.13} parent=0 // pred_region
    _
  $region5: #{_lambda_.13} parent=0 // pred_fallthru
    _
  // Predicated region
  $region6: #{_lambda_.13} parent=0 // pred_check
    _
  $region7: #{_lambda_.13} parent=0 // pred_check_branch
    %12 = sbr.rel (0) target = $region9
  $region8: #{_lambda_.13} parent=0 // pred_region
    _
  $region9: #{_lambda_.13} parent=0 // pred_fallthru
    _
  // Predicated region
  $region10: #{_lambda_.13} parent=0 // pred_check
    _
  $region11: #{_lambda_.13} parent=0 // pred_check_branch
    %14 = sbr.rel (0) target = $region13
  $region12: #{_lambda_.13} parent=0 // pred_region
    _
  $region13: #{_lambda_.13} parent=0 // pred_fallthru
    _
  // Predicated region
  $region14: #{_lambda_.13} parent=0 // pred_check
    _
  $region15: #{_lambda_.13} parent=0 // pred_check_branch
    %16 = sbr.rel (0) target = $region17
  $region16: #{_lambda_.13} parent=0 // pred_region
    _
  $region17: #{_lambda_.13} parent=0 // pred_fallthru
    _
  %v17 = vld [vmem:[%s1] sm:$0x1]
  %v18 = vmul.f32 %v17, 0.0078125
  %v19 = vld [vmem:[%s2] sm:$0x1]
  %v20 = vmul.f32 %v19, 0.0078125
  %v21 = vmul.f32 %v18, %v18
  %v22 = vsub.f32 %v20, %v21
  %v23 = vmax.f32 %v22, 0.0
  %v24 = vld [vmem:[%s3 + $0x1] sm:$0x1]
  %v25 = vld [vmem:[%s3 + $0x2] sm:$0x1]
  %v26 = vadd.f32 %v23, 1e-05
  %v27 = vrsqrt.pop %v26
  %v28 = vmul.f32 %v24, %v27
  %v29 = vmul.f32 %v18, %v28
  %v30 = vsub.f32 %v25, %v29
  %v31 = vld [vmem:[%s0] sm:$0xff]
  %v32 = vld [vmem:[%s0 + $0x8] sm:$0xff]
  %v33 = vld [vmem:[%s0 + $0x10] sm:$0xff]
  %v34 = vld [vmem:[%s0 + $0x18] sm:$0xff]
  %v35 = vld [vmem:[%s0 + $0x20] sm:$0xff]
  %v36 = vld [vmem:[%s0 + $0x28] sm:$0xff]
  %v37 = vld [vmem:[%s0 + $0x30] sm:$0xff]
  %v38 = vld [vmem:[%s0 + $0x38] sm:$0xff]
  %v39 = vld [vmem:[%s0 + $0x40] sm:$0xff]
  %v40 = vld [vmem:[%s0 + $0x48] sm:$0xff]
  %v41 = vld [vmem:[%s0 + $0x50] sm:$0xff]
  %v42 = vld [vmem:[%s0 + $0x58] sm:$0xff]
  %v43 = vld [vmem:[%s0 + $0x60] sm:$0xff]
  %v44 = vld [vmem:[%s0 + $0x68] sm:$0xff]
  %v45 = vld [vmem:[%s0 + $0x70] sm:$0xff]
  %v46 = vld [vmem:[%s0 + $0x78] sm:$0xff]
  %v47 = vlaneseq
  %v48 = vshrl.u32 %v47, 7
  %v49 = vsub.s32 0, %v48
  %v50 = vrot.slane %v28, %v49
  %v51 = vmul.f32 %v31, %v50
  %v52 = vmul.f32 %v32, %v50
  %v53 = vmul.f32 %v33, %v50
  %v54 = vmul.f32 %v34, %v50
  %v55 = vmul.f32 %v35, %v50
  %v56 = vmul.f32 %v36, %v50
  %v57 = vmul.f32 %v37, %v50
  %v58 = vmul.f32 %v38, %v50
  %v59 = vmul.f32 %v39, %v50
  %v60 = vmul.f32 %v40, %v50
  %v61 = vmul.f32 %v41, %v50
  %v62 = vmul.f32 %v42, %v50
  %v63 = vmul.f32 %v43, %v50
  %v64 = vmul.f32 %v44, %v50
  %v65 = vmul.f32 %v45, %v50
  %v66 = vmul.f32 %v46, %v50
  %v67 = vlaneseq
  %v68 = vshrl.u32 %v67, 7
  %v69 = vsub.s32 0, %v68
  %v70 = vrot.slane %v30, %v69
  %v71 = vadd.f32 %v51, %v70
  %v72 = vadd.f32 %v52, %v70
  %v73 = vadd.f32 %v53, %v70
  %v74 = vadd.f32 %v54, %v70
  %v75 = vadd.f32 %v55, %v70
  %v76 = vadd.f32 %v56, %v70
  %v77 = vadd.f32 %v57, %v70
  %v78 = vadd.f32 %v58, %v70
  %v79 = vadd.f32 %v59, %v70
  %v80 = vadd.f32 %v60, %v70
  %v81 = vadd.f32 %v61, %v70
  %v82 = vadd.f32 %v62, %v70
  %v83 = vadd.f32 %v63, %v70
  %v84 = vadd.f32 %v64, %v70
  %v85 = vadd.f32 %v65, %v70
  %v86 = vadd.f32 %v66, %v70
  %vm87 = vcmp.ge.f32.partialorder %v71, 0.0
  %vm88 = vcmp.ge.f32.partialorder %v72, 0.0
  %vm89 = vcmp.ge.f32.partialorder %v73, 0.0
  %vm90 = vcmp.ge.f32.partialorder %v74, 0.0
  %vm91 = vcmp.ge.f32.partialorder %v75, 0.0
  %vm92 = vcmp.ge.f32.partialorder %v76, 0.0
  %vm93 = vcmp.ge.f32.partialorder %v77, 0.0
  %vm94 = vcmp.ge.f32.partialorder %v78, 0.0
  %vm95 = vcmp.ge.f32.partialorder %v79, 0.0
  %vm96 = vcmp.ge.f32.partialorder %v80, 0.0
  %vm97 = vcmp.ge.f32.partialorder %v81, 0.0
  %vm98 = vcmp.ge.f32.partialorder %v82, 0.0
  %vm99 = vcmp.ge.f32.partialorder %v83, 0.0
  %vm100 = vcmp.ge.f32.partialorder %v84, 0.0
  %vm101 = vcmp.ge.f32.partialorder %v85, 0.0
  %vm102 = vcmp.ge.f32.partialorder %v86, 0.0
  %v103 = vmul.f32 %v71, 0.2
  %v104 = vmul.f32 %v72, 0.2
  %v105 = vmul.f32 %v73, 0.2
  %v106 = vmul.f32 %v74, 0.2
  %v107 = vmul.f32 %v75, 0.2
  %v108 = vmul.f32 %v76, 0.2
  %v109 = vmul.f32 %v77, 0.2
  %v110 = vmul.f32 %v78, 0.2
  %v111 = vmul.f32 %v79, 0.2
  %v112 = vmul.f32 %v80, 0.2
  %v113 = vmul.f32 %v81, 0.2
  %v114 = vmul.f32 %v82, 0.2
  %v115 = vmul.f32 %v83, 0.2
  %v116 = vmul.f32 %v84, 0.2
  %v117 = vmul.f32 %v85, 0.2
  %v118 = vmul.f32 %v86, 0.2
  %v119 = vsel %vm87, %v71, %v103
  %v120 = vsel %vm88, %v72, %v104
  %v121 = vsel %vm89, %v73, %v105
  %v122 = vsel %vm90, %v74, %v106
  %v123 = vsel %vm91, %v75, %v107
  %v124 = vsel %vm92, %v76, %v108
  %v125 = vsel %vm93, %v77, %v109
  %v126 = vsel %vm94, %v78, %v110
  %v127 = vsel %vm95, %v79, %v111
  %v128 = vsel %vm96, %v80, %v112
  %v129 = vsel %vm97, %v81, %v113
  %v130 = vsel %vm98, %v82, %v114
  %v131 = vsel %vm99, %v83, %v115
  %v132 = vsel %vm100, %v84, %v116
  %v133 = vsel %vm101, %v85, %v117
  %v134 = vsel %vm102, %v86, %v118
  %135 = vst [vmem:[%s4] sm:$0xff] %v119
  %136 = vst [vmem:[%s4 + $0x8] sm:$0xff] %v120
  %137 = vst [vmem:[%s4 + $0x10] sm:$0xff] %v121
  %138 = vst [vmem:[%s4 + $0x18] sm:$0xff] %v122
  %139 = vst [vmem:[%s4 + $0x20] sm:$0xff] %v123
  %140 = vst [vmem:[%s4 + $0x28] sm:$0xff] %v124
  %141 = vst [vmem:[%s4 + $0x30] sm:$0xff] %v125
  %142 = vst [vmem:[%s4 + $0x38] sm:$0xff] %v126
  %143 = vst [vmem:[%s4 + $0x40] sm:$0xff] %v127
  %144 = vst [vmem:[%s4 + $0x48] sm:$0xff] %v128
  %145 = vst [vmem:[%s4 + $0x50] sm:$0xff] %v129
  %146 = vst [vmem:[%s4 + $0x58] sm:$0xff] %v130
  %147 = vst [vmem:[%s4 + $0x60] sm:$0xff] %v131
  %148 = vst [vmem:[%s4 + $0x68] sm:$0xff] %v132
  %149 = vst [vmem:[%s4 + $0x70] sm:$0xff] %v133
  %150 = vst [vmem:[%s4 + $0x78] sm:$0xff] %v134
  // Predicated region
  $region18: #{_lambda_.13} parent=0 // pred_check
    _
  $region19: #{_lambda_.13} parent=0 // pred_check_branch
    %152 = sbr.rel (0) target = $region21
  $region20: #{_lambda_.13} parent=0 // pred_region
    _
  $region21: #{_lambda_.13} parent=0 // pred_fallthru
    _
  // Predicated region
  $region22: #{_lambda_.13} parent=0 // pred_check
    _
  $region23: #{_lambda_.13} parent=0 // pred_check_branch
    %154 = sbr.rel (0) target = $region25
  $region24: #{_lambda_.13} parent=0 // pred_region
    _
  $region25: #{_lambda_.13} parent=0 // pred_fallthru
    _

// kernel: _lambda_.15
$region0: #{_lambda_.15}
  #allocation0 [shape = 'u32[]', space=smem, size = 0x4, offset = 0x4, fixed_abs, tag = 'smem constant byte address 0x4 - core index']
  #allocation1 [shape = 'u32[144,128]{1,0:T(1,128)}', space=vmem, size = 0x12000, scoped, tag = 'internal scratch']
  %s0 = inlined_call_operand.vmem [shape: f32[32,128], index: 0, kind: input, shape index: {}, may-alias: {0,4}]
  %s1 = inlined_call_operand.vmem [shape: f32[8,128], index: 1, kind: input, shape index: {}]
  %s2 = inlined_call_operand.vmem [shape: f32[8,128], index: 2, kind: input, shape index: {}]
  %s3 = inlined_call_operand.vmem [shape: f32[8,128], index: 3, kind: input, shape index: {}]
  %s4 = inlined_call_operand.vmem [shape: f32[32,128], index: 4, kind: output, shape index: {}, may-alias: {0,4}]
  %s5 = sld [smem:[#allocation0]]
  $region26: #{_lambda_.15} parent=0
    _
  %s7 = ssub.s32 1, %s5
  %s8 = scalar_select 0, %s7, %s5
  // Predicated region
  $region2: #{_lambda_.15} parent=0 // pred_check
    _
  $region3: #{_lambda_.15} parent=0 // pred_check_branch
    %10 = sbr.rel (0) target = $region5
  $region4: #{_lambda_.15} parent=0 // pred_region
    _
  $region5: #{_lambda_.15} parent=0 // pred_fallthru
    _
  // Predicated region
  $region6: #{_lambda_.15} parent=0 // pred_check
    _
  $region7: #{_lambda_.15} parent=0 // pred_check_branch
    %12 = sbr.rel (0) target = $region9
  $region8: #{_lambda_.15} parent=0 // pred_region
    _
  $region9: #{_lambda_.15} parent=0 // pred_fallthru
    _
  // Predicated region
  $region10: #{_lambda_.15} parent=0 // pred_check
    _
  $region11: #{_lambda_.15} parent=0 // pred_check_branch
    %14 = sbr.rel (0) target = $region13
  $region12: #{_lambda_.15} parent=0 // pred_region
    _
  $region13: #{_lambda_.15} parent=0 // pred_fallthru
    _
  // Predicated region
  $region14: #{_lambda_.15} parent=0 // pred_check
    _
  $region15: #{_lambda_.15} parent=0 // pred_check_branch
    %16 = sbr.rel (0) target = $region17
  $region16: #{_lambda_.15} parent=0 // pred_region
    _
  $region17: #{_lambda_.15} parent=0 // pred_fallthru
    _
  %v17 = vld [vmem:[%s1] sm:$0x1]
  %v18 = vmul.f32 %v17, 0.03125
  %v19 = vld [vmem:[%s2] sm:$0x1]
  %v20 = vmul.f32 %v19, 0.03125
  %v21 = vmul.f32 %v18, %v18
  %v22 = vsub.f32 %v20, %v21
  %v23 = vmax.f32 %v22, 0.0
  %v24 = vld [vmem:[%s3 + $0x1] sm:$0x1]
  %v25 = vld [vmem:[%s3 + $0x2] sm:$0x1]
  %v26 = vadd.f32 %v23, 1e-05
  %v27 = vrsqrt.pop %v26
  %v28 = vmul.f32 %v24, %v27
  %v29 = vmul.f32 %v18, %v28
  %v30 = vsub.f32 %v25, %v29
  %v31 = vld [vmem:[%s0] sm:$0xff]
  %v32 = vld [vmem:[%s0 + $0x8] sm:$0xff]
  %v33 = vld [vmem:[%s0 + $0x10] sm:$0xff]
  %v34 = vld [vmem:[%s0 + $0x18] sm:$0xff]
  %v35 = vlaneseq
  %v36 = vshrl.u32 %v35, 7
  %v37 = vsub.s32 0, %v36
  %v38 = vrot.slane %v28, %v37
  %v39 = vmul.f32 %v31, %v38
  %v40 = vmul.f32 %v32, %v38
  %v41 = vmul.f32 %v33, %v38
  %v42 = vmul.f32 %v34, %v38
  %v43 = vlaneseq
  %v44 = vshrl.u32 %v43, 7
  %v45 = vsub.s32 0, %v44
  %v46 = vrot.slane %v30, %v45
  %v47 = vadd.f32 %v39, %v46
  %v48 = vadd.f32 %v40, %v46
  %v49 = vadd.f32 %v41, %v46
  %v50 = vadd.f32 %v42, %v46
  %vm51 = vcmp.ge.f32.partialorder %v47, 0.0
  %vm52 = vcmp.ge.f32.partialorder %v48, 0.0
  %vm53 = vcmp.ge.f32.partialorder %v49, 0.0
  %vm54 = vcmp.ge.f32.partialorder %v50, 0.0
  %v55 = vmul.f32 %v47, 0.2
  %v56 = vmul.f32 %v48, 0.2
  %v57 = vmul.f32 %v49, 0.2
  %v58 = vmul.f32 %v50, 0.2
  %v59 = vsel %vm51, %v47, %v55
  %v60 = vsel %vm52, %v48, %v56
  %v61 = vsel %vm53, %v49, %v57
  %v62 = vsel %vm54, %v50, %v58
  %63 = vst [vmem:[%s4] sm:$0xff] %v59
  %64 = vst [vmem:[%s4 + $0x8] sm:$0xff] %v60
  %65 = vst [vmem:[%s4 + $0x10] sm:$0xff] %v61
  %66 = vst [vmem:[%s4 + $0x18] sm:$0xff] %v62
  // Predicated region
  $region18: #{_lambda_.15} parent=0 // pred_check
    _
  $region19: #{_lambda_.15} parent=0 // pred_check_branch
    %68 = sbr.rel (0) target = $region21
  $region20: #{_lambda_.15} parent=0 // pred_region
    _
  $region21: #{_lambda_.15} parent=0 // pred_fallthru
    _
  // Predicated region
  $region22: #{_lambda_.15} parent=0 // pred_check
    _
  $region23: #{_lambda_.15} parent=0 // pred_check_branch
    %70 = sbr.rel (0) target = $region25
  $region24: #{_lambda_.15} parent=0 // pred_region
    _
  $region25: #{_lambda_.15} parent=0 // pred_fallthru
    _

// kernel: _lambda_.14
$region0: #{_lambda_.14}
  #allocation0 [shape = 'u32[]', space=smem, size = 0x4, offset = 0x4, fixed_abs, tag = 'smem constant byte address 0x4 - core index']
  #allocation1 [shape = 'u32[144,128]{1,0:T(1,128)}', space=vmem, size = 0x12000, scoped, tag = 'internal scratch']
  %s0 = inlined_call_operand.vmem [shape: bf16[32,256], index: 0, kind: input, shape index: {}]
  %s1 = inlined_call_operand.vmem [shape: bf16[256,128], index: 1, kind: input, shape index: {}]
  %s2 = inlined_call_operand.vmem [shape: f32[32,128], index: 2, kind: output, shape index: {0}]
  %s3 = inlined_call_operand.vmem [shape: f32[8,128], index: 3, kind: output, shape index: {1}]
  %s4 = inlined_call_operand.vmem [shape: f32[8,128], index: 4, kind: output, shape index: {2}]
  %5 = xla_tuple %s2, %s3, %s4
  %s6 = sld [smem:[#allocation0]]
  $region38: #{_lambda_.14} parent=0
    _
  %s8 = ssub.s32 1, %s6
  %s9 = scalar_select 0, %s8, %s6
  // Predicated region
  $region2: #{_lambda_.14} parent=0 // pred_check
    _
  $region3: #{_lambda_.14} parent=0 // pred_check_branch
    %11 = sbr.rel (0) target = $region5
  $region4: #{_lambda_.14} parent=0 // pred_region
    _
  $region5: #{_lambda_.14} parent=0 // pred_fallthru
    _
  // Predicated region
  $region6: #{_lambda_.14} parent=0 // pred_check
    _
  $region7: #{_lambda_.14} parent=0 // pred_check_branch
    %13 = sbr.rel (0) target = $region9
  $region8: #{_lambda_.14} parent=0 // pred_region
    _
  $region9: #{_lambda_.14} parent=0 // pred_fallthru
    _
  %v15 = vld [vmem:[%s0] sm:$0xff]
  %v16 = vld [vmem:[%s0 + $0x8] sm:$0xff]
  %v17 = vld [vmem:[%s0 + $0x10] sm:$0xff]
  %v18 = vld [vmem:[%s0 + $0x18] sm:$0xff]
  %v19 = vld [vmem:[%s1] sm:$0xf]
  %v20 = vld [vmem:[%s1 + $0x4] sm:$0xf]
  %v21 = vld [vmem:[%s1 + $0x8] sm:$0xf]
  %v22 = vld [vmem:[%s1 + $0xc] sm:$0xf]
  %v23 = vld [vmem:[%s1 + $0x10] sm:$0xf]
  %v24 = vld [vmem:[%s1 + $0x14] sm:$0xf]
  %v25 = vld [vmem:[%s1 + $0x18] sm:$0xf]
  %v26 = vld [vmem:[%s1 + $0x1c] sm:$0xf]
  %v27 = vld [vmem:[%s1 + $0x20] sm:$0xf]
  %v28 = vld [vmem:[%s1 + $0x24] sm:$0xf]
  %v29 = vld [vmem:[%s1 + $0x28] sm:$0xf]
  %v30 = vld [vmem:[%s1 + $0x2c] sm:$0xf]
  %v31 = vld [vmem:[%s1 + $0x30] sm:$0xf]
  %v32 = vld [vmem:[%s1 + $0x34] sm:$0xf]
  %v33 = vld [vmem:[%s1 + $0x38] sm:$0xf]
  %v34 = vld [vmem:[%s1 + $0x3c] sm:$0xf]
  %v35 = vld [vmem:[%s1 + $0x40] sm:$0xf]
  %v36 = vld [vmem:[%s1 + $0x44] sm:$0xf]
  %v37 = vld [vmem:[%s1 + $0x48] sm:$0xf]
  %v38 = vld [vmem:[%s1 + $0x4c] sm:$0xf]
  %v39 = vld [vmem:[%s1 + $0x50] sm:$0xf]
  %v40 = vld [vmem:[%s1 + $0x54] sm:$0xf]
  %v41 = vld [vmem:[%s1 + $0x58] sm:$0xf]
  %v42 = vld [vmem:[%s1 + $0x5c] sm:$0xf]
  %v43 = vld [vmem:[%s1 + $0x60] sm:$0xf]
  %v44 = vld [vmem:[%s1 + $0x64] sm:$0xf]
  %v45 = vld [vmem:[%s1 + $0x68] sm:$0xf]
  %v46 = vld [vmem:[%s1 + $0x6c] sm:$0xf]
  %v47 = vld [vmem:[%s1 + $0x70] sm:$0xf]
  %v48 = vld [vmem:[%s1 + $0x74] sm:$0xf]
  %v49 = vld [vmem:[%s1 + $0x78] sm:$0xf]
  %v50 = vld [vmem:[%s1 + $0x7c] sm:$0xf]
  %v55 = vunpack.c.l.b16 %v15
  %v56 = vunpack.c.h.b16 %v15
  %v57 = vunpack.c.l.b16 %v16
  %v58 = vunpack.c.h.b16 %v16
  %v59 = vunpack.c.l.b16 %v17
  %v60 = vunpack.c.h.b16 %v17
  %v61 = vunpack.c.l.b16 %v18
  %v62 = vunpack.c.h.b16 %v18
  %v63 = vpack.c.b16 %v57, %v55
  %v64 = vpack.c.b16 %v58, %v56
  %v65 = vpack.c.b16 %v61, %v59
  %v66 = vpack.c.b16 %v62, %v60
  %v103 = vunpack.c.l.b16 %v19
  %v104 = vunpack.c.l.b16 %v20
  %v105 = vunpack.c.l.b16 %v21
  %v106 = vunpack.c.l.b16 %v22
  %v107 = vunpack.c.l.b16 %v23
  %v108 = vunpack.c.l.b16 %v24
  %v109 = vunpack.c.l.b16 %v25
  %v110 = vunpack.c.l.b16 %v26
  %v111 = vunpack.c.l.b16 %v27
  %v112 = vunpack.c.l.b16 %v28
  %v113 = vunpack.c.l.b16 %v29
  %v114 = vunpack.c.l.b16 %v30
  %v115 = vunpack.c.l.b16 %v31
  %v116 = vunpack.c.l.b16 %v32
  %v117 = vunpack.c.l.b16 %v33
  %v118 = vunpack.c.l.b16 %v34
  %v119 = vunpack.c.l.b16 %v35
  %v120 = vunpack.c.l.b16 %v36
  %v121 = vunpack.c.l.b16 %v37
  %v122 = vunpack.c.l.b16 %v38
  %v123 = vunpack.c.l.b16 %v39
  %v124 = vunpack.c.l.b16 %v40
  %v125 = vunpack.c.l.b16 %v41
  %v126 = vunpack.c.l.b16 %v42
  %v127 = vunpack.c.l.b16 %v43
  %v128 = vunpack.c.l.b16 %v44
  %v129 = vunpack.c.l.b16 %v45
  %v130 = vunpack.c.l.b16 %v46
  %v131 = vunpack.c.l.b16 %v47
  %v132 = vunpack.c.l.b16 %v48
  %v133 = vunpack.c.l.b16 %v49
  %v134 = vunpack.c.l.b16 %v50
  %v135 = vpack.c.b16 %v104, %v103
  %v136 = vpack.c.b16 %v106, %v105
  %v137 = vpack.c.b16 %v108, %v107
  %v138 = vpack.c.b16 %v110, %v109
  %v139 = vpack.c.b16 %v112, %v111
  %v140 = vpack.c.b16 %v114, %v113
  %v141 = vpack.c.b16 %v116, %v115
  %v142 = vpack.c.b16 %v118, %v117
  %v143 = vpack.c.b16 %v120, %v119
  %v144 = vpack.c.b16 %v122, %v121
  %v145 = vpack.c.b16 %v124, %v123
  %v146 = vpack.c.b16 %v126, %v125
  %v147 = vpack.c.b16 %v128, %v127
  %v148 = vpack.c.b16 %v130, %v129
  %v149 = vpack.c.b16 %v132, %v131
  %v150 = vpack.c.b16 %v134, %v133
  %167 = vmatprep.subr.bf16.mxu0 0
  %168 = vmatpush1.bf16.msra.mxu0 %v135
  %169 = vmatprep.subr.bf16.mxu0 0
  %170 = vmatpush1.bf16.msra.mxu0 %v136
  %171 = vmatprep.subr.bf16.mxu0 0
  %172 = vmatpush1.bf16.msra.mxu0 %v137
  %173 = vmatprep.subr.bf16.mxu0 0
  %174 = vmatpush1.bf16.msra.mxu0 %v138
  %175 = vmatprep.subr.bf16.mxu0 0
  %176 = vmatpush1.bf16.msra.mxu0 %v139
  %177 = vmatprep.subr.bf16.mxu0 0
  %178 = vmatpush1.bf16.msra.mxu0 %v140
  %179 = vmatprep.subr.bf16.mxu0 0
  %180 = vmatpush1.bf16.msra.mxu0 %v141
  %181 = vmatprep.subr.bf16.mxu0 0
  %182 = vmatpush1.bf16.msra.mxu0 %v142
  %183 = vmatprep.subr.bf16.mxu0 0
  %184 = vmatpush1.bf16.msra.mxu0 %v143
  %185 = vmatprep.subr.bf16.mxu0 0
  %186 = vmatpush1.bf16.msra.mxu0 %v144
  %187 = vmatprep.subr.bf16.mxu0 0
  %188 = vmatpush1.bf16.msra.mxu0 %v145
  %189 = vmatprep.subr.bf16.mxu0 0
  %190 = vmatpush1.bf16.msra.mxu0 %v146
  %191 = vmatprep.subr.bf16.mxu0 0
  %192 = vmatpush1.bf16.msra.mxu0 %v147
  %193 = vmatprep.subr.bf16.mxu0 0
  %194 = vmatpush1.bf16.msra.mxu0 %v148
  %195 = vmatprep.subr.bf16.mxu0 0
  %196 = vmatpush1.bf16.msra.mxu0 %v149
  %197 = vmatprep.subr.bf16.mxu0 0
  %198 = vmatpush1.bf16.msra.mxu0 %v150
  %199 = vmatprep.mubr.bf16.mxu0 %v64
  %200 = vmatmul.mubr.bf16.gmra.mrb[0].mxu0 %v63
  %v201 = vpop.f32.mrb[0].mxu0
  %v202 = vadd.f32 0.0, %v201
  %v203 = vpop.f32.mrb[0].mxu0
  %v204 = vpop.f32.mrb[0].mxu0
  %v205 = vadd.f32 0.0, %v204
  %v206 = vpop.f32.mrb[0].mxu0
  %207 = vmatprep.mubr.bf16.mxu0 %v66
  %208 = vmatmul.mubr.bf16.gmra.mrb[0].mxu0 %v65
  %v209 = vpop.f32.mrb[0].mxu0
  %v210 = vadd.f32 0.0, %v209
  %v211 = vpop.f32.mrb[0].mxu0
  %v212 = vpop.f32.mrb[0].mxu0
  %v213 = vadd.f32 0.0, %v212
  %v214 = vpop.f32.mrb[0].mxu0
  %215 = vdwg.mxu0
  %216 = vst [vmem:[%s2] sm:$0xff] %v202
  %217 = vst [vmem:[%s2 + $0x8] sm:$0xff] %v205
  %218 = vst [vmem:[%s2 + $0x10] sm:$0xff] %v210
  %219 = vst [vmem:[%s2 + $0x18] sm:$0xff] %v213
  %p220 = scmp.eq.s32.totalorder 0, 0
  // Predicated region
  $region10: #{_lambda_.14} parent=0 // pred_check
    %p221 = pneg %p220
  $region11: #{_lambda_.14} parent=0 // pred_check_branch
    %223 = sbr.rel (%p221) target = $region13
  $region12: #{_lambda_.14} parent=0 // pred_region
    %224 = vst [vmem:[%s3] sm:$0xff] 0.0
    %225 = vst [vmem:[%s4] sm:$0xff] 0.0
  $region13: #{_lambda_.14} parent=0 // pred_fallthru
    _
  %v226 = vadd.f32 %v202, %v205
  %v227 = vadd.f32 %v226, %v210
  %v228 = vadd.f32 %v227, %v213
  %v229 = vrot.slane %v228, 4
  %v230 = vadd.f32 %v228, %v229
  %v231 = vrot.slane %v230, 2
  %v232 = vadd.f32 %v230, %v231
  %v233 = vrot.slane %v232, 1
  %v234 = vadd.f32 %v232, %v233
  %v235 = vmul.f32 %v202, %v202
  %v236 = vmul.f32 %v205, %v205
  %v237 = vmul.f32 %v210, %v210
  %v238 = vmul.f32 %v213, %v213
  %v239 = vadd.f32 %v235, %v236
  %v240 = vadd.f32 %v239, %v237
  %v241 = vadd.f32 %v240, %v238
  %v242 = vrot.slane %v241, 4
  %v243 = vadd.f32 %v241, %v242
  %v244 = vrot.slane %v243, 2
  %v245 = vadd.f32 %v243, %v244
  %v246 = vrot.slane %v245, 1
  %v247 = vadd.f32 %v245, %v246
  %v248 = vld [vmem:[%s3] sm:$0xff]
  %v249 = vadd.f32 %v248, %v234
  %250 = vst [vmem:[%s3] sm:$0xff] %v249
  %v251 = vld [vmem:[%s4] sm:$0xff]
  %v252 = vadd.f32 %v251, %v247
  %253 = vst [vmem:[%s4] sm:$0xff] %v252
  // Predicated region
  $region14: #{_lambda_.14} parent=0 // pred_check
    _
  $region15: #{_lambda_.14} parent=0 // pred_check_branch
    %255 = sbr.rel (0) target = $region17
  $region16: #{_lambda_.14} parent=0 // pred_region
    _
  $region17: #{_lambda_.14} parent=0 // pred_fallthru
    _
  // Predicated region
  $region18: #{_lambda_.14} parent=0 // pred_check
    _
  $region19: #{_lambda_.14} parent=0 // pred_check_branch
    %257 = sbr.rel (0) target = $region21
  $region20: #{_lambda_.14} parent=0 // pred_region
    _
  $region21: #{_lambda_.14} parent=0 // pred_fallthru
    _
  // Predicated region
  $region22: #{_lambda_.14} parent=0 // pred_check
    _
  $region23: #{_lambda_.14} parent=0 // pred_check_branch
    %259 = sbr.rel (0) target = $region25
  $region24: #{_lambda_.14} parent=0 // pred_region
    _
  $region25: #{_lambda_.14} parent=0 // pred_fallthru
    _
  // Predicated region
  $region26: #{_lambda_.14} parent=0 // pred_check
    _
  $region27: #{_lambda_.14} parent=0 // pred_check_branch
    %261 = sbr.rel (0) target = $region29
  $region28: #{_lambda_.14} parent=0 // pred_region
    _
  $region29: #{_lambda_.14} parent=0 // pred_fallthru
    _
  // Predicated region
  $region30: #{_lambda_.14} parent=0 // pred_check
    _
  $region31: #{_lambda_.14} parent=0 // pred_check_branch
    %263 = sbr.rel (0) target = $region33
  $region32: #{_lambda_.14} parent=0 // pred_region
    _
  $region33: #{_lambda_.14} parent=0 // pred_fallthru
    _
  // Predicated region
  $region34: #{_lambda_.14} parent=0 // pred_check
    _
  $region35: #{_lambda_.14} parent=0 // pred_check_branch
    %265 = sbr.rel (0) target = $region37
  $region36: #{_lambda_.14} parent=0 // pred_region
    _
  $region37: #{_lambda_.14} parent=0 // pred_fallthru
    _

// kernel: _lambda_.16
$region0: #{_lambda_.16}
  #allocation0 [shape = 'u32[]', space=smem, size = 0x4, offset = 0x4, fixed_abs, tag = 'smem constant byte address 0x4 - core index']
  #allocation1 [shape = 'u32[144,128]{1,0:T(1,128)}', space=vmem, size = 0x12000, scoped, tag = 'internal scratch']
  %s0 = inlined_call_operand.vmem [shape: bf16[24,512], index: 0, kind: input, shape index: {}]
  %s1 = inlined_call_operand.vmem [shape: bf16[512,128], index: 1, kind: input, shape index: {}]
  %s2 = inlined_call_operand.vmem [shape: f32[24,128], index: 2, kind: output, shape index: {0}]
  %s3 = inlined_call_operand.vmem [shape: f32[8,128], index: 3, kind: output, shape index: {1}]
  %s4 = inlined_call_operand.vmem [shape: f32[8,128], index: 4, kind: output, shape index: {2}]
  %5 = xla_tuple %s2, %s3, %s4
  %s6 = sld [smem:[#allocation0]]
  $region38: #{_lambda_.16} parent=0
    _
  %s8 = ssub.s32 1, %s6
  %s9 = scalar_select 0, %s8, %s6
  // Predicated region
  $region2: #{_lambda_.16} parent=0 // pred_check
    _
  $region3: #{_lambda_.16} parent=0 // pred_check_branch
    %11 = sbr.rel (0) target = $region5
  $region4: #{_lambda_.16} parent=0 // pred_region
    _
  $region5: #{_lambda_.16} parent=0 // pred_fallthru
    _
  // Predicated region
  $region6: #{_lambda_.16} parent=0 // pred_check
    _
  $region7: #{_lambda_.16} parent=0 // pred_check_branch
    %13 = sbr.rel (0) target = $region9
  $region8: #{_lambda_.16} parent=0 // pred_region
    _
  $region9: #{_lambda_.16} parent=0 // pred_fallthru
    _
  %v15 = vld [vmem:[%s0] sm:$0xff]
  %v16 = vld [vmem:[%s0 + $0x8] sm:$0xff]
  %v17 = vld [vmem:[%s0 + $0x10] sm:$0xff]
  %v18 = vld [vmem:[%s0 + $0x18] sm:$0xff]
  %v19 = vld [vmem:[%s0 + $0x20] sm:$0xff]
  %v20 = vld [vmem:[%s0 + $0x28] sm:$0xff]
  %v21 = vld [vmem:[%s1] sm:$0xf]
  %v22 = vld [vmem:[%s1 + $0x4] sm:$0xf]
  %v23 = vld [vmem:[%s1 + $0x8] sm:$0xf]
  %v24 = vld [vmem:[%s1 + $0xc] sm:$0xf]
  %v25 = vld [vmem:[%s1 + $0x10] sm:$0xf]
  %v26 = vld [vmem:[%s1 + $0x14] sm:$0xf]
  %v27 = vld [vmem:[%s1 + $0x18] sm:$0xf]
  %v28 = vld [vmem:[%s1 + $0x1c] sm:$0xf]
  %v29 = vld [vmem:[%s1 + $0x20] sm:$0xf]
  %v30 = vld [vmem:[%s1 + $0x24] sm:$0xf]
  %v31 = vld [vmem:[%s1 + $0x28] sm:$0xf]
  %v32 = vld [vmem:[%s1 + $0x2c] sm:$0xf]
  %v33 = vld [vmem:[%s1 + $0x30] sm:$0xf]
  %v34 = vld [vmem:[%s1 + $0x34] sm:$0xf]
  %v35 = vld [vmem:[%s1 + $0x38] sm:$0xf]
  %v36 = vld [vmem:[%s1 + $0x3c] sm:$0xf]
  %v37 = vld [vmem:[%s1 + $0x40] sm:$0xf]
  %v38 = vld [vmem:[%s1 + $0x44] sm:$0xf]
  %v39 = vld [vmem:[%s1 + $0x48] sm:$0xf]
  %v40 = vld [vmem:[%s1 + $0x4c] sm:$0xf]
  %v41 = vld [vmem:[%s1 + $0x50] sm:$0xf]
  %v42 = vld [vmem:[%s1 + $0x54] sm:$0xf]
  %v43 = vld [vmem:[%s1 + $0x58] sm:$0xf]
  %v44 = vld [vmem:[%s1 + $0x5c] sm:$0xf]
  %v45 = vld [vmem:[%s1 + $0x60] sm:$0xf]
  %v46 = vld [vmem:[%s1 + $0x64] sm:$0xf]
  %v47 = vld [vmem:[%s1 + $0x68] sm:$0xf]
  %v48 = vld [vmem:[%s1 + $0x6c] sm:$0xf]
  %v49 = vld [vmem:[%s1 + $0x70] sm:$0xf]
  %v50 = vld [vmem:[%s1 + $0x74] sm:$0xf]
  %v51 = vld [vmem:[%s1 + $0x78] sm:$0xf]
  %v52 = vld [vmem:[%s1 + $0x7c] sm:$0xf]
  %v53 = vld [vmem:[%s1 + $0x80] sm:$0xf]
  %v54 = vld [vmem:[%s1 + $0x84] sm:$0xf]
  %v55 = vld [vmem:[%s1 + $0x88] sm:$0xf]
  %v56 = vld [vmem:[%s1 + $0x8c] sm:$0xf]
  %v57 = vld [vmem:[%s1 + $0x90] sm:$0xf]
  %v58 = vld [vmem:[%s1 + $0x94] sm:$0xf]
  %v59 = vld [vmem:[%s1 + $0x98] sm:$0xf]
  %v60 = vld [vmem:[%s1 + $0x9c] sm:$0xf]
  %v61 = vld [vmem:[%s1 + $0xa0] sm:$0xf]
  %v62 = vld [vmem:[%s1 + $0xa4] sm:$0xf]
  %v63 = vld [vmem:[%s1 + $0xa8] sm:$0xf]
  %v64 = vld [vmem:[%s1 + $0xac] sm:$0xf]
  %v65 = vld [vmem:[%s1 + $0xb0] sm:$0xf]
  %v66 = vld [vmem:[%s1 + $0xb4] sm:$0xf]
  %v67 = vld [vmem:[%s1 + $0xb8] sm:$0xf]
  %v68 = vld [vmem:[%s1 + $0xbc] sm:$0xf]
  %v69 = vld [vmem:[%s1 + $0xc0] sm:$0xf]
  %v70 = vld [vmem:[%s1 + $0xc4] sm:$0xf]
  %v71 = vld [vmem:[%s1 + $0xc8] sm:$0xf]
  %v72 = vld [vmem:[%s1 + $0xcc] sm:$0xf]
  %v73 = vld [vmem:[%s1 + $0xd0] sm:$0xf]
  %v74 = vld [vmem:[%s1 + $0xd4] sm:$0xf]
  %v75 = vld [vmem:[%s1 + $0xd8] sm:$0xf]
  %v76 = vld [vmem:[%s1 + $0xdc] sm:$0xf]
  %v77 = vld [vmem:[%s1 + $0xe0] sm:$0xf]
  %v78 = vld [vmem:[%s1 + $0xe4] sm:$0xf]
  %v79 = vld [vmem:[%s1 + $0xe8] sm:$0xf]
  %v80 = vld [vmem:[%s1 + $0xec] sm:$0xf]
  %v81 = vld [vmem:[%s1 + $0xf0] sm:$0xf]
  %v82 = vld [vmem:[%s1 + $0xf4] sm:$0xf]
  %v83 = vld [vmem:[%s1 + $0xf8] sm:$0xf]
  %v84 = vld [vmem:[%s1 + $0xfc] sm:$0xf]
  %v91 = vunpack.c.l.b16 %v15
  %v92 = vunpack.c.h.b16 %v15
  %v93 = vunpack.c.l.b16 %v16
  %v94 = vunpack.c.h.b16 %v16
  %v95 = vunpack.c.l.b16 %v17
  %v96 = vunpack.c.h.b16 %v17
  %v97 = vunpack.c.l.b16 %v18
  %v98 = vunpack.c.h.b16 %v18
  %v99 = vunpack.c.l.b16 %v19
  %v100 = vunpack.c.h.b16 %v19
  %v101 = vunpack.c.l.b16 %v20
  %v102 = vunpack.c.h.b16 %v20
  %v103 = vpack.c.b16 %v95, %v91
  %v104 = vpack.c.b16 %v96, %v92
  %v105 = vpack.c.b16 %v97, %v93
  %v106 = vpack.c.b16 %v98, %v94
  %v107 = vpack.c.b16 %v99, %v99
  %v108 = vpack.c.b16 %v100, %v100
  %v109 = vpack.c.b16 %v101, %v101
  %v110 = vpack.c.b16 %v102, %v102
  %v183 = vunpack.c.l.b16 %v21
  %v184 = vunpack.c.l.b16 %v22
  %v185 = vunpack.c.l.b16 %v23
  %v186 = vunpack.c.l.b16 %v24
  %v187 = vunpack.c.l.b16 %v25
  %v188 = vunpack.c.l.b16 %v26
  %v189 = vunpack.c.l.b16 %v27
  %v190 = vunpack.c.l.b16 %v28
  %v191 = vunpack.c.l.b16 %v29
  %v192 = vunpack.c.l.b16 %v30
  %v193 = vunpack.c.l.b16 %v31
  %v194 = vunpack.c.l.b16 %v32
  %v195 = vunpack.c.l.b16 %v33
  %v196 = vunpack.c.l.b16 %v34
  %v197 = vunpack.c.l.b16 %v35
  %v198 = vunpack.c.l.b16 %v36
  %v199 = vunpack.c.l.b16 %v37
  %v200 = vunpack.c.l.b16 %v38
  %v201 = vunpack.c.l.b16 %v39
  %v202 = vunpack.c.l.b16 %v40
  %v203 = vunpack.c.l.b16 %v41
  %v204 = vunpack.c.l.b16 %v42
  %v205 = vunpack.c.l.b16 %v43
  %v206 = vunpack.c.l.b16 %v44
  %v207 = vunpack.c.l.b16 %v45
  %v208 = vunpack.c.l.b16 %v46
  %v209 = vunpack.c.l.b16 %v47
  %v210 = vunpack.c.l.b16 %v48
  %v211 = vunpack.c.l.b16 %v49
  %v212 = vunpack.c.l.b16 %v50
  %v213 = vunpack.c.l.b16 %v51
  %v214 = vunpack.c.l.b16 %v52
  %v215 = vunpack.c.l.b16 %v53
  %v216 = vunpack.c.l.b16 %v54
  %v217 = vunpack.c.l.b16 %v55
  %v218 = vunpack.c.l.b16 %v56
  %v219 = vunpack.c.l.b16 %v57
  %v220 = vunpack.c.l.b16 %v58
  %v221 = vunpack.c.l.b16 %v59
  %v222 = vunpack.c.l.b16 %v60
  %v223 = vunpack.c.l.b16 %v61
  %v224 = vunpack.c.l.b16 %v62
  %v225 = vunpack.c.l.b16 %v63
  %v226 = vunpack.c.l.b16 %v64
  %v227 = vunpack.c.l.b16 %v65
  %v228 = vunpack.c.l.b16 %v66
  %v229 = vunpack.c.l.b16 %v67
  %v230 = vunpack.c.l.b16 %v68
  %v231 = vunpack.c.l.b16 %v69
  %v232 = vunpack.c.l.b16 %v70
  %v233 = vunpack.c.l.b16 %v71
  %v234 = vunpack.c.l.b16 %v72
  %v235 = vunpack.c.l.b16 %v73
  %v236 = vunpack.c.l.b16 %v74
  %v237 = vunpack.c.l.b16 %v75
  %v238 = vunpack.c.l.b16 %v76
  %v239 = vunpack.c.l.b16 %v77
  %v240 = vunpack.c.l.b16 %v78
  %v241 = vunpack.c.l.b16 %v79
  %v242 = vunpack.c.l.b16 %v80
  %v243 = vunpack.c.l.b16 %v81
  %v244 = vunpack.c.l.b16 %v82
  %v245 = vunpack.c.l.b16 %v83
  %v246 = vunpack.c.l.b16 %v84
  %v247 = vpack.c.b16 %v184, %v183
  %v248 = vpack.c.b16 %v186, %v185
  %v249 = vpack.c.b16 %v188, %v187
  %v250 = vpack.c.b16 %v190, %v189
  %v251 = vpack.c.b16 %v192, %v191
  %v252 = vpack.c.b16 %v194, %v193
  %v253 = vpack.c.b16 %v196, %v195
  %v254 = vpack.c.b16 %v198, %v197
  %v255 = vpack.c.b16 %v200, %v199
  %v256 = vpack.c.b16 %v202, %v201
  %v257 = vpack.c.b16 %v204, %v203
  %v258 = vpack.c.b16 %v206, %v205
  %v259 = vpack.c.b16 %v208, %v207
  %v260 = vpack.c.b16 %v210, %v209
  %v261 = vpack.c.b16 %v212, %v211
  %v262 = vpack.c.b16 %v214, %v213
  %v263 = vpack.c.b16 %v216, %v215
  %v264 = vpack.c.b16 %v218, %v217
  %v265 = vpack.c.b16 %v220, %v219
  %v266 = vpack.c.b16 %v222, %v221
  %v267 = vpack.c.b16 %v224, %v223
  %v268 = vpack.c.b16 %v226, %v225
  %v269 = vpack.c.b16 %v228, %v227
  %v270 = vpack.c.b16 %v230, %v229
  %v271 = vpack.c.b16 %v232, %v231
  %v272 = vpack.c.b16 %v234, %v233
  %v273 = vpack.c.b16 %v236, %v235
  %v274 = vpack.c.b16 %v238, %v237
  %v275 = vpack.c.b16 %v240, %v239
  %v276 = vpack.c.b16 %v242, %v241
  %v277 = vpack.c.b16 %v244, %v243
  %v278 = vpack.c.b16 %v246, %v245
  %311 = vmatprep.subr.bf16.mxu0 0
  %312 = vmatpush1.bf16.msra.mxu0 %v247
  %313 = vmatprep.subr.bf16.mxu0 0
  %314 = vmatpush1.bf16.msra.mxu0 %v248
  %315 = vmatprep.subr.bf16.mxu0 0
  %316 = vmatpush1.bf16.msra.mxu0 %v249
  %317 = vmatprep.subr.bf16.mxu0 0
  %318 = vmatpush1.bf16.msra.mxu0 %v250
  %319 = vmatprep.subr.bf16.mxu0 0
  %320 = vmatpush1.bf16.msra.mxu0 %v251
  %321 = vmatprep.subr.bf16.mxu0 0
  %322 = vmatpush1.bf16.msra.mxu0 %v252
  %323 = vmatprep.subr.bf16.mxu0 0
  %324 = vmatpush1.bf16.msra.mxu0 %v253
  %325 = vmatprep.subr.bf16.mxu0 0
  %326 = vmatpush1.bf16.msra.mxu0 %v254
  %327 = vmatprep.subr.bf16.mxu0 0
  %328 = vmatpush1.bf16.msra.mxu0 %v255
  %329 = vmatprep.subr.bf16.mxu0 0
  %330 = vmatpush1.bf16.msra.mxu0 %v256
  %331 = vmatprep.subr.bf16.mxu0 0
  %332 = vmatpush1.bf16.msra.mxu0 %v257
  %333 = vmatprep.subr.bf16.mxu0 0
  %334 = vmatpush1.bf16.msra.mxu0 %v258
  %335 = vmatprep.subr.bf16.mxu0 0
  %336 = vmatpush1.bf16.msra.mxu0 %v259
  %337 = vmatprep.subr.bf16.mxu0 0
  %338 = vmatpush1.bf16.msra.mxu0 %v260
  %339 = vmatprep.subr.bf16.mxu0 0
  %340 = vmatpush1.bf16.msra.mxu0 %v261
  %341 = vmatprep.subr.bf16.mxu0 0
  %342 = vmatpush1.bf16.msra.mxu0 %v262
  %343 = vmatprep.mubr.bf16.mxu0 %v104
  %344 = vmatmul.mubr.bf16.gmra.mrb[0].mxu0 %v103
  %v345 = vpop.f32.mrb[0].mxu0
  %v346 = vadd.f32 0.0, %v345
  %v347 = vpop.f32.mrb[0].mxu0
  %v348 = vpop.f32.mrb[0].mxu0
  %v349 = vadd.f32 0.0, %v348
  %v350 = vpop.f32.mrb[0].mxu0
  %351 = vmatprep.mubr.bf16.mxu0 %v108
  %352 = vmatmul.mubr.bf16.gmra.mrb[0].mxu0 %v107
  %v353 = vpop.f32.mrb[0].mxu0
  %v354 = vadd.f32 0.0, %v353
  %v355 = vpop.f32.mrb[0].mxu0
  %v356 = vpop.f32.mrb[0].mxu0
  %v357 = vpop.f32.mrb[0].mxu0
  %358 = vdwg.mxu0
  %359 = vmatprep.subr.bf16.mxu0 0
  %360 = vmatpush1.bf16.msra.mxu0 %v263
  %361 = vmatprep.subr.bf16.mxu0 0
  %362 = vmatpush1.bf16.msra.mxu0 %v264
  %363 = vmatprep.subr.bf16.mxu0 0
  %364 = vmatpush1.bf16.msra.mxu0 %v265
  %365 = vmatprep.subr.bf16.mxu0 0
  %366 = vmatpush1.bf16.msra.mxu0 %v266
  %367 = vmatprep.subr.bf16.mxu0 0
  %368 = vmatpush1.bf16.msra.mxu0 %v267
  %369 = vmatprep.subr.bf16.mxu0 0
  %370 = vmatpush1.bf16.msra.mxu0 %v268
  %371 = vmatprep.subr.bf16.mxu0 0
  %372 = vmatpush1.bf16.msra.mxu0 %v269
  %373 = vmatprep.subr.bf16.mxu0 0
  %374 = vmatpush1.bf16.msra.mxu0 %v270
  %375 = vmatprep.subr.bf16.mxu0 0
  %376 = vmatpush1.bf16.msra.mxu0 %v271
  %377 = vmatprep.subr.bf16.mxu0 0
  %378 = vmatpush1.bf16.msra.mxu0 %v272
  %379 = vmatprep.subr.bf16.mxu0 0
  %380 = vmatpush1.bf16.msra.mxu0 %v273
  %381 = vmatprep.subr.bf16.mxu0 0
  %382 = vmatpush1.bf16.msra.mxu0 %v274
  %383 = vmatprep.subr.bf16.mxu0 0
  %384 = vmatpush1.bf16.msra.mxu0 %v275
  %385 = vmatprep.subr.bf16.mxu0 0
  %386 = vmatpush1.bf16.msra.mxu0 %v276
  %387 = vmatprep.subr.bf16.mxu0 0
  %388 = vmatpush1.bf16.msra.mxu0 %v277
  %389 = vmatprep.subr.bf16.mxu0 0
  %390 = vmatpush1.bf16.msra.mxu0 %v278
  %391 = vmatprep.mubr.bf16.mxu0 %v106
  %392 = vmatmul.mubr.bf16.gmra.mrb[0].mxu0 %v105
  %v393 = vpop.f32.mrb[0].mxu0
  %v394 = vadd.f32 %v346, %v393
  %v395 = vpop.f32.mrb[0].mxu0
  %v396 = vpop.f32.mrb[0].mxu0
  %v397 = vadd.f32 %v349, %v396
  %v398 = vpop.f32.mrb[0].mxu0
  %399 = vmatprep.mubr.bf16.mxu0 %v110
  %400 = vmatmul.mubr.bf16.gmra.mrb[0].mxu0 %v109
  %v401 = vpop.f32.mrb[0].mxu0
  %v402 = vadd.f32 %v354, %v401
  %v403 = vpop.f32.mrb[0].mxu0
  %v404 = vpop.f32.mrb[0].mxu0
  %v405 = vpop.f32.mrb[0].mxu0
  %406 = vdwg.mxu0
  %407 = vst [vmem:[%s2] sm:$0xff] %v394
  %408 = vst [vmem:[%s2 + $0x8] sm:$0xff] %v397
  %409 = vst [vmem:[%s2 + $0x10] sm:$0xff] %v402
  %p410 = scmp.eq.s32.totalorder 0, 0
  // Predicated region
  $region10: #{_lambda_.16} parent=0 // pred_check
    %p411 = pneg %p410
  $region11: #{_lambda_.16} parent=0 // pred_check_branch
    %413 = sbr.rel (%p411) target = $region13
  $region12: #{_lambda_.16} parent=0 // pred_region
    %414 = vst [vmem:[%s3] sm:$0xff] 0.0
    %415 = vst [vmem:[%s4] sm:$0xff] 0.0
  $region13: #{_lambda_.16} parent=0 // pred_fallthru
    _
  %v416 = vadd.f32 %v394, %v397
  %v417 = vadd.f32 %v416, %v402
  %v418 = vrot.slane %v417, 4
  %v419 = vadd.f32 %v417, %v418
  %v420 = vrot.slane %v419, 2
  %v421 = vadd.f32 %v419, %v420
  %v422 = vrot.slane %v421, 1
  %v423 = vadd.f32 %v421, %v422
  %v424 = vmul.f32 %v394, %v394
  %v425 = vmul.f32 %v397, %v397
  %v426 = vmul.f32 %v402, %v402
  %v427 = vadd.f32 %v424, %v425
  %v428 = vadd.f32 %v427, %v426
  %v429 = vrot.slane %v428, 4
  %v430 = vadd.f32 %v428, %v429
  %v431 = vrot.slane %v430, 2
  %v432 = vadd.f32 %v430, %v431
  %v433 = vrot.slane %v432, 1
  %v434 = vadd.f32 %v432, %v433
  %v435 = vld [vmem:[%s3] sm:$0xff]
  %v436 = vadd.f32 %v435, %v423
  %437 = vst [vmem:[%s3] sm:$0xff] %v436
  %v438 = vld [vmem:[%s4] sm:$0xff]
  %v439 = vadd.f32 %v438, %v434
  %440 = vst [vmem:[%s4] sm:$0xff] %v439
  // Predicated region
  $region14: #{_lambda_.16} parent=0 // pred_check
    _
  $region15: #{_lambda_.16} parent=0 // pred_check_branch
    %442 = sbr.rel (0) target = $region17
  $region16: #{_lambda_.16} parent=0 // pred_region
    _
  $region17: #{_lambda_.16} parent=0 // pred_fallthru
    _
  // Predicated region
  $region18: #{_lambda_.16} parent=0 // pred_check
    _
  $region19: #{_lambda_.16} parent=0 // pred_check_branch
    %444 = sbr.rel (0) target = $region21
  $region20: #{_lambda_.16} parent=0 // pred_region
    _
  $region21: #{_lambda_.16} parent=0 // pred_fallthru
    _
  // Predicated region
  $region22: #{_lambda_.16} parent=0 // pred_check
    _
  $region23: #{_lambda_.16} parent=0 // pred_check_branch
    %446 = sbr.rel (0) target = $region25
  $region24: #{_lambda_.16} parent=0 // pred_region
    _
  $region25: #{_lambda_.16} parent=0 // pred_fallthru
    _
  // Predicated region
  $region26: #{_lambda_.16} parent=0 // pred_check
    _
  $region27: #{_lambda_.16} parent=0 // pred_check_branch
    %448 = sbr.rel (0) target = $region29
  $region28: #{_lambda_.16} parent=0 // pred_region
    _
  $region29: #{_lambda_.16} parent=0 // pred_fallthru
    _
  // Predicated region
  $region30: #{_lambda_.16} parent=0 // pred_check
    _
  $region31: #{_lambda_.16} parent=0 // pred_check_branch
    %450 = sbr.rel (0) target = $region33
  $region32: #{_lambda_.16} parent=0 // pred_region
    _
  $region33: #{_lambda_.16} parent=0 // pred_fallthru
    _
  // Predicated region
  $region34: #{_lambda_.16} parent=0 // pred_check
    _
  $region35: #{_lambda_.16} parent=0 // pred_check_branch
    %452 = sbr.rel (0) target = $region37
  $region36: #{_lambda_.16} parent=0 // pred_region
    _
  $region37: #{_lambda_.16} parent=0 // pred_fallthru
    _

// kernel: _lambda_.17
$region0: #{_lambda_.17}
  #allocation0 [shape = 'u32[]', space=smem, size = 0x4, offset = 0x4, fixed_abs, tag = 'smem constant byte address 0x4 - core index']
  #allocation1 [shape = 'u32[144,128]{1,0:T(1,128)}', space=vmem, size = 0x12000, scoped, tag = 'internal scratch']
  %s0 = inlined_call_operand.vmem [shape: f32[24,128], index: 0, kind: input, shape index: {}, may-alias: {0,4}]
  %s1 = inlined_call_operand.vmem [shape: f32[8,128], index: 1, kind: input, shape index: {}]
  %s2 = inlined_call_operand.vmem [shape: f32[8,128], index: 2, kind: input, shape index: {}]
  %s3 = inlined_call_operand.vmem [shape: f32[8,128], index: 3, kind: input, shape index: {}]
  %s4 = inlined_call_operand.vmem [shape: f32[24,128], index: 4, kind: output, shape index: {}, may-alias: {0,4}]
  %s5 = sld [smem:[#allocation0]]
  $region26: #{_lambda_.17} parent=0
    _
  %s7 = ssub.s32 1, %s5
  %s8 = scalar_select 0, %s7, %s5
  // Predicated region
  $region2: #{_lambda_.17} parent=0 // pred_check
    _
  $region3: #{_lambda_.17} parent=0 // pred_check_branch
    %10 = sbr.rel (0) target = $region5
  $region4: #{_lambda_.17} parent=0 // pred_region
    _
  $region5: #{_lambda_.17} parent=0 // pred_fallthru
    _
  // Predicated region
  $region6: #{_lambda_.17} parent=0 // pred_check
    _
  $region7: #{_lambda_.17} parent=0 // pred_check_branch
    %12 = sbr.rel (0) target = $region9
  $region8: #{_lambda_.17} parent=0 // pred_region
    _
  $region9: #{_lambda_.17} parent=0 // pred_fallthru
    _
  // Predicated region
  $region10: #{_lambda_.17} parent=0 // pred_check
    _
  $region11: #{_lambda_.17} parent=0 // pred_check_branch
    %14 = sbr.rel (0) target = $region13
  $region12: #{_lambda_.17} parent=0 // pred_region
    _
  $region13: #{_lambda_.17} parent=0 // pred_fallthru
    _
  // Predicated region
  $region14: #{_lambda_.17} parent=0 // pred_check
    _
  $region15: #{_lambda_.17} parent=0 // pred_check_branch
    %16 = sbr.rel (0) target = $region17
  $region16: #{_lambda_.17} parent=0 // pred_region
    _
  $region17: #{_lambda_.17} parent=0 // pred_fallthru
    _
  %v17 = vld [vmem:[%s1] sm:$0x1]
  %v18 = vmul.f32 %v17, 0.055555556
  %v19 = vld [vmem:[%s2] sm:$0x1]
  %v20 = vmul.f32 %v19, 0.055555556
  %v21 = vmul.f32 %v18, %v18
  %v22 = vsub.f32 %v20, %v21
  %v23 = vmax.f32 %v22, 0.0
  %v24 = vld [vmem:[%s3 + $0x1] sm:$0x1]
  %v25 = vld [vmem:[%s3 + $0x2] sm:$0x1]
  %v26 = vadd.f32 %v23, 1e-05
  %v27 = vrsqrt.pop %v26
  %v28 = vmul.f32 %v24, %v27
  %v29 = vmul.f32 %v18, %v28
  %v30 = vsub.f32 %v25, %v29
  %v31 = vld [vmem:[%s0] sm:$0xff]
  %v32 = vld [vmem:[%s0 + $0x8] sm:$0xff]
  %v33 = vld [vmem:[%s0 + $0x10] sm:$0xff]
  %v34 = vlaneseq
  %v35 = vshrl.u32 %v34, 7
  %v36 = vsub.s32 0, %v35
  %v37 = vrot.slane %v28, %v36
  %v38 = vmul.f32 %v31, %v37
  %v39 = vmul.f32 %v32, %v37
  %v40 = vmul.f32 %v33, %v37
  %v41 = vlaneseq
  %v42 = vshrl.u32 %v41, 7
  %v43 = vsub.s32 0, %v42
  %v44 = vrot.slane %v30, %v43
  %v45 = vadd.f32 %v38, %v44
  %v46 = vadd.f32 %v39, %v44
  %v47 = vadd.f32 %v40, %v44
  %vm48 = vcmp.ge.f32.partialorder %v45, 0.0
  %vm49 = vcmp.ge.f32.partialorder %v46, 0.0
  %vm50 = vcmp.ge.f32.partialorder %v47, 0.0
  %v51 = vmul.f32 %v45, 0.2
  %v52 = vmul.f32 %v46, 0.2
  %v53 = vmul.f32 %v47, 0.2
  %v54 = vsel %vm48, %v45, %v51
  %v55 = vsel %vm49, %v46, %v52
  %v56 = vsel %vm50, %v47, %v53
  %57 = vst [vmem:[%s4] sm:$0xff] %v54
  %58 = vst [vmem:[%s4 + $0x8] sm:$0xff] %v55
  %59 = vst [vmem:[%s4 + $0x10] sm:$0xff] %v56
  // Predicated region
  $region18: #{_lambda_.17} parent=0 // pred_check
    _
  $region19: #{_lambda_.17} parent=0 // pred_check_branch
    %61 = sbr.rel (0) target = $region21
  $region20: #{_lambda_.17} parent=0 // pred_region
    _
  $region21: #{_lambda_.17} parent=0 // pred_fallthru
    _
  // Predicated region
  $region22: #{_lambda_.17} parent=0 // pred_check
    _
  $region23: #{_lambda_.17} parent=0 // pred_check_branch
    %63 = sbr.rel (0) target = $region25
  $region24: #{_lambda_.17} parent=0 // pred_region
    _
  $region25: #{_lambda_.17} parent=0 // pred_fallthru
    _

// kernel: _lambda_.19
$region0: #{_lambda_.19}
  #allocation0 [shape = 'u32[]', space=smem, size = 0x4, offset = 0x4, fixed_abs, tag = 'smem constant byte address 0x4 - core index']
  #allocation1 [shape = 'u32[144,128]{1,0:T(1,128)}', space=vmem, size = 0x12000, scoped, tag = 'internal scratch']
  %s0 = inlined_call_operand.vmem [shape: f32[8,128], index: 0, kind: input, shape index: {}, may-alias: {0,4}]
  %s1 = inlined_call_operand.vmem [shape: f32[8,128], index: 1, kind: input, shape index: {}]
  %s2 = inlined_call_operand.vmem [shape: f32[8,128], index: 2, kind: input, shape index: {}]
  %s3 = inlined_call_operand.vmem [shape: f32[8,128], index: 3, kind: input, shape index: {}]
  %s4 = inlined_call_operand.vmem [shape: f32[8,128], index: 4, kind: output, shape index: {}, may-alias: {0,4}]
  %s5 = sld [smem:[#allocation0]]
  $region26: #{_lambda_.19} parent=0
    _
  %s7 = ssub.s32 1, %s5
  %s8 = scalar_select 0, %s7, %s5
  // Predicated region
  $region2: #{_lambda_.19} parent=0 // pred_check
    _
  $region3: #{_lambda_.19} parent=0 // pred_check_branch
    %10 = sbr.rel (0) target = $region5
  $region4: #{_lambda_.19} parent=0 // pred_region
    _
  $region5: #{_lambda_.19} parent=0 // pred_fallthru
    _
  // Predicated region
  $region6: #{_lambda_.19} parent=0 // pred_check
    _
  $region7: #{_lambda_.19} parent=0 // pred_check_branch
    %12 = sbr.rel (0) target = $region9
  $region8: #{_lambda_.19} parent=0 // pred_region
    _
  $region9: #{_lambda_.19} parent=0 // pred_fallthru
    _
  // Predicated region
  $region10: #{_lambda_.19} parent=0 // pred_check
    _
  $region11: #{_lambda_.19} parent=0 // pred_check_branch
    %14 = sbr.rel (0) target = $region13
  $region12: #{_lambda_.19} parent=0 // pred_region
    _
  $region13: #{_lambda_.19} parent=0 // pred_fallthru
    _
  // Predicated region
  $region14: #{_lambda_.19} parent=0 // pred_check
    _
  $region15: #{_lambda_.19} parent=0 // pred_check_branch
    %16 = sbr.rel (0) target = $region17
  $region16: #{_lambda_.19} parent=0 // pred_region
    _
  $region17: #{_lambda_.19} parent=0 // pred_fallthru
    _
  %v17 = vld [vmem:[%s1] sm:$0x1]
  %v18 = vmul.f32 %v17, 0.125
  %v19 = vld [vmem:[%s2] sm:$0x1]
  %v20 = vmul.f32 %v19, 0.125
  %v21 = vmul.f32 %v18, %v18
  %v22 = vsub.f32 %v20, %v21
  %v23 = vmax.f32 %v22, 0.0
  %v24 = vld [vmem:[%s3 + $0x1] sm:$0x1]
  %v25 = vld [vmem:[%s3 + $0x2] sm:$0x1]
  %v26 = vadd.f32 %v23, 1e-05
  %v27 = vrsqrt.pop %v26
  %v28 = vmul.f32 %v24, %v27
  %v29 = vmul.f32 %v18, %v28
  %v30 = vsub.f32 %v25, %v29
  %v31 = vld [vmem:[%s0] sm:$0xff]
  %v32 = vlaneseq
  %v33 = vshrl.u32 %v32, 7
  %v34 = vsub.s32 0, %v33
  %v35 = vrot.slane %v28, %v34
  %v36 = vmul.f32 %v31, %v35
  %v37 = vlaneseq
  %v38 = vshrl.u32 %v37, 7
  %v39 = vsub.s32 0, %v38
  %v40 = vrot.slane %v30, %v39
  %v41 = vadd.f32 %v36, %v40
  %vm42 = vcmp.ge.f32.partialorder %v41, 0.0
  %v43 = vmul.f32 %v41, 0.2
  %v44 = vsel %vm42, %v41, %v43
  %45 = vst [vmem:[%s4] sm:$0xff] %v44
  // Predicated region
  $region18: #{_lambda_.19} parent=0 // pred_check
    _
  $region19: #{_lambda_.19} parent=0 // pred_check_branch
    %47 = sbr.rel (0) target = $region21
  $region20: #{_lambda_.19} parent=0 // pred_region
    _
  $region21: #{_lambda_.19} parent=0 // pred_fallthru
    _
  // Predicated region
  $region22: #{_lambda_.19} parent=0 // pred_check
    _
  $region23: #{_lambda_.19} parent=0 // pred_check_branch
    %49 = sbr.rel (0) target = $region25
  $region24: #{_lambda_.19} parent=0 // pred_region
    _
  $region25: #{_lambda_.19} parent=0 // pred_fallthru
    _

// kernel: _lambda_.18
$region0: #{_lambda_.18}
  #allocation0 [shape = 'u32[]', space=smem, size = 0x4, offset = 0x4, fixed_abs, tag = 'smem constant byte address 0x4 - core index']
  #allocation1 [shape = 'u32[144,128]{1,0:T(1,128)}', space=vmem, size = 0x12000, scoped, tag = 'internal scratch']
  %s0 = inlined_call_operand.vmem [shape: bf16[8,1024], index: 0, kind: input, shape index: {}]
  %s1 = inlined_call_operand.vmem [shape: bf16[1024,128], index: 1, kind: input, shape index: {}]
  %s2 = inlined_call_operand.vmem [shape: f32[8,128], index: 2, kind: output, shape index: {0}]
  %s3 = inlined_call_operand.vmem [shape: f32[8,128], index: 3, kind: output, shape index: {1}]
  %s4 = inlined_call_operand.vmem [shape: f32[8,128], index: 4, kind: output, shape index: {2}]
  %5 = xla_tuple %s2, %s3, %s4
  %s6 = sld [smem:[#allocation0]]
  $region38: #{_lambda_.18} parent=0
    _
  %s8 = ssub.s32 1, %s6
  %s9 = scalar_select 0, %s8, %s6
  // Predicated region
  $region2: #{_lambda_.18} parent=0 // pred_check
    _
  $region3: #{_lambda_.18} parent=0 // pred_check_branch
    %11 = sbr.rel (0) target = $region5
  $region4: #{_lambda_.18} parent=0 // pred_region
    _
  $region5: #{_lambda_.18} parent=0 // pred_fallthru
    _
  // Predicated region
  $region6: #{_lambda_.18} parent=0 // pred_check
    _
  $region7: #{_lambda_.18} parent=0 // pred_check_branch
    %13 = sbr.rel (0) target = $region9
  $region8: #{_lambda_.18} parent=0 // pred_region
    _
  $region9: #{_lambda_.18} parent=0 // pred_fallthru
    _
  %v15 = vld [vmem:[%s0] sm:$0xff]
  %v16 = vld [vmem:[%s0 + $0x8] sm:$0xff]
  %v17 = vld [vmem:[%s0 + $0x10] sm:$0xff]
  %v18 = vld [vmem:[%s0 + $0x18] sm:$0xff]
  %v19 = vld [vmem:[%s1] sm:$0xf]
  %v20 = vld [vmem:[%s1 + $0x4] sm:$0xf]
  %v21 = vld [vmem:[%s1 + $0x8] sm:$0xf]
  %v22 = vld [vmem:[%s1 + $0xc] sm:$0xf]
  %v23 = vld [vmem:[%s1 + $0x10] sm:$0xf]
  %v24 = vld [vmem:[%s1 + $0x14] sm:$0xf]
  %v25 = vld [vmem:[%s1 + $0x18] sm:$0xf]
  %v26 = vld [vmem:[%s1 + $0x1c] sm:$0xf]
  %v27 = vld [vmem:[%s1 + $0x20] sm:$0xf]
  %v28 = vld [vmem:[%s1 + $0x24] sm:$0xf]
  %v29 = vld [vmem:[%s1 + $0x28] sm:$0xf]
  %v30 = vld [vmem:[%s1 + $0x2c] sm:$0xf]
  %v31 = vld [vmem:[%s1 + $0x30] sm:$0xf]
  %v32 = vld [vmem:[%s1 + $0x34] sm:$0xf]
  %v33 = vld [vmem:[%s1 + $0x38] sm:$0xf]
  %v34 = vld [vmem:[%s1 + $0x3c] sm:$0xf]
  %v35 = vld [vmem:[%s1 + $0x40] sm:$0xf]
  %v36 = vld [vmem:[%s1 + $0x44] sm:$0xf]
  %v37 = vld [vmem:[%s1 + $0x48] sm:$0xf]
  %v38 = vld [vmem:[%s1 + $0x4c] sm:$0xf]
  %v39 = vld [vmem:[%s1 + $0x50] sm:$0xf]
  %v40 = vld [vmem:[%s1 + $0x54] sm:$0xf]
  %v41 = vld [vmem:[%s1 + $0x58] sm:$0xf]
  %v42 = vld [vmem:[%s1 + $0x5c] sm:$0xf]
  %v43 = vld [vmem:[%s1 + $0x60] sm:$0xf]
  %v44 = vld [vmem:[%s1 + $0x64] sm:$0xf]
  %v45 = vld [vmem:[%s1 + $0x68] sm:$0xf]
  %v46 = vld [vmem:[%s1 + $0x6c] sm:$0xf]
  %v47 = vld [vmem:[%s1 + $0x70] sm:$0xf]
  %v48 = vld [vmem:[%s1 + $0x74] sm:$0xf]
  %v49 = vld [vmem:[%s1 + $0x78] sm:$0xf]
  %v50 = vld [vmem:[%s1 + $0x7c] sm:$0xf]
  %v51 = vld [vmem:[%s1 + $0x80] sm:$0xf]
  %v52 = vld [vmem:[%s1 + $0x84] sm:$0xf]
  %v53 = vld [vmem:[%s1 + $0x88] sm:$0xf]
  %v54 = vld [vmem:[%s1 + $0x8c] sm:$0xf]
  %v55 = vld [vmem:[%s1 + $0x90] sm:$0xf]
  %v56 = vld [vmem:[%s1 + $0x94] sm:$0xf]
  %v57 = vld [vmem:[%s1 + $0x98] sm:$0xf]
  %v58 = vld [vmem:[%s1 + $0x9c] sm:$0xf]
  %v59 = vld [vmem:[%s1 + $0xa0] sm:$0xf]
  %v60 = vld [vmem:[%s1 + $0xa4] sm:$0xf]
  %v61 = vld [vmem:[%s1 + $0xa8] sm:$0xf]
  %v62 = vld [vmem:[%s1 + $0xac] sm:$0xf]
  %v63 = vld [vmem:[%s1 + $0xb0] sm:$0xf]
  %v64 = vld [vmem:[%s1 + $0xb4] sm:$0xf]
  %v65 = vld [vmem:[%s1 + $0xb8] sm:$0xf]
  %v66 = vld [vmem:[%s1 + $0xbc] sm:$0xf]
  %v67 = vld [vmem:[%s1 + $0xc0] sm:$0xf]
  %v68 = vld [vmem:[%s1 + $0xc4] sm:$0xf]
  %v69 = vld [vmem:[%s1 + $0xc8] sm:$0xf]
  %v70 = vld [vmem:[%s1 + $0xcc] sm:$0xf]
  %v71 = vld [vmem:[%s1 + $0xd0] sm:$0xf]
  %v72 = vld [vmem:[%s1 + $0xd4] sm:$0xf]
  %v73 = vld [vmem:[%s1 + $0xd8] sm:$0xf]
  %v74 = vld [vmem:[%s1 + $0xdc] sm:$0xf]
  %v75 = vld [vmem:[%s1 + $0xe0] sm:$0xf]
  %v76 = vld [vmem:[%s1 + $0xe4] sm:$0xf]
  %v77 = vld [vmem:[%s1 + $0xe8] sm:$0xf]
  %v78 = vld [vmem:[%s1 + $0xec] sm:$0xf]
  %v79 = vld [vmem:[%s1 + $0xf0] sm:$0xf]
  %v80 = vld [vmem:[%s1 + $0xf4] sm:$0xf]
  %v81 = vld [vmem:[%s1 + $0xf8] sm:$0xf]
  %v82 = vld [vmem:[%s1 + $0xfc] sm:$0xf]
  %v83 = vld [vmem:[%s1 + $0x100] sm:$0xf]
  %v84 = vld [vmem:[%s1 + $0x104] sm:$0xf]
  %v85 = vld [vmem:[%s1 + $0x108] sm:$0xf]
  %v86 = vld [vmem:[%s1 + $0x10c] sm:$0xf]
  %v87 = vld [vmem:[%s1 + $0x110] sm:$0xf]
  %v88 = vld [vmem:[%s1 + $0x114] sm:$0xf]
  %v89 = vld [vmem:[%s1 + $0x118] sm:$0xf]
  %v90 = vld [vmem:[%s1 + $0x11c] sm:$0xf]
  %v91 = vld [vmem:[%s1 + $0x120] sm:$0xf]
  %v92 = vld [vmem:[%s1 + $0x124] sm:$0xf]
  %v93 = vld [vmem:[%s1 + $0x128] sm:$0xf]
  %v94 = vld [vmem:[%s1 + $0x12c] sm:$0xf]
  %v95 = vld [vmem:[%s1 + $0x130] sm:$0xf]
  %v96 = vld [vmem:[%s1 + $0x134] sm:$0xf]
  %v97 = vld [vmem:[%s1 + $0x138] sm:$0xf]
  %v98 = vld [vmem:[%s1 + $0x13c] sm:$0xf]
  %v99 = vld [vmem:[%s1 + $0x140] sm:$0xf]
  %v100 = vld [vmem:[%s1 + $0x144] sm:$0xf]
  %v101 = vld [vmem:[%s1 + $0x148] sm:$0xf]
  %v102 = vld [vmem:[%s1 + $0x14c] sm:$0xf]
  %v103 = vld [vmem:[%s1 + $0x150] sm:$0xf]
  %v104 = vld [vmem:[%s1 + $0x154] sm:$0xf]
  %v105 = vld [vmem:[%s1 + $0x158] sm:$0xf]
  %v106 = vld [vmem:[%s1 + $0x15c] sm:$0xf]
  %v107 = vld [vmem:[%s1 + $0x160] sm:$0xf]
  %v108 = vld [vmem:[%s1 + $0x164] sm:$0xf]
  %v109 = vld [vmem:[%s1 + $0x168] sm:$0xf]
  %v110 = vld [vmem:[%s1 + $0x16c] sm:$0xf]
  %v111 = vld [vmem:[%s1 + $0x170] sm:$0xf]
  %v112 = vld [vmem:[%s1 + $0x174] sm:$0xf]
  %v113 = vld [vmem:[%s1 + $0x178] sm:$0xf]
  %v114 = vld [vmem:[%s1 + $0x17c] sm:$0xf]
  %v115 = vld [vmem:[%s1 + $0x180] sm:$0xf]
  %v116 = vld [vmem:[%s1 + $0x184] sm:$0xf]
  %v117 = vld [vmem:[%s1 + $0x188] sm:$0xf]
  %v118 = vld [vmem:[%s1 + $0x18c] sm:$0xf]
  %v119 = vld [vmem:[%s1 + $0x190] sm:$0xf]
  %v120 = vld [vmem:[%s1 + $0x194] sm:$0xf]
  %v121 = vld [vmem:[%s1 + $0x198] sm:$0xf]
  %v122 = vld [vmem:[%s1 + $0x19c] sm:$0xf]
  %v123 = vld [vmem:[%s1 + $0x1a0] sm:$0xf]
  %v124 = vld [vmem:[%s1 + $0x1a4] sm:$0xf]
  %v125 = vld [vmem:[%s1 + $0x1a8] sm:$0xf]
  %v126 = vld [vmem:[%s1 + $0x1ac] sm:$0xf]
  %v127 = vld [vmem:[%s1 + $0x1b0] sm:$0xf]
  %v128 = vld [vmem:[%s1 + $0x1b4] sm:$0xf]
  %v129 = vld [vmem:[%s1 + $0x1b8] sm:$0xf]
  %v130 = vld [vmem:[%s1 + $0x1bc] sm:$0xf]
  %v131 = vld [vmem:[%s1 + $0x1c0] sm:$0xf]
  %v132 = vld [vmem:[%s1 + $0x1c4] sm:$0xf]
  %v133 = vld [vmem:[%s1 + $0x1c8] sm:$0xf]
  %v134 = vld [vmem:[%s1 + $0x1cc] sm:$0xf]
  %v135 = vld [vmem:[%s1 + $0x1d0] sm:$0xf]
  %v136 = vld [vmem:[%s1 + $0x1d4] sm:$0xf]
  %v137 = vld [vmem:[%s1 + $0x1d8] sm:$0xf]
  %v138 = vld [vmem:[%s1 + $0x1dc] sm:$0xf]
  %v139 = vld [vmem:[%s1 + $0x1e0] sm:$0xf]
  %v140 = vld [vmem:[%s1 + $0x1e4] sm:$0xf]
  %v141 = vld [vmem:[%s1 + $0x1e8] sm:$0xf]
  %v142 = vld [vmem:[%s1 + $0x1ec] sm:$0xf]
  %v143 = vld [vmem:[%s1 + $0x1f0] sm:$0xf]
  %v144 = vld [vmem:[%s1 + $0x1f4] sm:$0xf]
  %v145 = vld [vmem:[%s1 + $0x1f8] sm:$0xf]
  %v146 = vld [vmem:[%s1 + $0x1fc] sm:$0xf]
  %v151 = vunpack.c.l.b16 %v15
  %v152 = vunpack.c.h.b16 %v15
  %v153 = vunpack.c.l.b16 %v16
  %v154 = vunpack.c.h.b16 %v16
  %v155 = vunpack.c.l.b16 %v17
  %v156 = vunpack.c.h.b16 %v17
  %v157 = vunpack.c.l.b16 %v18
  %v158 = vunpack.c.h.b16 %v18
  %v159 = vpack.c.b16 %v151, %v151
  %v160 = vpack.c.b16 %v152, %v152
  %v161 = vpack.c.b16 %v153, %v153
  %v162 = vpack.c.b16 %v154, %v154
  %v163 = vpack.c.b16 %v155, %v155
  %v164 = vpack.c.b16 %v156, %v156
  %v165 = vpack.c.b16 %v157, %v157
  %v166 = vpack.c.b16 %v158, %v158
  %v303 = vunpack.c.l.b16 %v19
  %v304 = vunpack.c.l.b16 %v20
  %v305 = vunpack.c.l.b16 %v21
  %v306 = vunpack.c.l.b16 %v22
  %v307 = vunpack.c.l.b16 %v23
  %v308 = vunpack.c.l.b16 %v24
  %v309 = vunpack.c.l.b16 %v25
  %v310 = vunpack.c.l.b16 %v26
  %v311 = vunpack.c.l.b16 %v27
  %v312 = vunpack.c.l.b16 %v28
  %v313 = vunpack.c.l.b16 %v29
  %v314 = vunpack.c.l.b16 %v30
  %v315 = vunpack.c.l.b16 %v31
  %v316 = vunpack.c.l.b16 %v32
  %v317 = vunpack.c.l.b16 %v33
  %v318 = vunpack.c.l.b16 %v34
  %v319 = vunpack.c.l.b16 %v35
  %v320 = vunpack.c.l.b16 %v36
  %v321 = vunpack.c.l.b16 %v37
  %v322 = vunpack.c.l.b16 %v38
  %v323 = vunpack.c.l.b16 %v39
  %v324 = vunpack.c.l.b16 %v40
  %v325 = vunpack.c.l.b16 %v41
  %v326 = vunpack.c.l.b16 %v42
  %v327 = vunpack.c.l.b16 %v43
  %v328 = vunpack.c.l.b16 %v44
  %v329 = vunpack.c.l.b16 %v45
  %v330 = vunpack.c.l.b16 %v46
  %v331 = vunpack.c.l.b16 %v47
  %v332 = vunpack.c.l.b16 %v48
  %v333 = vunpack.c.l.b16 %v49
  %v334 = vunpack.c.l.b16 %v50
  %v335 = vunpack.c.l.b16 %v51
  %v336 = vunpack.c.l.b16 %v52
  %v337 = vunpack.c.l.b16 %v53
  %v338 = vunpack.c.l.b16 %v54
  %v339 = vunpack.c.l.b16 %v55
  %v340 = vunpack.c.l.b16 %v56
  %v341 = vunpack.c.l.b16 %v57
  %v342 = vunpack.c.l.b16 %v58
  %v343 = vunpack.c.l.b16 %v59
  %v344 = vunpack.c.l.b16 %v60
  %v345 = vunpack.c.l.b16 %v61
  %v346 = vunpack.c.l.b16 %v62
  %v347 = vunpack.c.l.b16 %v63
  %v348 = vunpack.c.l.b16 %v64
  %v349 = vunpack.c.l.b16 %v65
  %v350 = vunpack.c.l.b16 %v66
  %v351 = vunpack.c.l.b16 %v67
  %v352 = vunpack.c.l.b16 %v68
  %v353 = vunpack.c.l.b16 %v69
  %v354 = vunpack.c.l.b16 %v70
  %v355 = vunpack.c.l.b16 %v71
  %v356 = vunpack.c.l.b16 %v72
  %v357 = vunpack.c.l.b16 %v73
  %v358 = vunpack.c.l.b16 %v74
  %v359 = vunpack.c.l.b16 %v75
  %v360 = vunpack.c.l.b16 %v76
  %v361 = vunpack.c.l.b16 %v77
  %v362 = vunpack.c.l.b16 %v78
  %v363 = vunpack.c.l.b16 %v79
  %v364 = vunpack.c.l.b16 %v80
  %v365 = vunpack.c.l.b16 %v81
  %v366 = vunpack.c.l.b16 %v82
  %v367 = vunpack.c.l.b16 %v83
  %v368 = vunpack.c.l.b16 %v84
  %v369 = vunpack.c.l.b16 %v85
  %v370 = vunpack.c.l.b16 %v86
  %v371 = vunpack.c.l.b16 %v87
  %v372 = vunpack.c.l.b16 %v88
  %v373 = vunpack.c.l.b16 %v89
  %v374 = vunpack.c.l.b16 %v90
  %v375 = vunpack.c.l.b16 %v91
  %v376 = vunpack.c.l.b16 %v92
  %v377 = vunpack.c.l.b16 %v93
  %v378 = vunpack.c.l.b16 %v94
  %v379 = vunpack.c.l.b16 %v95
  %v380 = vunpack.c.l.b16 %v96
  %v381 = vunpack.c.l.b16 %v97
  %v382 = vunpack.c.l.b16 %v98
  %v383 = vunpack.c.l.b16 %v99
  %v384 = vunpack.c.l.b16 %v100
  %v385 = vunpack.c.l.b16 %v101
  %v386 = vunpack.c.l.b16 %v102
  %v387 = vunpack.c.l.b16 %v103
  %v388 = vunpack.c.l.b16 %v104
  %v389 = vunpack.c.l.b16 %v105
  %v390 = vunpack.c.l.b16 %v106
  %v391 = vunpack.c.l.b16 %v107
  %v392 = vunpack.c.l.b16 %v108
  %v393 = vunpack.c.l.b16 %v109
  %v394 = vunpack.c.l.b16 %v110
  %v395 = vunpack.c.l.b16 %v111
  %v396 = vunpack.c.l.b16 %v112
  %v397 = vunpack.c.l.b16 %v113
  %v398 = vunpack.c.l.b16 %v114
  %v399 = vunpack.c.l.b16 %v115
  %v400 = vunpack.c.l.b16 %v116
  %v401 = vunpack.c.l.b16 %v117
  %v402 = vunpack.c.l.b16 %v118
  %v403 = vunpack.c.l.b16 %v119
  %v404 = vunpack.c.l.b16 %v120
  %v405 = vunpack.c.l.b16 %v121
  %v406 = vunpack.c.l.b16 %v122
  %v407 = vunpack.c.l.b16 %v123
  %v408 = vunpack.c.l.b16 %v124
  %v409 = vunpack.c.l.b16 %v125
  %v410 = vunpack.c.l.b16 %v126
  %v411 = vunpack.c.l.b16 %v127
  %v412 = vunpack.c.l.b16 %v128
  %v413 = vunpack.c.l.b16 %v129
  %v414 = vunpack.c.l.b16 %v130
  %v415 = vunpack.c.l.b16 %v131
  %v416 = vunpack.c.l.b16 %v132
  %v417 = vunpack.c.l.b16 %v133
  %v418 = vunpack.c.l.b16 %v134
  %v419 = vunpack.c.l.b16 %v135
  %v420 = vunpack.c.l.b16 %v136
  %v421 = vunpack.c.l.b16 %v137
  %v422 = vunpack.c.l.b16 %v138
  %v423 = vunpack.c.l.b16 %v139
  %v424 = vunpack.c.l.b16 %v140
  %v425 = vunpack.c.l.b16 %v141
  %v426 = vunpack.c.l.b16 %v142
  %v427 = vunpack.c.l.b16 %v143
  %v428 = vunpack.c.l.b16 %v144
  %v429 = vunpack.c.l.b16 %v145
  %v430 = vunpack.c.l.b16 %v146
  %v431 = vpack.c.b16 %v304, %v303
  %v432 = vpack.c.b16 %v306, %v305
  %v433 = vpack.c.b16 %v308, %v307
  %v434 = vpack.c.b16 %v310, %v309
  %v435 = vpack.c.b16 %v312, %v311
  %v436 = vpack.c.b16 %v314, %v313
  %v437 = vpack.c.b16 %v316, %v315
  %v438 = vpack.c.b16 %v318, %v317
  %v439 = vpack.c.b16 %v320, %v319
  %v440 = vpack.c.b16 %v322, %v321
  %v441 = vpack.c.b16 %v324, %v323
  %v442 = vpack.c.b16 %v326, %v325
  %v443 = vpack.c.b16 %v328, %v327
  %v444 = vpack.c.b16 %v330, %v329
  %v445 = vpack.c.b16 %v332, %v331
  %v446 = vpack.c.b16 %v334, %v333
  %v447 = vpack.c.b16 %v336, %v335
  %v448 = vpack.c.b16 %v338, %v337
  %v449 = vpack.c.b16 %v340, %v339
  %v450 = vpack.c.b16 %v342, %v341
  %v451 = vpack.c.b16 %v344, %v343
  %v452 = vpack.c.b16 %v346, %v345
  %v453 = vpack.c.b16 %v348, %v347
  %v454 = vpack.c.b16 %v350, %v349
  %v455 = vpack.c.b16 %v352, %v351
  %v456 = vpack.c.b16 %v354, %v353
  %v457 = vpack.c.b16 %v356, %v355
  %v458 = vpack.c.b16 %v358, %v357
  %v459 = vpack.c.b16 %v360, %v359
  %v460 = vpack.c.b16 %v362, %v361
  %v461 = vpack.c.b16 %v364, %v363
  %v462 = vpack.c.b16 %v366, %v365
  %v463 = vpack.c.b16 %v368, %v367
  %v464 = vpack.c.b16 %v370, %v369
  %v465 = vpack.c.b16 %v372, %v371
  %v466 = vpack.c.b16 %v374, %v373
  %v467 = vpack.c.b16 %v376, %v375
  %v468 = vpack.c.b16 %v378, %v377
  %v469 = vpack.c.b16 %v380, %v379
  %v470 = vpack.c.b16 %v382, %v381
  %v471 = vpack.c.b16 %v384, %v383
  %v472 = vpack.c.b16 %v386, %v385
  %v473 = vpack.c.b16 %v388, %v387
  %v474 = vpack.c.b16 %v390, %v389
  %v475 = vpack.c.b16 %v392, %v391
  %v476 = vpack.c.b16 %v394, %v393
  %v477 = vpack.c.b16 %v396, %v395
  %v478 = vpack.c.b16 %v398, %v397
  %v479 = vpack.c.b16 %v400, %v399
  %v480 = vpack.c.b16 %v402, %v401
  %v481 = vpack.c.b16 %v404, %v403
  %v482 = vpack.c.b16 %v406, %v405
  %v483 = vpack.c.b16 %v408, %v407
  %v484 = vpack.c.b16 %v410, %v409
  %v485 = vpack.c.b16 %v412, %v411
  %v486 = vpack.c.b16 %v414, %v413
  %v487 = vpack.c.b16 %v416, %v415
  %v488 = vpack.c.b16 %v418, %v417
  %v489 = vpack.c.b16 %v420, %v419
  %v490 = vpack.c.b16 %v422, %v421
  %v491 = vpack.c.b16 %v424, %v423
  %v492 = vpack.c.b16 %v426, %v425
  %v493 = vpack.c.b16 %v428, %v427
  %v494 = vpack.c.b16 %v430, %v429
  %559 = vmatprep.subr.bf16.mxu0 0
  %560 = vmatpush1.bf16.msra.mxu0 %v431
  %561 = vmatprep.subr.bf16.mxu0 0
  %562 = vmatpush1.bf16.msra.mxu0 %v432
  %563 = vmatprep.subr.bf16.mxu0 0
  %564 = vmatpush1.bf16.msra.mxu0 %v433
  %565 = vmatprep.subr.bf16.mxu0 0
  %566 = vmatpush1.bf16.msra.mxu0 %v434
  %567 = vmatprep.subr.bf16.mxu0 0
  %568 = vmatpush1.bf16.msra.mxu0 %v435
  %569 = vmatprep.subr.bf16.mxu0 0
  %570 = vmatpush1.bf16.msra.mxu0 %v436
  %571 = vmatprep.subr.bf16.mxu0 0
  %572 = vmatpush1.bf16.msra.mxu0 %v437
  %573 = vmatprep.subr.bf16.mxu0 0
  %574 = vmatpush1.bf16.msra.mxu0 %v438
  %575 = vmatprep.subr.bf16.mxu0 0
  %576 = vmatpush1.bf16.msra.mxu0 %v439
  %577 = vmatprep.subr.bf16.mxu0 0
  %578 = vmatpush1.bf16.msra.mxu0 %v440
  %579 = vmatprep.subr.bf16.mxu0 0
  %580 = vmatpush1.bf16.msra.mxu0 %v441
  %581 = vmatprep.subr.bf16.mxu0 0
  %582 = vmatpush1.bf16.msra.mxu0 %v442
  %583 = vmatprep.subr.bf16.mxu0 0
  %584 = vmatpush1.bf16.msra.mxu0 %v443
  %585 = vmatprep.subr.bf16.mxu0 0
  %586 = vmatpush1.bf16.msra.mxu0 %v444
  %587 = vmatprep.subr.bf16.mxu0 0
  %588 = vmatpush1.bf16.msra.mxu0 %v445
  %589 = vmatprep.subr.bf16.mxu0 0
  %590 = vmatpush1.bf16.msra.mxu0 %v446
  %591 = vmatprep.mubr.bf16.mxu0 %v160
  %592 = vmatmul.mubr.bf16.gmra.mrb[0].mxu0 %v159
  %v593 = vpop.f32.mrb[0].mxu0
  %v594 = vadd.f32 0.0, %v593
  %v595 = vpop.f32.mrb[0].mxu0
  %v596 = vpop.f32.mrb[0].mxu0
  %v597 = vpop.f32.mrb[0].mxu0
  %598 = vdwg.mxu0
  %599 = vmatprep.subr.bf16.mxu0 0
  %600 = vmatpush1.bf16.msra.mxu0 %v447
  %601 = vmatprep.subr.bf16.mxu0 0
  %602 = vmatpush1.bf16.msra.mxu0 %v448
  %603 = vmatprep.subr.bf16.mxu0 0
  %604 = vmatpush1.bf16.msra.mxu0 %v449
  %605 = vmatprep.subr.bf16.mxu0 0
  %606 = vmatpush1.bf16.msra.mxu0 %v450
  %607 = vmatprep.subr.bf16.mxu0 0
  %608 = vmatpush1.bf16.msra.mxu0 %v451
  %609 = vmatprep.subr.bf16.mxu0 0
  %610 = vmatpush1.bf16.msra.mxu0 %v452
  %611 = vmatprep.subr.bf16.mxu0 0
  %612 = vmatpush1.bf16.msra.mxu0 %v453
  %613 = vmatprep.subr.bf16.mxu0 0
  %614 = vmatpush1.bf16.msra.mxu0 %v454
  %615 = vmatprep.subr.bf16.mxu0 0
  %616 = vmatpush1.bf16.msra.mxu0 %v455
  %617 = vmatprep.subr.bf16.mxu0 0
  %618 = vmatpush1.bf16.msra.mxu0 %v456
  %619 = vmatprep.subr.bf16.mxu0 0
  %620 = vmatpush1.bf16.msra.mxu0 %v457
  %621 = vmatprep.subr.bf16.mxu0 0
  %622 = vmatpush1.bf16.msra.mxu0 %v458
  %623 = vmatprep.subr.bf16.mxu0 0
  %624 = vmatpush1.bf16.msra.mxu0 %v459
  %625 = vmatprep.subr.bf16.mxu0 0
  %626 = vmatpush1.bf16.msra.mxu0 %v460
  %627 = vmatprep.subr.bf16.mxu0 0
  %628 = vmatpush1.bf16.msra.mxu0 %v461
  %629 = vmatprep.subr.bf16.mxu0 0
  %630 = vmatpush1.bf16.msra.mxu0 %v462
  %631 = vmatprep.mubr.bf16.mxu0 %v162
  %632 = vmatmul.mubr.bf16.gmra.mrb[0].mxu0 %v161
  %v633 = vpop.f32.mrb[0].mxu0
  %v634 = vadd.f32 %v594, %v633
  %v635 = vpop.f32.mrb[0].mxu0
  %v636 = vpop.f32.mrb[0].mxu0
  %v637 = vpop.f32.mrb[0].mxu0
  %638 = vdwg.mxu0
  %639 = vmatprep.subr.bf16.mxu0 0
  %640 = vmatpush1.bf16.msra.mxu0 %v463
  %641 = vmatprep.subr.bf16.mxu0 0
  %642 = vmatpush1.bf16.msra.mxu0 %v464
  %643 = vmatprep.subr.bf16.mxu0 0
  %644 = vmatpush1.bf16.msra.mxu0 %v465
  %645 = vmatprep.subr.bf16.mxu0 0
  %646 = vmatpush1.bf16.msra.mxu0 %v466
  %647 = vmatprep.subr.bf16.mxu0 0
  %648 = vmatpush1.bf16.msra.mxu0 %v467
  %649 = vmatprep.subr.bf16.mxu0 0
  %650 = vmatpush1.bf16.msra.mxu0 %v468
  %651 = vmatprep.subr.bf16.mxu0 0
  %652 = vmatpush1.bf16.msra.mxu0 %v469
  %653 = vmatprep.subr.bf16.mxu0 0
  %654 = vmatpush1.bf16.msra.mxu0 %v470
  %655 = vmatprep.subr.bf16.mxu0 0
  %656 = vmatpush1.bf16.msra.mxu0 %v471
  %657 = vmatprep.subr.bf16.mxu0 0
  %658 = vmatpush1.bf16.msra.mxu0 %v472
  %659 = vmatprep.subr.bf16.mxu0 0
  %660 = vmatpush1.bf16.msra.mxu0 %v473
  %661 = vmatprep.subr.bf16.mxu0 0
  %662 = vmatpush1.bf16.msra.mxu0 %v474
  %663 = vmatprep.subr.bf16.mxu0 0
  %664 = vmatpush1.bf16.msra.mxu0 %v475
  %665 = vmatprep.subr.bf16.mxu0 0
  %666 = vmatpush1.bf16.msra.mxu0 %v476
  %667 = vmatprep.subr.bf16.mxu0 0
  %668 = vmatpush1.bf16.msra.mxu0 %v477
  %669 = vmatprep.subr.bf16.mxu0 0
  %670 = vmatpush1.bf16.msra.mxu0 %v478
  %671 = vmatprep.mubr.bf16.mxu0 %v164
  %672 = vmatmul.mubr.bf16.gmra.mrb[0].mxu0 %v163
  %v673 = vpop.f32.mrb[0].mxu0
  %v674 = vadd.f32 %v634, %v673
  %v675 = vpop.f32.mrb[0].mxu0
  %v676 = vpop.f32.mrb[0].mxu0
  %v677 = vpop.f32.mrb[0].mxu0
  %678 = vdwg.mxu0
  %679 = vmatprep.subr.bf16.mxu0 0
  %680 = vmatpush1.bf16.msra.mxu0 %v479
  %681 = vmatprep.subr.bf16.mxu0 0
  %682 = vmatpush1.bf16.msra.mxu0 %v480
  %683 = vmatprep.subr.bf16.mxu0 0
  %684 = vmatpush1.bf16.msra.mxu0 %v481
  %685 = vmatprep.subr.bf16.mxu0 0
  %686 = vmatpush1.bf16.msra.mxu0 %v482
  %687 = vmatprep.subr.bf16.mxu0 0
  %688 = vmatpush1.bf16.msra.mxu0 %v483
  %689 = vmatprep.subr.bf16.mxu0 0
  %690 = vmatpush1.bf16.msra.mxu0 %v484
  %691 = vmatprep.subr.bf16.mxu0 0
  %692 = vmatpush1.bf16.msra.mxu0 %v485
  %693 = vmatprep.subr.bf16.mxu0 0
  %694 = vmatpush1.bf16.msra.mxu0 %v486
  %695 = vmatprep.subr.bf16.mxu0 0
  %696 = vmatpush1.bf16.msra.mxu0 %v487
  %697 = vmatprep.subr.bf16.mxu0 0
  %698 = vmatpush1.bf16.msra.mxu0 %v488
  %699 = vmatprep.subr.bf16.mxu0 0
  %700 = vmatpush1.bf16.msra.mxu0 %v489
  %701 = vmatprep.subr.bf16.mxu0 0
  %702 = vmatpush1.bf16.msra.mxu0 %v490
  %703 = vmatprep.subr.bf16.mxu0 0
  %704 = vmatpush1.bf16.msra.mxu0 %v491
  %705 = vmatprep.subr.bf16.mxu0 0
  %706 = vmatpush1.bf16.msra.mxu0 %v492
  %707 = vmatprep.subr.bf16.mxu0 0
  %708 = vmatpush1.bf16.msra.mxu0 %v493
  %709 = vmatprep.subr.bf16.mxu0 0
  %710 = vmatpush1.bf16.msra.mxu0 %v494
  %711 = vmatprep.mubr.bf16.mxu0 %v166
  %712 = vmatmul.mubr.bf16.gmra.mrb[0].mxu0 %v165
  %v713 = vpop.f32.mrb[0].mxu0
  %v714 = vadd.f32 %v674, %v713
  %v715 = vpop.f32.mrb[0].mxu0
  %v716 = vpop.f32.mrb[0].mxu0
  %v717 = vpop.f32.mrb[0].mxu0
  %718 = vdwg.mxu0
  %719 = vst [vmem:[%s2] sm:$0xff] %v714
  %p720 = scmp.eq.s32.totalorder 0, 0
  // Predicated region
  $region10: #{_lambda_.18} parent=0 // pred_check
    %p721 = pneg %p720
  $region11: #{_lambda_.18} parent=0 // pred_check_branch
    %723 = sbr.rel (%p721) target = $region13
  $region12: #{_lambda_.18} parent=0 // pred_region
    %724 = vst [vmem:[%s3] sm:$0xff] 0.0
    %725 = vst [vmem:[%s4] sm:$0xff] 0.0
  $region13: #{_lambda_.18} parent=0 // pred_fallthru
    _
  %v726 = vrot.slane %v714, 4
  %v727 = vadd.f32 %v714, %v726
  %v728 = vrot.slane %v727, 2
  %v729 = vadd.f32 %v727, %v728
  %v730 = vrot.slane %v729, 1
  %v731 = vadd.f32 %v729, %v730
  %v732 = vmul.f32 %v714, %v714
  %v733 = vrot.slane %v732, 4
  %v734 = vadd.f32 %v732, %v733
  %v735 = vrot.slane %v734, 2
  %v736 = vadd.f32 %v734, %v735
  %v737 = vrot.slane %v736, 1
  %v738 = vadd.f32 %v736, %v737
  %v739 = vld [vmem:[%s3] sm:$0xff]
  %v740 = vadd.f32 %v739, %v731
  %741 = vst [vmem:[%s3] sm:$0xff] %v740
  %v742 = vld [vmem:[%s4] sm:$0xff]
  %v743 = vadd.f32 %v742, %v738
  %744 = vst [vmem:[%s4] sm:$0xff] %v743
  // Predicated region
  $region14: #{_lambda_.18} parent=0 // pred_check
    _
  $region15: #{_lambda_.18} parent=0 // pred_check_branch
    %746 = sbr.rel (0) target = $region17
  $region16: #{_lambda_.18} parent=0 // pred_region
    _
  $region17: #{_lambda_.18} parent=0 // pred_fallthru
    _
  // Predicated region
  $region18: #{_lambda_.18} parent=0 // pred_check
    _
  $region19: #{_lambda_.18} parent=0 // pred_check_branch
    %748 = sbr.rel (0) target = $region21
  $region20: #{_lambda_.18} parent=0 // pred_region
    _
  $region21: #{_lambda_.18} parent=0 // pred_fallthru
    _
  // Predicated region
  $region22: #{_lambda_.18} parent=0 // pred_check
    _
  $region23: #{_lambda_.18} parent=0 // pred_check_branch
    %750 = sbr.rel (0) target = $region25
  $region24: #{_lambda_.18} parent=0 // pred_region
    _
  $region25: #{_lambda_.18} parent=0 // pred_fallthru
    _
  // Predicated region
  $region26: #{_lambda_.18} parent=0 // pred_check
    _
  $region27: #{_lambda_.18} parent=0 // pred_check_branch
    %752 = sbr.rel (0) target = $region29
  $region28: #{_lambda_.18} parent=0 // pred_region
    _
  $region29: #{_lambda_.18} parent=0 // pred_fallthru
    _
  // Predicated region
  $region30: #{_lambda_.18} parent=0 // pred_check
    _
  $region31: #{_lambda_.18} parent=0 // pred_check_branch
    %754 = sbr.rel (0) target = $region33
  $region32: #{_lambda_.18} parent=0 // pred_region
    _
  $region33: #{_lambda_.18} parent=0 // pred_fallthru
    _
  // Predicated region
  $region34: #{_lambda_.18} parent=0 // pred_check
    _
  $region35: #{_lambda_.18} parent=0 // pred_check_branch
    %756 = sbr.rel (0) target = $region37
  $region36: #{_lambda_.18} parent=0 // pred_region
    _
  $region37: #{_lambda_.18} parent=0 // pred_fallthru
    _

// kernel: _lambda_.20
$region0: #{_lambda_.20}
  #allocation0 [shape = 'u32[]', space=smem, size = 0x4, offset = 0x4, fixed_abs, tag = 'smem constant byte address 0x4 - core index']
  #allocation1 [shape = 'u32[144,128]{1,0:T(1,128)}', space=vmem, size = 0x12000, scoped, tag = 'internal scratch']
  %s0 = inlined_call_operand.vmem [shape: bf16[8,640], index: 0, kind: input, shape index: {}]
  %s1 = inlined_call_operand.vmem [shape: bf16[640,128], index: 1, kind: input, shape index: {}]
  %s2 = inlined_call_operand.vmem [shape: f32[8,128], index: 2, kind: output, shape index: {0}]
  %s3 = inlined_call_operand.vmem [shape: f32[8,128], index: 3, kind: output, shape index: {1}]
  %s4 = inlined_call_operand.vmem [shape: f32[8,128], index: 4, kind: output, shape index: {2}]
  %5 = xla_tuple %s2, %s3, %s4
  %s6 = sld [smem:[#allocation0]]
  $region38: #{_lambda_.20} parent=0
    _
  %s8 = ssub.s32 1, %s6
  %s9 = scalar_select 0, %s8, %s6
  // Predicated region
  $region2: #{_lambda_.20} parent=0 // pred_check
    _
  $region3: #{_lambda_.20} parent=0 // pred_check_branch
    %11 = sbr.rel (0) target = $region5
  $region4: #{_lambda_.20} parent=0 // pred_region
    _
  $region5: #{_lambda_.20} parent=0 // pred_fallthru
    _
  // Predicated region
  $region6: #{_lambda_.20} parent=0 // pred_check
    _
  $region7: #{_lambda_.20} parent=0 // pred_check_branch
    %13 = sbr.rel (0) target = $region9
  $region8: #{_lambda_.20} parent=0 // pred_region
    _
  $region9: #{_lambda_.20} parent=0 // pred_fallthru
    _
  %v15 = vld [vmem:[%s0] sm:$0xff]
  %v16 = vld [vmem:[%s0 + $0x8] sm:$0xff]
  %v17 = vld [vmem:[%s0 + $0x10] sm:$0xf]
  %v18 = vld [vmem:[%s1] sm:$0xf]
  %v19 = vld [vmem:[%s1 + $0x4] sm:$0xf]
  %v20 = vld [vmem:[%s1 + $0x8] sm:$0xf]
  %v21 = vld [vmem:[%s1 + $0xc] sm:$0xf]
  %v22 = vld [vmem:[%s1 + $0x10] sm:$0xf]
  %v23 = vld [vmem:[%s1 + $0x14] sm:$0xf]
  %v24 = vld [vmem:[%s1 + $0x18] sm:$0xf]
  %v25 = vld [vmem:[%s1 + $0x1c] sm:$0xf]
  %v26 = vld [vmem:[%s1 + $0x20] sm:$0xf]
  %v27 = vld [vmem:[%s1 + $0x24] sm:$0xf]
  %v28 = vld [vmem:[%s1 + $0x28] sm:$0xf]
  %v29 = vld [vmem:[%s1 + $0x2c] sm:$0xf]
  %v30 = vld [vmem:[%s1 + $0x30] sm:$0xf]
  %v31 = vld [vmem:[%s1 + $0x34] sm:$0xf]
  %v32 = vld [vmem:[%s1 + $0x38] sm:$0xf]
  %v33 = vld [vmem:[%s1 + $0x3c] sm:$0xf]
  %v34 = vld [vmem:[%s1 + $0x40] sm:$0xf]
  %v35 = vld [vmem:[%s1 + $0x44] sm:$0xf]
  %v36 = vld [vmem:[%s1 + $0x48] sm:$0xf]
  %v37 = vld [vmem:[%s1 + $0x4c] sm:$0xf]
  %v38 = vld [vmem:[%s1 + $0x50] sm:$0xf]
  %v39 = vld [vmem:[%s1 + $0x54] sm:$0xf]
  %v40 = vld [vmem:[%s1 + $0x58] sm:$0xf]
  %v41 = vld [vmem:[%s1 + $0x5c] sm:$0xf]
  %v42 = vld [vmem:[%s1 + $0x60] sm:$0xf]
  %v43 = vld [vmem:[%s1 + $0x64] sm:$0xf]
  %v44 = vld [vmem:[%s1 + $0x68] sm:$0xf]
  %v45 = vld [vmem:[%s1 + $0x6c] sm:$0xf]
  %v46 = vld [vmem:[%s1 + $0x70] sm:$0xf]
  %v47 = vld [vmem:[%s1 + $0x74] sm:$0xf]
  %v48 = vld [vmem:[%s1 + $0x78] sm:$0xf]
  %v49 = vld [vmem:[%s1 + $0x7c] sm:$0xf]
  %v50 = vld [vmem:[%s1 + $0x80] sm:$0xf]
  %v51 = vld [vmem:[%s1 + $0x84] sm:$0xf]
  %v52 = vld [vmem:[%s1 + $0x88] sm:$0xf]
  %v53 = vld [vmem:[%s1 + $0x8c] sm:$0xf]
  %v54 = vld [vmem:[%s1 + $0x90] sm:$0xf]
  %v55 = vld [vmem:[%s1 + $0x94] sm:$0xf]
  %v56 = vld [vmem:[%s1 + $0x98] sm:$0xf]
  %v57 = vld [vmem:[%s1 + $0x9c] sm:$0xf]
  %v58 = vld [vmem:[%s1 + $0xa0] sm:$0xf]
  %v59 = vld [vmem:[%s1 + $0xa4] sm:$0xf]
  %v60 = vld [vmem:[%s1 + $0xa8] sm:$0xf]
  %v61 = vld [vmem:[%s1 + $0xac] sm:$0xf]
  %v62 = vld [vmem:[%s1 + $0xb0] sm:$0xf]
  %v63 = vld [vmem:[%s1 + $0xb4] sm:$0xf]
  %v64 = vld [vmem:[%s1 + $0xb8] sm:$0xf]
  %v65 = vld [vmem:[%s1 + $0xbc] sm:$0xf]
  %v66 = vld [vmem:[%s1 + $0xc0] sm:$0xf]
  %v67 = vld [vmem:[%s1 + $0xc4] sm:$0xf]
  %v68 = vld [vmem:[%s1 + $0xc8] sm:$0xf]
  %v69 = vld [vmem:[%s1 + $0xcc] sm:$0xf]
  %v70 = vld [vmem:[%s1 + $0xd0] sm:$0xf]
  %v71 = vld [vmem:[%s1 + $0xd4] sm:$0xf]
  %v72 = vld [vmem:[%s1 + $0xd8] sm:$0xf]
  %v73 = vld [vmem:[%s1 + $0xdc] sm:$0xf]
  %v74 = vld [vmem:[%s1 + $0xe0] sm:$0xf]
  %v75 = vld [vmem:[%s1 + $0xe4] sm:$0xf]
  %v76 = vld [vmem:[%s1 + $0xe8] sm:$0xf]
  %v77 = vld [vmem:[%s1 + $0xec] sm:$0xf]
  %v78 = vld [vmem:[%s1 + $0xf0] sm:$0xf]
  %v79 = vld [vmem:[%s1 + $0xf4] sm:$0xf]
  %v80 = vld [vmem:[%s1 + $0xf8] sm:$0xf]
  %v81 = vld [vmem:[%s1 + $0xfc] sm:$0xf]
  %v82 = vld [vmem:[%s1 + $0x100] sm:$0xf]
  %v83 = vld [vmem:[%s1 + $0x104] sm:$0xf]
  %v84 = vld [vmem:[%s1 + $0x108] sm:$0xf]
  %v85 = vld [vmem:[%s1 + $0x10c] sm:$0xf]
  %v86 = vld [vmem:[%s1 + $0x110] sm:$0xf]
  %v87 = vld [vmem:[%s1 + $0x114] sm:$0xf]
  %v88 = vld [vmem:[%s1 + $0x118] sm:$0xf]
  %v89 = vld [vmem:[%s1 + $0x11c] sm:$0xf]
  %v90 = vld [vmem:[%s1 + $0x120] sm:$0xf]
  %v91 = vld [vmem:[%s1 + $0x124] sm:$0xf]
  %v92 = vld [vmem:[%s1 + $0x128] sm:$0xf]
  %v93 = vld [vmem:[%s1 + $0x12c] sm:$0xf]
  %v94 = vld [vmem:[%s1 + $0x130] sm:$0xf]
  %v95 = vld [vmem:[%s1 + $0x134] sm:$0xf]
  %v96 = vld [vmem:[%s1 + $0x138] sm:$0xf]
  %v97 = vld [vmem:[%s1 + $0x13c] sm:$0xf]
  %v101 = vunpack.c.l.b16 %v15
  %v102 = vunpack.c.h.b16 %v15
  %v103 = vunpack.c.l.b16 %v16
  %v104 = vunpack.c.h.b16 %v16
  %v105 = vunpack.c.l.b16 %v17
  %v106 = vpack.c.b16 %v101, %v101
  %v107 = vpack.c.b16 %v102, %v102
  %v108 = vpack.c.b16 %v103, %v103
  %v109 = vpack.c.b16 %v104, %v104
  %v110 = vpack.c.b16 %v105, %v105
  %v196 = vunpack.c.l.b16 %v18
  %v197 = vunpack.c.l.b16 %v19
  %v198 = vunpack.c.l.b16 %v20
  %v199 = vunpack.c.l.b16 %v21
  %v200 = vunpack.c.l.b16 %v22
  %v201 = vunpack.c.l.b16 %v23
  %v202 = vunpack.c.l.b16 %v24
  %v203 = vunpack.c.l.b16 %v25
  %v204 = vunpack.c.l.b16 %v26
  %v205 = vunpack.c.l.b16 %v27
  %v206 = vunpack.c.l.b16 %v28
  %v207 = vunpack.c.l.b16 %v29
  %v208 = vunpack.c.l.b16 %v30
  %v209 = vunpack.c.l.b16 %v31
  %v210 = vunpack.c.l.b16 %v32
  %v211 = vunpack.c.l.b16 %v33
  %v212 = vunpack.c.l.b16 %v34
  %v213 = vunpack.c.l.b16 %v35
  %v214 = vunpack.c.l.b16 %v36
  %v215 = vunpack.c.l.b16 %v37
  %v216 = vunpack.c.l.b16 %v38
  %v217 = vunpack.c.l.b16 %v39
  %v218 = vunpack.c.l.b16 %v40
  %v219 = vunpack.c.l.b16 %v41
  %v220 = vunpack.c.l.b16 %v42
  %v221 = vunpack.c.l.b16 %v43
  %v222 = vunpack.c.l.b16 %v44
  %v223 = vunpack.c.l.b16 %v45
  %v224 = vunpack.c.l.b16 %v46
  %v225 = vunpack.c.l.b16 %v47
  %v226 = vunpack.c.l.b16 %v48
  %v227 = vunpack.c.l.b16 %v49
  %v228 = vunpack.c.l.b16 %v50
  %v229 = vunpack.c.l.b16 %v51
  %v230 = vunpack.c.l.b16 %v52
  %v231 = vunpack.c.l.b16 %v53
  %v232 = vunpack.c.l.b16 %v54
  %v233 = vunpack.c.l.b16 %v55
  %v234 = vunpack.c.l.b16 %v56
  %v235 = vunpack.c.l.b16 %v57
  %v236 = vunpack.c.l.b16 %v58
  %v237 = vunpack.c.l.b16 %v59
  %v238 = vunpack.c.l.b16 %v60
  %v239 = vunpack.c.l.b16 %v61
  %v240 = vunpack.c.l.b16 %v62
  %v241 = vunpack.c.l.b16 %v63
  %v242 = vunpack.c.l.b16 %v64
  %v243 = vunpack.c.l.b16 %v65
  %v244 = vunpack.c.l.b16 %v66
  %v245 = vunpack.c.l.b16 %v67
  %v246 = vunpack.c.l.b16 %v68
  %v247 = vunpack.c.l.b16 %v69
  %v248 = vunpack.c.l.b16 %v70
  %v249 = vunpack.c.l.b16 %v71
  %v250 = vunpack.c.l.b16 %v72
  %v251 = vunpack.c.l.b16 %v73
  %v252 = vunpack.c.l.b16 %v74
  %v253 = vunpack.c.l.b16 %v75
  %v254 = vunpack.c.l.b16 %v76
  %v255 = vunpack.c.l.b16 %v77
  %v256 = vunpack.c.l.b16 %v78
  %v257 = vunpack.c.l.b16 %v79
  %v258 = vunpack.c.l.b16 %v80
  %v259 = vunpack.c.l.b16 %v81
  %v260 = vunpack.c.l.b16 %v82
  %v261 = vunpack.c.l.b16 %v83
  %v262 = vunpack.c.l.b16 %v84
  %v263 = vunpack.c.l.b16 %v85
  %v264 = vunpack.c.l.b16 %v86
  %v265 = vunpack.c.l.b16 %v87
  %v266 = vunpack.c.l.b16 %v88
  %v267 = vunpack.c.l.b16 %v89
  %v268 = vunpack.c.l.b16 %v90
  %v269 = vunpack.c.l.b16 %v91
  %v270 = vunpack.c.l.b16 %v92
  %v271 = vunpack.c.l.b16 %v93
  %v272 = vunpack.c.l.b16 %v94
  %v273 = vunpack.c.l.b16 %v95
  %v274 = vunpack.c.l.b16 %v96
  %v275 = vunpack.c.l.b16 %v97
  %v276 = vpack.c.b16 %v197, %v196
  %v277 = vpack.c.b16 %v199, %v198
  %v278 = vpack.c.b16 %v201, %v200
  %v279 = vpack.c.b16 %v203, %v202
  %v280 = vpack.c.b16 %v205, %v204
  %v281 = vpack.c.b16 %v207, %v206
  %v282 = vpack.c.b16 %v209, %v208
  %v283 = vpack.c.b16 %v211, %v210
  %v284 = vpack.c.b16 %v213, %v212
  %v285 = vpack.c.b16 %v215, %v214
  %v286 = vpack.c.b16 %v217, %v216
  %v287 = vpack.c.b16 %v219, %v218
  %v288 = vpack.c.b16 %v221, %v220
  %v289 = vpack.c.b16 %v223, %v222
  %v290 = vpack.c.b16 %v225, %v224
  %v291 = vpack.c.b16 %v227, %v226
  %v292 = vpack.c.b16 %v229, %v228
  %v293 = vpack.c.b16 %v231, %v230
  %v294 = vpack.c.b16 %v233, %v232
  %v295 = vpack.c.b16 %v235, %v234
  %v296 = vpack.c.b16 %v237, %v236
  %v297 = vpack.c.b16 %v239, %v238
  %v298 = vpack.c.b16 %v241, %v240
  %v299 = vpack.c.b16 %v243, %v242
  %v300 = vpack.c.b16 %v245, %v244
  %v301 = vpack.c.b16 %v247, %v246
  %v302 = vpack.c.b16 %v249, %v248
  %v303 = vpack.c.b16 %v251, %v250
  %v304 = vpack.c.b16 %v253, %v252
  %v305 = vpack.c.b16 %v255, %v254
  %v306 = vpack.c.b16 %v257, %v256
  %v307 = vpack.c.b16 %v259, %v258
  %v308 = vpack.c.b16 %v261, %v260
  %v309 = vpack.c.b16 %v263, %v262
  %v310 = vpack.c.b16 %v265, %v264
  %v311 = vpack.c.b16 %v267, %v266
  %v312 = vpack.c.b16 %v269, %v268
  %v313 = vpack.c.b16 %v271, %v270
  %v314 = vpack.c.b16 %v273, %v272
  %v315 = vpack.c.b16 %v275, %v274
  %356 = vmatprep.subr.bf16.mxu0 0
  %357 = vmatpush1.bf16.msra.mxu0 %v276
  %358 = vmatprep.subr.bf16.mxu0 0
  %359 = vmatpush1.bf16.msra.mxu0 %v277
  %360 = vmatprep.subr.bf16.mxu0 0
  %361 = vmatpush1.bf16.msra.mxu0 %v278
  %362 = vmatprep.subr.bf16.mxu0 0
  %363 = vmatpush1.bf16.msra.mxu0 %v279
  %364 = vmatprep.subr.bf16.mxu0 0
  %365 = vmatpush1.bf16.msra.mxu0 %v280
  %366 = vmatprep.subr.bf16.mxu0 0
  %367 = vmatpush1.bf16.msra.mxu0 %v281
  %368 = vmatprep.subr.bf16.mxu0 0
  %369 = vmatpush1.bf16.msra.mxu0 %v282
  %370 = vmatprep.subr.bf16.mxu0 0
  %371 = vmatpush1.bf16.msra.mxu0 %v283
  %372 = vmatprep.subr.bf16.mxu0 0
  %373 = vmatpush1.bf16.msra.mxu0 %v284
  %374 = vmatprep.subr.bf16.mxu0 0
  %375 = vmatpush1.bf16.msra.mxu0 %v285
  %376 = vmatprep.subr.bf16.mxu0 0
  %377 = vmatpush1.bf16.msra.mxu0 %v286
  %378 = vmatprep.subr.bf16.mxu0 0
  %379 = vmatpush1.bf16.msra.mxu0 %v287
  %380 = vmatprep.subr.bf16.mxu0 0
  %381 = vmatpush1.bf16.msra.mxu0 %v288
  %382 = vmatprep.subr.bf16.mxu0 0
  %383 = vmatpush1.bf16.msra.mxu0 %v289
  %384 = vmatprep.subr.bf16.mxu0 0
  %385 = vmatpush1.bf16.msra.mxu0 %v290
  %386 = vmatprep.subr.bf16.mxu0 0
  %387 = vmatpush1.bf16.msra.mxu0 %v291
  %388 = vmatprep.mubr.bf16.mxu0 %v107
  %389 = vmatmul.mubr.bf16.gmra.mrb[0].mxu0 %v106
  %v390 = vpop.f32.mrb[0].mxu0
  %v391 = vadd.f32 0.0, %v390
  %v392 = vpop.f32.mrb[0].mxu0
  %v393 = vpop.f32.mrb[0].mxu0
  %v394 = vpop.f32.mrb[0].mxu0
  %395 = vdwg.mxu0
  %396 = vmatprep.subr.bf16.mxu0 0
  %397 = vmatpush1.bf16.msra.mxu0 %v292
  %398 = vmatprep.subr.bf16.mxu0 0
  %399 = vmatpush1.bf16.msra.mxu0 %v293
  %400 = vmatprep.subr.bf16.mxu0 0
  %401 = vmatpush1.bf16.msra.mxu0 %v294
  %402 = vmatprep.subr.bf16.mxu0 0
  %403 = vmatpush1.bf16.msra.mxu0 %v295
  %404 = vmatprep.subr.bf16.mxu0 0
  %405 = vmatpush1.bf16.msra.mxu0 %v296
  %406 = vmatprep.subr.bf16.mxu0 0
  %407 = vmatpush1.bf16.msra.mxu0 %v297
  %408 = vmatprep.subr.bf16.mxu0 0
  %409 = vmatpush1.bf16.msra.mxu0 %v298
  %410 = vmatprep.subr.bf16.mxu0 0
  %411 = vmatpush1.bf16.msra.mxu0 %v299
  %412 = vmatprep.subr.bf16.mxu0 0
  %413 = vmatpush1.bf16.msra.mxu0 %v300
  %414 = vmatprep.subr.bf16.mxu0 0
  %415 = vmatpush1.bf16.msra.mxu0 %v301
  %416 = vmatprep.subr.bf16.mxu0 0
  %417 = vmatpush1.bf16.msra.mxu0 %v302
  %418 = vmatprep.subr.bf16.mxu0 0
  %419 = vmatpush1.bf16.msra.mxu0 %v303
  %420 = vmatprep.subr.bf16.mxu0 0
  %421 = vmatpush1.bf16.msra.mxu0 %v304
  %422 = vmatprep.subr.bf16.mxu0 0
  %423 = vmatpush1.bf16.msra.mxu0 %v305
  %424 = vmatprep.subr.bf16.mxu0 0
  %425 = vmatpush1.bf16.msra.mxu0 %v306
  %426 = vmatprep.subr.bf16.mxu0 0
  %427 = vmatpush1.bf16.msra.mxu0 %v307
  %428 = vmatprep.mubr.bf16.mxu0 %v109
  %429 = vmatmul.mubr.bf16.gmra.mrb[0].mxu0 %v108
  %v430 = vpop.f32.mrb[0].mxu0
  %v431 = vadd.f32 %v391, %v430
  %v432 = vpop.f32.mrb[0].mxu0
  %v433 = vpop.f32.mrb[0].mxu0
  %v434 = vpop.f32.mrb[0].mxu0
  %435 = vdwg.mxu0
  %436 = vmatprep.subr.bf16.mxu0 0
  %437 = vmatpush1.bf16.msra.mxu0 %v308
  %438 = vmatprep.subr.bf16.mxu0 0
  %439 = vmatpush1.bf16.msra.mxu0 %v309
  %440 = vmatprep.subr.bf16.mxu0 0
  %441 = vmatpush1.bf16.msra.mxu0 %v310
  %442 = vmatprep.subr.bf16.mxu0 0
  %443 = vmatpush1.bf16.msra.mxu0 %v311
  %444 = vmatprep.subr.bf16.mxu0 0
  %445 = vmatpush1.bf16.msra.mxu0 %v312
  %446 = vmatprep.subr.bf16.mxu0 0
  %447 = vmatpush1.bf16.msra.mxu0 %v313
  %448 = vmatprep.subr.bf16.mxu0 0
  %449 = vmatpush1.bf16.msra.mxu0 %v314
  %450 = vmatprep.subr.bf16.mxu0 0
  %451 = vmatpush1.bf16.msra.mxu0 %v315
  %452 = vmatprep.subr.bf16.mxu0 0
  %453 = vmatpush1.bf16.msra.mxu0 0
  %454 = vmatprep.subr.bf16.mxu0 0
  %455 = vmatpush1.bf16.msra.mxu0 0
  %456 = vmatprep.subr.bf16.mxu0 0
  %457 = vmatpush1.bf16.msra.mxu0 0
  %458 = vmatprep.subr.bf16.mxu0 0
  %459 = vmatpush1.bf16.msra.mxu0 0
  %460 = vmatprep.subr.bf16.mxu0 0
  %461 = vmatpush1.bf16.msra.mxu0 0
  %462 = vmatprep.subr.bf16.mxu0 0
  %463 = vmatpush1.bf16.msra.mxu0 0
  %464 = vmatprep.subr.bf16.mxu0 0
  %465 = vmatpush1.bf16.msra.mxu0 0
  %466 = vmatprep.subr.bf16.mxu0 0
  %467 = vmatpush1.bf16.msra.mxu0 0
  %468 = vmatprep.mubr.bf16.mxu0 0
  %469 = vmatmul.mubr.bf16.gmra.mrb[0].mxu0 %v110
  %v470 = vpop.f32.mrb[0].mxu0
  %v471 = vadd.f32 %v431, %v470
  %v472 = vpop.f32.mrb[0].mxu0
  %v473 = vpop.f32.mrb[0].mxu0
  %v474 = vpop.f32.mrb[0].mxu0
  %475 = vdwg.mxu0
  %476 = vst [vmem:[%s2] sm:$0xff] %v471
  %p477 = scmp.eq.s32.totalorder 0, 0
  // Predicated region
  $region10: #{_lambda_.20} parent=0 // pred_check
    %p478 = pneg %p477
  $region11: #{_lambda_.20} parent=0 // pred_check_branch
    %480 = sbr.rel (%p478) target = $region13
  $region12: #{_lambda_.20} parent=0 // pred_region
    %481 = vst [vmem:[%s3] sm:$0xff] 0.0
    %482 = vst [vmem:[%s4] sm:$0xff] 0.0
  $region13: #{_lambda_.20} parent=0 // pred_fallthru
    _
  %v483 = vrot.slane %v471, 4
  %v484 = vadd.f32 %v471, %v483
  %v485 = vrot.slane %v484, 2
  %v486 = vadd.f32 %v484, %v485
  %v487 = vrot.slane %v486, 1
  %v488 = vadd.f32 %v486, %v487
  %v489 = vmul.f32 %v471, %v471
  %v490 = vrot.slane %v489, 4
  %v491 = vadd.f32 %v489, %v490
  %v492 = vrot.slane %v491, 2
  %v493 = vadd.f32 %v491, %v492
  %v494 = vrot.slane %v493, 1
  %v495 = vadd.f32 %v493, %v494
  %v496 = vld [vmem:[%s3] sm:$0xff]
  %v497 = vadd.f32 %v496, %v488
  %498 = vst [vmem:[%s3] sm:$0xff] %v497
  %v499 = vld [vmem:[%s4] sm:$0xff]
  %v500 = vadd.f32 %v499, %v495
  %501 = vst [vmem:[%s4] sm:$0xff] %v500
  // Predicated region
  $region14: #{_lambda_.20} parent=0 // pred_check
    _
  $region15: #{_lambda_.20} parent=0 // pred_check_branch
    %503 = sbr.rel (0) target = $region17
  $region16: #{_lambda_.20} parent=0 // pred_region
    _
  $region17: #{_lambda_.20} parent=0 // pred_fallthru
    _
  // Predicated region
  $region18: #{_lambda_.20} parent=0 // pred_check
    _
  $region19: #{_lambda_.20} parent=0 // pred_check_branch
    %505 = sbr.rel (0) target = $region21
  $region20: #{_lambda_.20} parent=0 // pred_region
    _
  $region21: #{_lambda_.20} parent=0 // pred_fallthru
    _
  // Predicated region
  $region22: #{_lambda_.20} parent=0 // pred_check
    _
  $region23: #{_lambda_.20} parent=0 // pred_check_branch
    %507 = sbr.rel (0) target = $region25
  $region24: #{_lambda_.20} parent=0 // pred_region
    _
  $region25: #{_lambda_.20} parent=0 // pred_fallthru
    _
  // Predicated region
  $region26: #{_lambda_.20} parent=0 // pred_check
    _
  $region27: #{_lambda_.20} parent=0 // pred_check_branch
    %509 = sbr.rel (0) target = $region29
  $region28: #{_lambda_.20} parent=0 // pred_region
    _
  $region29: #{_lambda_.20} parent=0 // pred_fallthru
    _
  // Predicated region
  $region30: #{_lambda_.20} parent=0 // pred_check
    _
  $region31: #{_lambda_.20} parent=0 // pred_check_branch
    %511 = sbr.rel (0) target = $region33
  $region32: #{_lambda_.20} parent=0 // pred_region
    _
  $region33: #{_lambda_.20} parent=0 // pred_fallthru
    _
  // Predicated region
  $region34: #{_lambda_.20} parent=0 // pred_check
    _
  $region35: #{_lambda_.20} parent=0 // pred_check_branch
    %513 = sbr.rel (0) target = $region37
  $region36: #{_lambda_.20} parent=0 // pred_region
    _
  $region37: #{_lambda_.20} parent=0 // pred_fallthru
    _

</llo_original>
